<compile_context>
chip_gen: v7x
topology: tpu7x:2x2x1
jax: 0.10.0
libtpu: 0.0.40
codegen_flags: <defaults>
</compile_context>

<pallas_src>
import jax
import jax.numpy as jnp
from jax import lax
from jax.experimental import pallas as pl
from jax.experimental.pallas import tpu as pltpu

# ---- static configuration (small shapes consistent with the module) ----
B0, B1 = 2, 3            # leading batch dims
B = B0 * B1              # 6 batch elements
B_PAD = 8                # padded batch (full sublane tile for the output store)
P = 4                    # players per batch element
P_PAD = 8                # padded players per batch element (tile-aligned player maxpool)
C = 16                   # cards per hand
MAX_SUIT_LEN = 13        # rank vocabulary: rank in [-1, 12]
NUM_SUITS = 4            # suit vocabulary: suit in [-1, 3]
D_CARD = 32              # card embedding dim (CardModel output_dim)
H_HAND = 64              # HandModel MLP hidden dim
HAND_OUT = 64            # HandModel output dim
D_PLAYER = 64            # player embedding dim
Z_DIM = HAND_OUT + D_PLAYER   # 128
H_HANDS = 64             # HandsModel MLP hidden dim
OUT = 32                 # HandsModel output dim
OUT_PAD = 128            # lane-dense output width (zero-padded weight columns)
LN_EPS = 1e-5

R1 = MAX_SUIT_LEN + 1    # rank table rows (padding row 0) = 14
S1 = NUM_SUITS + 1       # suit table rows (padding row 0) = 5
NUM_COMBO = R1 * S1      # 70 distinct (rank, suit) combinations
COMBO_PAD = 128          # combo rows padded to 128 lanes for the one-hot matmul

ROWS_CARD = B_PAD * P_PAD * C     # 1024 card rows per kernel call
ROWS_PLAYER = B_PAD * P_PAD       # 64 player rows per kernel call

# ---- parameter-slab row offsets (all multiples of 8 -> tile-aligned static slices) ----
R_COMBO = 0                           # (COMBO_PAD, D_CARD)   rank+suit combo embeddings
R_WH1 = R_COMBO + COMBO_PAD           # (D_CARD, H_HAND)      hand MLP W1 (LN1 gamma folded)
R_BH1 = R_WH1 + D_CARD                # (1, H_HAND)           hand MLP b1 (LN1 beta folded)
R_WH2 = R_BH1 + 8                     # (H_HAND, HAND_OUT)    hand MLP W2
R_BH2 = R_WH2 + H_HAND                # (1, HAND_OUT)         hand MLP b2
R_PEMB = R_BH2 + 8                    # (ROWS_PLAYER, D_PLAYER) pre-tiled player embeddings
R_W1 = R_PEMB + ROWS_PLAYER           # (Z_DIM, H_HANDS)      hands MLP W1 (LN2 gamma folded)
R_B1 = R_W1 + Z_DIM                   # (1, H_HANDS)          hands MLP b1 (LN2 beta folded)
R_W2 = R_B1 + 8                       # (H_HANDS, OUT_PAD)    hands MLP W2 (zero-padded to 128)
R_B2 = R_W2 + H_HANDS                 # (1, OUT_PAD)          hands MLP b2 (zero-padded to 128)
SLAB_ROWS = R_B2 + 8                  # 512 rows x 128 lanes x 4 B = 256 KB (one DMA stream)


def get_pos_embed(num_pos, output_dim):
    pos = jnp.arange(num_pos, dtype=jnp.float32)
    ch = jnp.arange(output_dim // 2, dtype=jnp.float32)
    freq = 1.0 / (0.5 * num_pos ** (ch / (output_dim // 2)))
    arg = jnp.einsum('p,c->pc', pos, freq)
    return jnp.stack([jnp.cos(arg), jnp.sin(arg)], axis=-1).reshape(num_pos, output_dim)


def _layer_norm(x, g, b):
    mu = jnp.mean(x, axis=-1, keepdims=True)
    var = jnp.mean((x - mu) ** 2, axis=-1, keepdims=True)
    return (x - mu) * lax.rsqrt(var + LN_EPS) * g + b


def _ln_noaffine(x):
    mu = jnp.mean(x, axis=-1, keepdims=True)
    var = jnp.mean((x - mu) ** 2, axis=-1, keepdims=True)
    return (x - mu) * lax.rsqrt(var + LN_EPS)


# ----------------------------- Pallas kernel -----------------------------
def hands_kernel(idx_ref, slab_ref, out_ref):
    neg_inf = jnp.float32(-jnp.inf)

    # --- preamble: materialize the 70-combo card pipeline as a (COMBO_PAD, HAND_OUT) table ---
    # (LN1 affine folded into wh1/bh1; padded combo rows are zeros -> LN gives zeros, no NaN;
    #  their garbage table rows are never selected by the one-hot below.)
    combo = slab_ref[R_COMBO:R_COMBO + COMBO_PAD, :D_CARD]
    wh1f = slab_ref[R_WH1:R_WH1 + D_CARD, :H_HAND]
    bh1f = slab_ref[R_BH1:R_BH1 + 1, :H_HAND]
    wh2 = slab_ref[R_WH2:R_WH2 + H_HAND, :HAND_OUT]
    bh2 = slab_ref[R_BH2:R_BH2 + 1, :HAND_OUT]
    xhat = _ln_noaffine(combo)
    h = jnp.maximum(jnp.dot(xhat, wh1f, preferred_element_type=jnp.float32) + bh1f, 0.0)
    card_tab = jnp.dot(h, wh2, preferred_element_type=jnp.float32) + bh2        # (COMBO_PAD, HAND_OUT)

    # --- card stage: gather per-card outputs via one one-hot matmul on the MXU ---
    idx = idx_ref[...]                                  # (ROWS_CARD, 2) int32
    ranks = idx[:, 0:1]                                 # (ROWS_CARD, 1)
    suits = idx[:, 1:2]
    card_id = (ranks + 1) * S1 + (suits + 1)            # in [0, NUM_COMBO)
    col = lax.broadcasted_iota(jnp.int32, (ROWS_CARD, COMBO_PAD), 1)
    oh = (card_id == col).astype(jnp.float32)           # (ROWS_CARD, COMBO_PAD)
    y = jnp.dot(oh, card_tab, preferred_element_type=jnp.float32)               # (ROWS_CARD, HAND_OUT)

    # maxpool over the C cards of each (batch, player) hand (tile-aligned reshape + reduce)
    y = jnp.where(ranks == -1, neg_inf, y)
    hand = jnp.max(y.reshape(ROWS_PLAYER, C, HAND_OUT), axis=1)                 # (ROWS_PLAYER, HAND_OUT)

    # players with no valid card (incl. all padded dummy players/batches) -> masked, zero-filled
    pmask = ~(jnp.abs(hand[:, 0:1]) < jnp.inf)          # ~isfinite without lax.is_finite
    hand = jnp.where(pmask, 0.0, hand)

    # --- hands stage: concat player embed, LN (affine folded into w1/b1), MLP ---
    pemb = slab_ref[R_PEMB:R_PEMB + ROWS_PLAYER, :D_PLAYER]
    z = _ln_noaffine(jnp.concatenate([hand, pemb], axis=-1))                    # (ROWS_PLAYER, Z_DIM)
    w1f = slab_ref[R_W1:R_W1 + Z_DIM, :H_HANDS]
    b1f = slab_ref[R_B1:R_B1 + 1, :H_HANDS]
    w2p = slab_ref[R_W2:R_W2 + H_HANDS, :OUT_PAD]
    b2p = slab_ref[R_B2:R_B2 + 1, :OUT_PAD]
    h2 = jnp.maximum(jnp.dot(z, w1f, preferred_element_type=jnp.float32) + b1f, 0.0)
    o = jnp.dot(h2, w2p, preferred_element_type=jnp.float32) + b2p              # (ROWS_PLAYER, OUT_PAD)

    # maxpool over the P_PAD players of each padded batch element; full (8, 128) unmasked store
    o = jnp.where(pmask, neg_inf, o)
    out_ref[...] = jnp.max(o.reshape(B_PAD, P_PAD, OUT_PAD), axis=1)            # (B_PAD, OUT_PAD)


# ----------------------------- wrapper -----------------------------
def _build_param_slab(params):
    """Pack every parameter tensor (with LN affines folded into the following Linear
    layers and w2/b2 zero-padded to 128 output lanes) into one (SLAB_ROWS, 128) slab."""
    slab = jnp.zeros((SLAB_ROWS, 128), jnp.float32)

    # (rank, suit) combo embeddings: rank_table[r] + suit_table[s], row index = r*S1 + s
    combo = (params['rank_table'][:, None, :] + params['suit_table'][None, :, :]
             ).reshape(NUM_COMBO, D_CARD)
    slab = slab.at[R_COMBO:R_COMBO + NUM_COMBO, :D_CARD].set(combo)

    # hand MLP with LN1 affine folded in
    wh1f = params['ln1_g'][0][:, None] * params['wh1']
    bh1f = params['ln1_b'] @ params['wh1'] + params['bh1']
    slab = slab.at[R_WH1:R_WH1 + D_CARD, :H_HAND].set(wh1f)
    slab = slab.at[R_BH1, :H_HAND].set(bh1f[0])
    slab = slab.at[R_WH2:R_WH2 + H_HAND, :HAND_OUT].set(params['wh2'])
    slab = slab.at[R_BH2, :HAND_OUT].set(params['bh2'][0])

    # player embeddings for players arange(P)+1, padded to P_PAD and pre-tiled per batch row
    pemb = params['player_table'][1:P + 1]                                    # (P, D_PLAYER)
    pemb_pad = jnp.zeros((P_PAD, D_PLAYER), jnp.float32).at[:P].set(pemb)
    slab = slab.at[R_PEMB:R_PEMB + ROWS_PLAYER, :D_PLAYER].set(jnp.tile(pemb_pad, (B_PAD, 1)))

    # hands MLP with LN2 affine folded in; last layer zero-padded to 128 output lanes
    w1f = params['ln2_g'][0][:, None] * params['w1']
    b1f = params['ln2_b'] @ params['w1'] + params['b1']
    slab = slab.at[R_W1:R_W1 + Z_DIM, :H_HANDS].set(w1f)
    slab = slab.at[R_B1, :H_HANDS].set(b1f[0])
    slab = slab.at[R_W2:R_W2 + H_HANDS, :OUT].set(params['w2'])
    slab = slab.at[R_B2, :OUT].set(params['b2'][0])
    return slab


def hands_model_forward(x, params):
    b0, b1, p_, c_, two = x.shape
    assert (p_, c_, two) == (P, C, 2)
    batch = b0 * b1
    assert batch <= B_PAD

    # layout plumbing: pad players P->P_PAD and batch B->B_PAD with masked cards (rank=suit=-1)
    xi = x.reshape(batch, P, C, 2).astype(jnp.int32)
    xi = jnp.pad(xi, ((0, B_PAD - batch), (0, P_PAD - P), (0, 0), (0, 0)), constant_values=-1)
    idx = xi.reshape(ROWS_CARD, 2)

    slab = _build_param_slab(params)

    grid_spec = pltpu.PrefetchScalarGridSpec(
        num_scalar_prefetch=0,
        grid=(1,),                                                   # single step: whole batch
        in_specs=[
            pl.BlockSpec((ROWS_CARD, 2), lambda i: (0, 0)),          # fused rank/suit indices
            pl.BlockSpec((SLAB_ROWS, 128), lambda i: (0, 0)),        # packed parameter slab
        ],
        out_specs=pl.BlockSpec((B_PAD, OUT_PAD), lambda i: (0, 0)),  # full (8, 128) tile store
    )
    out = pl.pallas_call(
        hands_kernel,
        grid_spec=grid_spec,
        out_shape=jax.ShapeDtypeStruct((B_PAD, OUT_PAD), jnp.float32),
        compiler_params=pltpu.CompilerParams(dimension_semantics=("arbitrary",)),
    )(idx, slab)

    return out[:batch, :OUT].reshape(b0, b1, OUT)


# ----------------------------- pure-JAX reference -----------------------------
def reference_forward(x, params):
    ranks = x[..., 0]
    suits = x[..., 1]
    card_mask = (ranks == -1)[..., None]
    emb = params['rank_table'][ranks + 1] + params['suit_table'][suits + 1]
    emb = _layer_norm(emb, params['ln1_g'][0], params['ln1_b'][0])
    h = jax.nn.relu(emb @ params['wh1'] + params['bh1'][0])
    y = h @ params['wh2'] + params['bh2'][0]
    y = jnp.where(card_mask, -jnp.inf, y)
    hand = jnp.max(y, axis=-2)
    pmask = ~jnp.isfinite(hand[..., 0:1])
    hand = jnp.where(pmask, 0.0, hand)
    pemb = params['player_table'][jnp.arange(P) + 1]
    pemb = jnp.broadcast_to(pemb, hand.shape[:-1] + (pemb.shape[-1],))
    z = jnp.concatenate([hand, pemb], axis=-1)
    z = _layer_norm(z, params['ln2_g'][0], params['ln2_b'][0])
    h2 = jax.nn.relu(z @ params['w1'] + params['b1'][0])
    o = h2 @ params['w2'] + params['b2'][0]
    o = jnp.where(pmask, -jnp.inf, o)
    return jnp.max(o, axis=-2)


# ----------------------------- params -----------------------------
def make_params(key):
    ks = jax.random.split(key, 14)

    def nrm(k, shape, scale=0.1):
        return (scale * jax.random.normal(k, shape)).astype(jnp.float32)

    return dict(
        rank_table=get_pos_embed(R1, D_CARD),                        # use_pos=True -> 'pos' embed
        suit_table=nrm(ks[0], (S1, D_CARD)).at[0].set(0.0),          # padding_idx=0
        player_table=nrm(ks[1], (P + 1, D_PLAYER)).at[0].set(0.0),   # padding_idx=0
        ln1_g=(1.0 + nrm(ks[2], (1, D_CARD))),
        ln1_b=nrm(ks[3], (1, D_CARD)),
        wh1=nrm(ks[4], (D_CARD, H_HAND)),
        bh1=nrm(ks[5], (1, H_HAND)),
        wh2=nrm(ks[6], (H_HAND, HAND_OUT)),
        bh2=nrm(ks[7], (1, HAND_OUT)),
        ln2_g=(1.0 + nrm(ks[8], (1, Z_DIM))),
        ln2_b=nrm(ks[9], (1, Z_DIM)),
        w1=nrm(ks[10], (Z_DIM, H_HANDS)),
        b1=nrm(ks[11], (1, H_HANDS)),
        w2=nrm(ks[12], (H_HANDS, OUT)),
        b2=nrm(ks[13], (1, OUT)),
    )


if __name__ == "__main__":
    key = jax.random.PRNGKey(0)
    kp, kr, ksu, kv = jax.random.split(key, 4)
    params = make_params(kp)

    ranks = jax.random.randint(kr, (B0, B1, P, C), 0, MAX_SUIT_LEN)
    suits = jax.random.randint(ksu, (B0, B1, P, C), 0, NUM_SUITS)
    valid = jax.random.bernoulli(kv, 0.7, (B0, B1, P, C))
    valid = valid.at[..., 0, 0].set(True)        # ensure >= 1 valid card so final aggregate is finite
    ranks = jnp.where(valid, ranks, -1)
    suits = jnp.where(valid, suits, -1)
    x = jnp.stack([ranks, suits], axis=-1).astype(jnp.int32)   # (B0, B1, P, C, 2)

    out = jax.block_until_ready(hands_model_forward(x, params))
    ref = reference_forward(x, params)

    assert out.shape == (B0, B1, OUT)
    assert bool(jnp.all(jnp.isfinite(out)))      # torch's check_finite assert, done host-side
    assert bool(jnp.allclose(out, ref, atol=2e-3, rtol=2e-3)), float(jnp.max(jnp.abs(out - ref)))
    print("KERNEL_OK")
</pallas_src>

<mosaic_0001>
module attributes {stable_mosaic.version = 11 : i64} {
  func.func @hands_kernel(%arg0: i32, %arg1: memref<1024x2xi32, #tpu.memory_space<vmem>>, %arg2: memref<512x128xf32, #tpu.memory_space<vmem>>, %arg3: memref<8x128xf32, #tpu.memory_space<vmem>>) attributes {dimension_semantics = [#tpu.dimension_semantics<arbitrary>], iteration_bounds = array<i64: 1>, scalar_prefetch = 0 : i64, scratch_operands = 0 : i64, tpu.core_type = #tpu.core_type<tc>, window_params = [{pipeline_mode = #tpu.pipeline_mode<synchronous>, transform_indices = @transform_0, window_bounds = array<i64: 1024, 2>}, {pipeline_mode = #tpu.pipeline_mode<synchronous>, transform_indices = @transform_1, window_bounds = array<i64: 512, 128>}, {pipeline_mode = #tpu.pipeline_mode<synchronous>, transform_indices = @transform_2, window_bounds = array<i64: 8, 128>}]} {
    %c0 = arith.constant 0 : index
    %c0_0 = arith.constant 0 : index
    %0 = vector.load %arg2[%c0, %c0_0] : memref<512x128xf32, #tpu.memory_space<vmem>>, vector<128x32xf32>
    %c128 = arith.constant 128 : index
    %c0_1 = arith.constant 0 : index
    %1 = vector.load %arg2[%c128, %c0_1] : memref<512x128xf32, #tpu.memory_space<vmem>>, vector<32x64xf32>
    %c160 = arith.constant 160 : index
    %c0_2 = arith.constant 0 : index
    %2 = vector.load %arg2[%c160, %c0_2] : memref<512x128xf32, #tpu.memory_space<vmem>>, vector<1x64xf32>
    %c168 = arith.constant 168 : index
    %c0_3 = arith.constant 0 : index
    %3 = vector.load %arg2[%c168, %c0_3] : memref<512x128xf32, #tpu.memory_space<vmem>>, vector<64x64xf32>
    %c232 = arith.constant 232 : index
    %c0_4 = arith.constant 0 : index
    %4 = vector.load %arg2[%c232, %c0_4] : memref<512x128xf32, #tpu.memory_space<vmem>>, vector<1x64xf32>
    %cst = arith.constant dense<0.000000e+00> : vector<128xf32>
    %5 = vector.multi_reduction <add>, %0, %cst [1] : vector<128x32xf32> to vector<128xf32>
    %6 = vector.shape_cast %5 : vector<128xf32> to vector<128x1xf32>
    %cst_5 = arith.constant 3.200000e+01 : f32
    %7 = vector.broadcast %cst_5 : f32 to vector<128x1xf32>
    %8 = arith.divf %6, %7 : vector<128x1xf32>
    %9 = vector.broadcast %8 : vector<128x1xf32> to vector<128x32xf32>
    %10 = arith.subf %0, %9 : vector<128x32xf32>
    %11 = arith.mulf %10, %10 : vector<128x32xf32>
    %cst_6 = arith.constant dense<0.000000e+00> : vector<128xf32>
    %12 = vector.multi_reduction <add>, %11, %cst_6 [1] : vector<128x32xf32> to vector<128xf32>
    %13 = vector.shape_cast %12 : vector<128xf32> to vector<128x1xf32>
    %cst_7 = arith.constant 3.200000e+01 : f32
    %14 = vector.broadcast %cst_7 : f32 to vector<128x1xf32>
    %15 = arith.divf %13, %14 : vector<128x1xf32>
    %16 = vector.broadcast %8 : vector<128x1xf32> to vector<128x32xf32>
    %17 = arith.subf %0, %16 : vector<128x32xf32>
    %cst_8 = arith.constant 9.99999974E-6 : f32
    %18 = vector.broadcast %cst_8 : f32 to vector<128x1xf32>
    %19 = arith.addf %15, %18 : vector<128x1xf32>
    %20 = math.rsqrt %19 : vector<128x1xf32>
    %21 = vector.broadcast %20 : vector<128x1xf32> to vector<128x32xf32>
    %22 = arith.mulf %17, %21 : vector<128x32xf32>
    %cst_9 = arith.constant dense<0.000000e+00> : vector<128x64xf32>
    %23 = tpu.matmul %22, %1, %cst_9 {dimension_numbers = #tpu.dot_dimension_numbers<[1], [0], [0], [1], [0, 0, 1, 1], [], []>} : vector<128x32xf32>, vector<32x64xf32>, vector<128x64xf32> -> vector<128x64xf32>
    %24 = vector.broadcast %2 : vector<1x64xf32> to vector<128x64xf32>
    %25 = arith.addf %23, %24 : vector<128x64xf32>
    %cst_10 = arith.constant 0.000000e+00 : f32
    %26 = vector.broadcast %cst_10 : f32 to vector<128x64xf32>
    %27 = arith.maximumf %25, %26 : vector<128x64xf32>
    %cst_11 = arith.constant dense<0.000000e+00> : vector<128x64xf32>
    %28 = tpu.matmul %27, %3, %cst_11 {dimension_numbers = #tpu.dot_dimension_numbers<[1], [0], [0], [1], [0, 0, 1, 1], [], []>} : vector<128x64xf32>, vector<64x64xf32>, vector<128x64xf32> -> vector<128x64xf32>
    %29 = vector.broadcast %4 : vector<1x64xf32> to vector<128x64xf32>
    %30 = arith.addf %28, %29 : vector<128x64xf32>
    %c0_12 = arith.constant 0 : index
    %c0_13 = arith.constant 0 : index
    %31 = vector.load %arg1[%c0_12, %c0_13] : memref<1024x2xi32, #tpu.memory_space<vmem>>, vector<1024x2xi32>
    %32 = vector.extract_strided_slice %31 {offsets = [0, 0], sizes = [1024, 1], strides = [1, 1]} : vector<1024x2xi32> to vector<1024x1xi32>
    %33 = vector.extract_strided_slice %31 {offsets = [0, 1], sizes = [1024, 1], strides = [1, 1]} : vector<1024x2xi32> to vector<1024x1xi32>
    %c1_i32 = arith.constant 1 : i32
    %34 = vector.broadcast %c1_i32 : i32 to vector<1024x1xi32>
    %35 = arith.addi %32, %34 : vector<1024x1xi32>
    %c5_i32 = arith.constant 5 : i32
    %36 = vector.broadcast %c5_i32 : i32 to vector<1024x1xi32>
    %37 = arith.muli %35, %36 : vector<1024x1xi32>
    %c1_i32_14 = arith.constant 1 : i32
    %38 = vector.broadcast %c1_i32_14 : i32 to vector<1024x1xi32>
    %39 = arith.addi %33, %38 : vector<1024x1xi32>
    %40 = arith.addi %37, %39 : vector<1024x1xi32>
    %41 = tpu.iota {dimensions = array<i32: 1>} : vector<1024x128xi32>
    %42 = vector.broadcast %40 : vector<1024x1xi32> to vector<1024x128xi32>
    %43 = arith.cmpi eq, %42, %41 : vector<1024x128xi32>
    %44 = arith.extui %43 : vector<1024x128xi1> to vector<1024x128xi32>
    %45 = arith.sitofp %44 : vector<1024x128xi32> to vector<1024x128xf32>
    %cst_15 = arith.constant dense<0.000000e+00> : vector<1024x64xf32>
    %46 = tpu.matmul %45, %30, %cst_15 {dimension_numbers = #tpu.dot_dimension_numbers<[1], [0], [0], [1], [0, 0, 1, 1], [], []>} : vector<1024x128xf32>, vector<128x64xf32>, vector<1024x64xf32> -> vector<1024x64xf32>
    %c-1_i32 = arith.constant -1 : i32
    %47 = vector.broadcast %c-1_i32 : i32 to vector<1024x1xi32>
    %48 = arith.cmpi eq, %32, %47 : vector<1024x1xi32>
    %cst_16 = arith.constant 0xFF800000 : f32
    %49 = vector.shape_cast %48 : vector<1024x1xi1> to vector<1024x1xi1>
    %50 = vector.broadcast %49 : vector<1024x1xi1> to vector<1024x64xi1>
    %51 = vector.broadcast %cst_16 : f32 to vector<1024x64xf32>
    %52 = arith.select %50, %51, %46 : vector<1024x64xi1>, vector<1024x64xf32>
    %53 = vector.shape_cast %52 : vector<1024x64xf32> to vector<64x16x64xf32>
    %cst_17 = arith.constant dense<0xFF800000> : vector<64x64xf32>
    %54 = vector.multi_reduction <maximumf>, %53, %cst_17 [1] : vector<64x16x64xf32> to vector<64x64xf32>
    %55 = vector.extract_strided_slice %54 {offsets = [0, 0], sizes = [64, 1], strides = [1, 1]} : vector<64x64xf32> to vector<64x1xf32>
    %56 = math.absf %55 : vector<64x1xf32>
    %cst_18 = arith.constant 0x7F800000 : f32
    %57 = vector.broadcast %cst_18 : f32 to vector<64x1xf32>
    %58 = arith.cmpf olt, %56, %57 : vector<64x1xf32>
    %cst_19 = arith.constant dense<true> : vector<64x1xi1>
    %59 = arith.xori %58, %cst_19 : vector<64x1xi1>
    %cst_20 = arith.constant 0.000000e+00 : f32
    %60 = vector.shape_cast %59 : vector<64x1xi1> to vector<64x1xi1>
    %61 = vector.broadcast %60 : vector<64x1xi1> to vector<64x64xi1>
    %62 = vector.broadcast %cst_20 : f32 to vector<64x64xf32>
    %63 = arith.select %61, %62, %54 : vector<64x64xi1>, vector<64x64xf32>
    %c240 = arith.constant 240 : index
    %c0_21 = arith.constant 0 : index
    %64 = vector.load %arg2[%c240, %c0_21] : memref<512x128xf32, #tpu.memory_space<vmem>>, vector<64x64xf32>
    %65 = tpu.concatenate %63, %64 in 1 : vector<64x64xf32>, vector<64x64xf32> -> vector<64x128xf32>
    %cst_22 = arith.constant dense<0.000000e+00> : vector<64xf32>
    %66 = vector.multi_reduction <add>, %65, %cst_22 [1] : vector<64x128xf32> to vector<64xf32>
    %67 = vector.shape_cast %66 : vector<64xf32> to vector<64x1xf32>
    %cst_23 = arith.constant 1.280000e+02 : f32
    %68 = vector.broadcast %cst_23 : f32 to vector<64x1xf32>
    %69 = arith.divf %67, %68 : vector<64x1xf32>
    %70 = vector.broadcast %69 : vector<64x1xf32> to vector<64x128xf32>
    %71 = arith.subf %65, %70 : vector<64x128xf32>
    %72 = arith.mulf %71, %71 : vector<64x128xf32>
    %cst_24 = arith.constant dense<0.000000e+00> : vector<64xf32>
    %73 = vector.multi_reduction <add>, %72, %cst_24 [1] : vector<64x128xf32> to vector<64xf32>
    %74 = vector.shape_cast %73 : vector<64xf32> to vector<64x1xf32>
    %cst_25 = arith.constant 1.280000e+02 : f32
    %75 = vector.broadcast %cst_25 : f32 to vector<64x1xf32>
    %76 = arith.divf %74, %75 : vector<64x1xf32>
    %77 = vector.broadcast %69 : vector<64x1xf32> to vector<64x128xf32>
    %78 = arith.subf %65, %77 : vector<64x128xf32>
    %cst_26 = arith.constant 9.99999974E-6 : f32
    %79 = vector.broadcast %cst_26 : f32 to vector<64x1xf32>
    %80 = arith.addf %76, %79 : vector<64x1xf32>
    %81 = math.rsqrt %80 : vector<64x1xf32>
    %82 = vector.broadcast %81 : vector<64x1xf32> to vector<64x128xf32>
    %83 = arith.mulf %78, %82 : vector<64x128xf32>
    %c304 = arith.constant 304 : index
    %c0_27 = arith.constant 0 : index
    %84 = vector.load %arg2[%c304, %c0_27] : memref<512x128xf32, #tpu.memory_space<vmem>>, vector<128x64xf32>
    %c432 = arith.constant 432 : index
    %c0_28 = arith.constant 0 : index
    %85 = vector.load %arg2[%c432, %c0_28] : memref<512x128xf32, #tpu.memory_space<vmem>>, vector<1x64xf32>
    %c440 = arith.constant 440 : index
    %c0_29 = arith.constant 0 : index
    %86 = vector.load %arg2[%c440, %c0_29] : memref<512x128xf32, #tpu.memory_space<vmem>>, vector<64x128xf32>
    %c504 = arith.constant 504 : index
    %c0_30 = arith.constant 0 : index
    %87 = vector.load %arg2[%c504, %c0_30] : memref<512x128xf32, #tpu.memory_space<vmem>>, vector<1x128xf32>
    %cst_31 = arith.constant dense<0.000000e+00> : vector<64x64xf32>
    %88 = tpu.matmul %83, %84, %cst_31 {dimension_numbers = #tpu.dot_dimension_numbers<[1], [0], [0], [1], [0, 0, 1, 1], [], []>} : vector<64x128xf32>, vector<128x64xf32>, vector<64x64xf32> -> vector<64x64xf32>
    %89 = vector.broadcast %85 : vector<1x64xf32> to vector<64x64xf32>
    %90 = arith.addf %88, %89 : vector<64x64xf32>
    %cst_32 = arith.constant 0.000000e+00 : f32
    %91 = vector.broadcast %cst_32 : f32 to vector<64x64xf32>
    %92 = arith.maximumf %90, %91 : vector<64x64xf32>
    %cst_33 = arith.constant dense<0.000000e+00> : vector<64x128xf32>
    %93 = tpu.matmul %92, %86, %cst_33 {dimension_numbers = #tpu.dot_dimension_numbers<[1], [0], [0], [1], [0, 0, 1, 1], [], []>} : vector<64x64xf32>, vector<64x128xf32>, vector<64x128xf32> -> vector<64x128xf32>
    %94 = vector.broadcast %87 : vector<1x128xf32> to vector<64x128xf32>
    %95 = arith.addf %93, %94 : vector<64x128xf32>
    %cst_34 = arith.constant 0xFF800000 : f32
    %96 = vector.shape_cast %59 : vector<64x1xi1> to vector<64x1xi1>
    %97 = vector.broadcast %96 : vector<64x1xi1> to vector<64x128xi1>
    %98 = vector.broadcast %cst_34 : f32 to vector<64x128xf32>
    %99 = arith.select %97, %98, %95 : vector<64x128xi1>, vector<64x128xf32>
    %100 = vector.shape_cast %99 : vector<64x128xf32> to vector<8x8x128xf32>
    %cst_35 = arith.constant dense<0xFF800000> : vector<8x128xf32>
    %101 = vector.multi_reduction <maximumf>, %100, %cst_35 [1] : vector<8x8x128xf32> to vector<8x128xf32>
    %c0_36 = arith.constant 0 : index
    %c0_37 = arith.constant 0 : index
    %102 = vector.load %arg3[%c0_36, %c0_37] : memref<8x128xf32, #tpu.memory_space<vmem>>, vector<8x128xf32>
    tpu.vector_store %arg3[%c0_36, %c0_37], %101 {strides = array<i32>} : memref<8x128xf32, #tpu.memory_space<vmem>>, vector<8x128xf32>,
    return
  }
  func.func @transform_0(%arg0: i32) -> (i32, i32) {
    %c0_i32 = arith.constant 0 : i32
    %c0_i32_0 = arith.constant 0 : i32
    %c0_i32_1 = arith.constant 0 : i32
    return %c0_i32, %c0_i32_0 : i32, i32
  }
  func.func @transform_1(%arg0: i32) -> (i32, i32) {
    %c0_i32 = arith.constant 0 : i32
    %c0_i32_0 = arith.constant 0 : i32
    %c0_i32_1 = arith.constant 0 : i32
    return %c0_i32, %c0_i32_0 : i32, i32
  }
  func.func @transform_2(%arg0: i32) -> (i32, i32) {
    %c0_i32 = arith.constant 0 : i32
    %c0_i32_0 = arith.constant 0 : i32
    %c0_i32_1 = arith.constant 0 : i32
    return %c0_i32, %c0_i32_0 : i32, i32
  }
}

</mosaic_0001>

<llo_original>
// kernel: tpu_custom_call.1
$region0: #{tpu_custom_call.1}
  #allocation0 [shape = 'u32[]', space=smem, size = 0x4, offset = 0x4, fixed_abs, tag = 'smem constant byte address 0x4 - core index']
  #allocation1 [shape = 'u32[144,128]{1,0:T(1,128)}', space=vmem, size = 0x12000, scoped, tag = 'internal scratch']
  %s0 = inlined_call_operand.vmem [shape: s32[1024,2], index: 0, kind: input, shape index: {}]
  %s1 = inlined_call_operand.vmem [shape: f32[512,128], index: 1, kind: input, shape index: {}]
  %s2 = inlined_call_operand.hbm [shape: f32[8,128], index: 2, kind: output, shape index: {}]
  %s3 = sld [smem:[#allocation0]]
  $region18: #{tpu_custom_call.1} parent=0
    _
  %s5 = ssub.s32 1, %s3
  %s6 = scalar_select 0, %s5, %s3
  $region1: #{tpu_custom_call.1} parent=0
    #allocation2 [shape = 'u8[4096]{0}', space=vmem, size = 0x1000, scoped, tag = 'output window, operand 0, single buffered']
    #allocation3 [shape = 's32[1]{0}', space=sflag, size = 0x4, scoped, tag = 'scoped memory for tpu_custom_call.1']
    %7 = vsyncpa [#allocation3], 0
    // Predicated region
    $region2: #{tpu_custom_call.1} parent=1 // pred_check
      _
    $region3: #{tpu_custom_call.1} parent=1 // pred_check_branch
      %9 = sbr.rel (0) target = $region5
    $region4: #{tpu_custom_call.1} parent=1 // pred_region
      _
    $region5: #{tpu_custom_call.1} parent=1 // pred_fallthru
      _
    // Predicated region
    $region6: #{tpu_custom_call.1} parent=1 // pred_check
      _
    $region7: #{tpu_custom_call.1} parent=1 // pred_check_branch
      %11 = sbr.rel (0) target = $region9
    $region8: #{tpu_custom_call.1} parent=1 // pred_region
      _
    $region9: #{tpu_custom_call.1} parent=1 // pred_fallthru
      _
    %v12 = vld [vmem:[%s1] sm:$0xff]
    %v13 = vld [vmem:[%s1 + $0x8] sm:$0xff]
    %v14 = vld [vmem:[%s1 + $0x10] sm:$0xff]
    %v15 = vld [vmem:[%s1 + $0x18] sm:$0xff]
    %v16 = vld [vmem:[%s1 + $0x20] sm:$0xff]
    %v17 = vld [vmem:[%s1 + $0x28] sm:$0xff]
    %v18 = vld [vmem:[%s1 + $0x30] sm:$0xff]
    %v19 = vld [vmem:[%s1 + $0x38] sm:$0xff]
    %v20 = vld [vmem:[%s1 + $0x40] sm:$0xff]
    %v21 = vld [vmem:[%s1 + $0x48] sm:$0xff]
    %v22 = vld [vmem:[%s1 + $0x50] sm:$0xff]
    %v23 = vld [vmem:[%s1 + $0x58] sm:$0xff]
    %v24 = vld [vmem:[%s1 + $0x60] sm:$0xff]
    %v25 = vld [vmem:[%s1 + $0x68] sm:$0xff]
    %v26 = vld [vmem:[%s1 + $0x70] sm:$0xff]
    %v27 = vld [vmem:[%s1 + $0x78] sm:$0xff]
    %v28 = vld [vmem:[%s1 + $0x80] sm:$0xff]
    %v29 = vld [vmem:[%s1 + $0x88] sm:$0xff]
    %v30 = vld [vmem:[%s1 + $0x90] sm:$0xff]
    %v31 = vld [vmem:[%s1 + $0x98] sm:$0xff]
    %v32 = vld [vmem:[%s1 + $0xa0] sm:$0x1]
    %v33 = vld [vmem:[%s1 + $0xa8] sm:$0xff]
    %v34 = vld [vmem:[%s1 + $0xb0] sm:$0xff]
    %v35 = vld [vmem:[%s1 + $0xb8] sm:$0xff]
    %v36 = vld [vmem:[%s1 + $0xc0] sm:$0xff]
    %v37 = vld [vmem:[%s1 + $0xc8] sm:$0xff]
    %v38 = vld [vmem:[%s1 + $0xd0] sm:$0xff]
    %v39 = vld [vmem:[%s1 + $0xd8] sm:$0xff]
    %v40 = vld [vmem:[%s1 + $0xe0] sm:$0xff]
    %v41 = vld [vmem:[%s1 + $0xe8] sm:$0x1]
    %vm42 = vcmask 261120
    %v43 = vsel %vm42, %v12, 0.0
    %44 = vadd.xlane.f32.xlu0 %v43
    %v45 = vpop.xlane.xlu0 %44
    %v46 = vsel %vm42, %v13, 0.0
    %47 = vadd.xlane.f32.xlu0 %v46
    %v48 = vpop.xlane.xlu0 %47
    %v49 = vsel %vm42, %v14, 0.0
    %50 = vadd.xlane.f32.xlu0 %v49
    %v51 = vpop.xlane.xlu0 %50
    %v52 = vsel %vm42, %v15, 0.0
    %53 = vadd.xlane.f32.xlu0 %v52
    %v54 = vpop.xlane.xlu0 %53
    %v55 = vsel %vm42, %v16, 0.0
    %56 = vadd.xlane.f32.xlu0 %v55
    %v57 = vpop.xlane.xlu0 %56
    %v58 = vsel %vm42, %v17, 0.0
    %59 = vadd.xlane.f32.xlu0 %v58
    %v60 = vpop.xlane.xlu0 %59
    %v61 = vsel %vm42, %v18, 0.0
    %62 = vadd.xlane.f32.xlu0 %v61
    %v63 = vpop.xlane.xlu0 %62
    %v64 = vsel %vm42, %v19, 0.0
    %65 = vadd.xlane.f32.xlu0 %v64
    %v66 = vpop.xlane.xlu0 %65
    %v67 = vsel %vm42, %v20, 0.0
    %68 = vadd.xlane.f32.xlu0 %v67
    %v69 = vpop.xlane.xlu0 %68
    %v70 = vsel %vm42, %v21, 0.0
    %71 = vadd.xlane.f32.xlu0 %v70
    %v72 = vpop.xlane.xlu0 %71
    %v73 = vsel %vm42, %v22, 0.0
    %74 = vadd.xlane.f32.xlu0 %v73
    %v75 = vpop.xlane.xlu0 %74
    %v76 = vsel %vm42, %v23, 0.0
    %77 = vadd.xlane.f32.xlu0 %v76
    %v78 = vpop.xlane.xlu0 %77
    %v79 = vsel %vm42, %v24, 0.0
    %80 = vadd.xlane.f32.xlu0 %v79
    %v81 = vpop.xlane.xlu0 %80
    %v82 = vsel %vm42, %v25, 0.0
    %83 = vadd.xlane.f32.xlu0 %v82
    %v84 = vpop.xlane.xlu0 %83
    %v85 = vsel %vm42, %v26, 0.0
    %86 = vadd.xlane.f32.xlu0 %v85
    %v87 = vpop.xlane.xlu0 %86
    %v88 = vsel %vm42, %v27, 0.0
    %89 = vadd.xlane.f32.xlu0 %v88
    %v90 = vpop.xlane.xlu0 %89
    %v91 = vrcp.pop 32.0
    %v92 = vmul.f32 %v45, %v91
    %v93 = vmul.f32 %v48, %v91
    %v94 = vmul.f32 %v51, %v91
    %v95 = vmul.f32 %v54, %v91
    %v96 = vmul.f32 %v57, %v91
    %v97 = vmul.f32 %v60, %v91
    %v98 = vmul.f32 %v63, %v91
    %v99 = vmul.f32 %v66, %v91
    %v100 = vmul.f32 %v69, %v91
    %v101 = vmul.f32 %v72, %v91
    %v102 = vmul.f32 %v75, %v91
    %v103 = vmul.f32 %v78, %v91
    %v104 = vmul.f32 %v81, %v91
    %v105 = vmul.f32 %v84, %v91
    %v106 = vmul.f32 %v87, %v91
    %v107 = vmul.f32 %v90, %v91
    %v108 = vsub.f32 %v12, %v92
    %v109 = vsub.f32 %v13, %v93
    %v110 = vsub.f32 %v14, %v94
    %v111 = vsub.f32 %v15, %v95
    %v112 = vsub.f32 %v16, %v96
    %v113 = vsub.f32 %v17, %v97
    %v114 = vsub.f32 %v18, %v98
    %v115 = vsub.f32 %v19, %v99
    %v116 = vsub.f32 %v20, %v100
    %v117 = vsub.f32 %v21, %v101
    %v118 = vsub.f32 %v22, %v102
    %v119 = vsub.f32 %v23, %v103
    %v120 = vsub.f32 %v24, %v104
    %v121 = vsub.f32 %v25, %v105
    %v122 = vsub.f32 %v26, %v106
    %v123 = vsub.f32 %v27, %v107
    %v124 = vmul.f32 %v108, %v108
    %v125 = vmul.f32 %v109, %v109
    %v126 = vmul.f32 %v110, %v110
    %v127 = vmul.f32 %v111, %v111
    %v128 = vmul.f32 %v112, %v112
    %v129 = vmul.f32 %v113, %v113
    %v130 = vmul.f32 %v114, %v114
    %v131 = vmul.f32 %v115, %v115
    %v132 = vmul.f32 %v116, %v116
    %v133 = vmul.f32 %v117, %v117
    %v134 = vmul.f32 %v118, %v118
    %v135 = vmul.f32 %v119, %v119
    %v136 = vmul.f32 %v120, %v120
    %v137 = vmul.f32 %v121, %v121
    %v138 = vmul.f32 %v122, %v122
    %v139 = vmul.f32 %v123, %v123
    %v140 = vsel %vm42, %v124, 0.0
    %141 = vadd.xlane.f32.xlu0 %v140
    %v142 = vpop.xlane.xlu0 %141
    %v143 = vsel %vm42, %v125, 0.0
    %144 = vadd.xlane.f32.xlu0 %v143
    %v145 = vpop.xlane.xlu0 %144
    %v146 = vsel %vm42, %v126, 0.0
    %147 = vadd.xlane.f32.xlu0 %v146
    %v148 = vpop.xlane.xlu0 %147
    %v149 = vsel %vm42, %v127, 0.0
    %150 = vadd.xlane.f32.xlu0 %v149
    %v151 = vpop.xlane.xlu0 %150
    %v152 = vsel %vm42, %v128, 0.0
    %153 = vadd.xlane.f32.xlu0 %v152
    %v154 = vpop.xlane.xlu0 %153
    %v155 = vsel %vm42, %v129, 0.0
    %156 = vadd.xlane.f32.xlu0 %v155
    %v157 = vpop.xlane.xlu0 %156
    %v158 = vsel %vm42, %v130, 0.0
    %159 = vadd.xlane.f32.xlu0 %v158
    %v160 = vpop.xlane.xlu0 %159
    %v161 = vsel %vm42, %v131, 0.0
    %162 = vadd.xlane.f32.xlu0 %v161
    %v163 = vpop.xlane.xlu0 %162
    %v164 = vsel %vm42, %v132, 0.0
    %165 = vadd.xlane.f32.xlu0 %v164
    %v166 = vpop.xlane.xlu0 %165
    %v167 = vsel %vm42, %v133, 0.0
    %168 = vadd.xlane.f32.xlu0 %v167
    %v169 = vpop.xlane.xlu0 %168
    %v170 = vsel %vm42, %v134, 0.0
    %171 = vadd.xlane.f32.xlu0 %v170
    %v172 = vpop.xlane.xlu0 %171
    %v173 = vsel %vm42, %v135, 0.0
    %174 = vadd.xlane.f32.xlu0 %v173
    %v175 = vpop.xlane.xlu0 %174
    %v176 = vsel %vm42, %v136, 0.0
    %177 = vadd.xlane.f32.xlu0 %v176
    %v178 = vpop.xlane.xlu0 %177
    %v179 = vsel %vm42, %v137, 0.0
    %180 = vadd.xlane.f32.xlu0 %v179
    %v181 = vpop.xlane.xlu0 %180
    %v182 = vsel %vm42, %v138, 0.0
    %183 = vadd.xlane.f32.xlu0 %v182
    %v184 = vpop.xlane.xlu0 %183
    %v185 = vsel %vm42, %v139, 0.0
    %186 = vadd.xlane.f32.xlu0 %v185
    %v187 = vpop.xlane.xlu0 %186
    %v188 = vmul.f32 %v142, %v91
    %v189 = vmul.f32 %v145, %v91
    %v190 = vmul.f32 %v148, %v91
    %v191 = vmul.f32 %v151, %v91
    %v192 = vmul.f32 %v154, %v91
    %v193 = vmul.f32 %v157, %v91
    %v194 = vmul.f32 %v160, %v91
    %v195 = vmul.f32 %v163, %v91
    %v196 = vmul.f32 %v166, %v91
    %v197 = vmul.f32 %v169, %v91
    %v198 = vmul.f32 %v172, %v91
    %v199 = vmul.f32 %v175, %v91
    %v200 = vmul.f32 %v178, %v91
    %v201 = vmul.f32 %v181, %v91
    %v202 = vmul.f32 %v184, %v91
    %v203 = vmul.f32 %v187, %v91
    %v204 = vadd.f32 %v188, 1e-05
    %v205 = vadd.f32 %v189, 1e-05
    %v206 = vadd.f32 %v190, 1e-05
    %v207 = vadd.f32 %v191, 1e-05
    %v208 = vadd.f32 %v192, 1e-05
    %v209 = vadd.f32 %v193, 1e-05
    %v210 = vadd.f32 %v194, 1e-05
    %v211 = vadd.f32 %v195, 1e-05
    %v212 = vadd.f32 %v196, 1e-05
    %v213 = vadd.f32 %v197, 1e-05
    %v214 = vadd.f32 %v198, 1e-05
    %v215 = vadd.f32 %v199, 1e-05
    %v216 = vadd.f32 %v200, 1e-05
    %v217 = vadd.f32 %v201, 1e-05
    %v218 = vadd.f32 %v202, 1e-05
    %v219 = vadd.f32 %v203, 1e-05
    %v220 = vrsqrt.pop %v204
    %v221 = vrsqrt.pop %v205
    %v222 = vrsqrt.pop %v206
    %v223 = vrsqrt.pop %v207
    %v224 = vrsqrt.pop %v208
    %v225 = vrsqrt.pop %v209
    %v226 = vrsqrt.pop %v210
    %v227 = vrsqrt.pop %v211
    %v228 = vrsqrt.pop %v212
    %v229 = vrsqrt.pop %v213
    %v230 = vrsqrt.pop %v214
    %v231 = vrsqrt.pop %v215
    %v232 = vrsqrt.pop %v216
    %v233 = vrsqrt.pop %v217
    %v234 = vrsqrt.pop %v218
    %v235 = vrsqrt.pop %v219
    %v236 = vmul.f32 %v108, %v220
    %v237 = vmul.f32 %v109, %v221
    %v238 = vmul.f32 %v110, %v222
    %v239 = vmul.f32 %v111, %v223
    %v240 = vmul.f32 %v112, %v224
    %v241 = vmul.f32 %v113, %v225
    %v242 = vmul.f32 %v114, %v226
    %v243 = vmul.f32 %v115, %v227
    %v244 = vmul.f32 %v116, %v228
    %v245 = vmul.f32 %v117, %v229
    %v246 = vmul.f32 %v118, %v230
    %v247 = vmul.f32 %v119, %v231
    %v248 = vmul.f32 %v120, %v232
    %v249 = vmul.f32 %v121, %v233
    %v250 = vmul.f32 %v122, %v234
    %v251 = vmul.f32 %v123, %v235
    %v252 = vlaneseq
    %v253 = vshrl.u32 %v252, 7
    %v254 = vsub.s32 0, %v253
    %v255 = vrot.slane %v32, %v254
    %v257 = vsel %vm42, %v236, 0
    %v260 = vsel %vm42, %v237, 0
    %v263 = vsel %vm42, %v238, 0
    %v266 = vsel %vm42, %v239, 0
    %v269 = vsel %vm42, %v240, 0
    %v272 = vsel %vm42, %v241, 0
    %v275 = vsel %vm42, %v242, 0
    %v278 = vsel %vm42, %v243, 0
    %v281 = vsel %vm42, %v244, 0
    %v284 = vsel %vm42, %v245, 0
    %v287 = vsel %vm42, %v246, 0
    %v290 = vsel %vm42, %v247, 0
    %v293 = vsel %vm42, %v248, 0
    %v296 = vsel %vm42, %v249, 0
    %v299 = vsel %vm42, %v250, 0
    %v302 = vsel %vm42, %v251, 0
    %304 = vmatprep.subr.mxu0 0.0
    %305 = vmatpush1.msra.mxu0 %v28
    %306 = vmatprep.subr.mxu0 0.0
    %307 = vmatpush1.msra.mxu0 %v29
    %308 = vmatprep.subr.mxu0 0.0
    %309 = vmatpush1.msra.mxu0 %v30
    %310 = vmatprep.subr.mxu0 0.0
    %311 = vmatpush1.msra.mxu0 %v31
    %312 = vmatprep.subr.mxu0 0.0
    %313 = vmatpush1.msra.mxu0 0.0
    %314 = vmatprep.subr.mxu0 0.0
    %315 = vmatpush1.msra.mxu0 0.0
    %316 = vmatprep.subr.mxu0 0.0
    %317 = vmatpush1.msra.mxu0 0.0
    %318 = vmatprep.subr.mxu0 0.0
    %319 = vmatpush1.msra.mxu0 0.0
    %320 = vmatprep.subr.mxu0 0.0
    %321 = vmatpush1.msra.mxu0 0.0
    %322 = vmatprep.subr.mxu0 0.0
    %323 = vmatpush1.msra.mxu0 0.0
    %324 = vmatprep.subr.mxu0 0.0
    %325 = vmatpush1.msra.mxu0 0.0
    %326 = vmatprep.subr.mxu0 0.0
    %327 = vmatpush1.msra.mxu0 0.0
    %328 = vmatprep.subr.mxu0 0.0
    %329 = vmatpush1.msra.mxu0 0.0
    %330 = vmatprep.subr.mxu0 0.0
    %331 = vmatpush1.msra.mxu0 0.0
    %332 = vmatprep.subr.mxu0 0.0
    %333 = vmatpush1.msra.mxu0 0.0
    %334 = vmatprep.subr.mxu0 0.0
    %335 = vmatpush1.msra.mxu0 0.0
    %336 = vmatprep.subr.mxu0 0.0
    %337 = vmatpush1.msra.mxu0 0.0
    %338 = vmatprep.subr.mxu0 0.0
    %339 = vmatpush1.msra.mxu0 0.0
    %340 = vmatprep.subr.mxu0 0.0
    %341 = vmatpush1.msra.mxu0 0.0
    %342 = vmatprep.subr.mxu0 0.0
    %343 = vmatpush1.msra.mxu0 0.0
    %344 = vmatprep.subr.mxu0 0.0
    %345 = vmatpush1.msra.mxu0 0.0
    %346 = vmatprep.subr.mxu0 0.0
    %347 = vmatpush1.msra.mxu0 0.0
    %348 = vmatprep.subr.mxu0 0.0
    %349 = vmatpush1.msra.mxu0 0.0
    %350 = vmatprep.subr.mxu0 0.0
    %351 = vmatpush1.msra.mxu0 0.0
    %352 = vmatprep.subr.mxu0 0.0
    %353 = vmatpush1.msra.mxu0 0.0
    %354 = vmatprep.subr.mxu0 0.0
    %355 = vmatpush1.msra.mxu0 0.0
    %356 = vmatprep.subr.mxu0 0.0
    %357 = vmatpush1.msra.mxu0 0.0
    %358 = vmatprep.subr.mxu0 0.0
    %359 = vmatpush1.msra.mxu0 0.0
    %360 = vmatprep.subr.mxu0 0.0
    %361 = vmatpush1.msra.mxu0 0.0
    %362 = vmatprep.subr.mxu0 0.0
    %363 = vmatpush1.msra.mxu0 0.0
    %364 = vmatprep.subr.mxu0 0.0
    %365 = vmatpush1.msra.mxu0 0.0
    %366 = vmatprep.subr.mxu0 0.0
    %367 = vmatpush1.msra.mxu0 0.0
    %368 = vmatprep.mubr.f32.mxu0 0.0
    %369 = vmatmul.mubr.f32.gmra.mrb[0].mxu0 %v257
    %v370 = vpop.f32.mrb[0].mxu0
    %v371 = vadd.f32 %v255, %v370
    %v372 = vpop.f32.mrb[0].mxu0
    %373 = vmatprep.mubr.f32.mxu0 0.0
    %374 = vmatmul.mubr.f32.gmra.mrb[0].mxu0 %v260
    %v375 = vpop.f32.mrb[0].mxu0
    %v376 = vadd.f32 %v255, %v375
    %v377 = vpop.f32.mrb[0].mxu0
    %378 = vmatprep.mubr.f32.mxu0 0.0
    %379 = vmatmul.mubr.f32.gmra.mrb[0].mxu0 %v263
    %v380 = vpop.f32.mrb[0].mxu0
    %v381 = vadd.f32 %v255, %v380
    %v382 = vpop.f32.mrb[0].mxu0
    %383 = vmatprep.mubr.f32.mxu0 0.0
    %384 = vmatmul.mubr.f32.gmra.mrb[0].mxu0 %v266
    %v385 = vpop.f32.mrb[0].mxu0
    %v386 = vadd.f32 %v255, %v385
    %v387 = vpop.f32.mrb[0].mxu0
    %388 = vmatprep.mubr.f32.mxu0 0.0
    %389 = vmatmul.mubr.f32.gmra.mrb[0].mxu0 %v269
    %v390 = vpop.f32.mrb[0].mxu0
    %v391 = vadd.f32 %v255, %v390
    %v392 = vpop.f32.mrb[0].mxu0
    %393 = vmatprep.mubr.f32.mxu0 0.0
    %394 = vmatmul.mubr.f32.gmra.mrb[0].mxu0 %v272
    %v395 = vpop.f32.mrb[0].mxu0
    %v396 = vadd.f32 %v255, %v395
    %v397 = vpop.f32.mrb[0].mxu0
    %398 = vmatprep.mubr.f32.mxu0 0.0
    %399 = vmatmul.mubr.f32.gmra.mrb[0].mxu0 %v275
    %v400 = vpop.f32.mrb[0].mxu0
    %v401 = vadd.f32 %v255, %v400
    %v402 = vpop.f32.mrb[0].mxu0
    %403 = vmatprep.mubr.f32.mxu0 0.0
    %404 = vmatmul.mubr.f32.gmra.mrb[0].mxu0 %v278
    %v405 = vpop.f32.mrb[0].mxu0
    %v406 = vadd.f32 %v255, %v405
    %v407 = vpop.f32.mrb[0].mxu0
    %408 = vmatprep.mubr.f32.mxu0 0.0
    %409 = vmatmul.mubr.f32.gmra.mrb[0].mxu0 %v281
    %v410 = vpop.f32.mrb[0].mxu0
    %v411 = vadd.f32 %v255, %v410
    %v412 = vpop.f32.mrb[0].mxu0
    %413 = vmatprep.mubr.f32.mxu0 0.0
    %414 = vmatmul.mubr.f32.gmra.mrb[0].mxu0 %v284
    %v415 = vpop.f32.mrb[0].mxu0
    %v416 = vadd.f32 %v255, %v415
    %v417 = vpop.f32.mrb[0].mxu0
    %418 = vmatprep.mubr.f32.mxu0 0.0
    %419 = vmatmul.mubr.f32.gmra.mrb[0].mxu0 %v287
    %v420 = vpop.f32.mrb[0].mxu0
    %v421 = vadd.f32 %v255, %v420
    %v422 = vpop.f32.mrb[0].mxu0
    %423 = vmatprep.mubr.f32.mxu0 0.0
    %424 = vmatmul.mubr.f32.gmra.mrb[0].mxu0 %v290
    %v425 = vpop.f32.mrb[0].mxu0
    %v426 = vadd.f32 %v255, %v425
    %v427 = vpop.f32.mrb[0].mxu0
    %428 = vmatprep.mubr.f32.mxu0 0.0
    %429 = vmatmul.mubr.f32.gmra.mrb[0].mxu0 %v293
    %v430 = vpop.f32.mrb[0].mxu0
    %v431 = vadd.f32 %v255, %v430
    %v432 = vpop.f32.mrb[0].mxu0
    %433 = vmatprep.mubr.f32.mxu0 0.0
    %434 = vmatmul.mubr.f32.gmra.mrb[0].mxu0 %v296
    %v435 = vpop.f32.mrb[0].mxu0
    %v436 = vadd.f32 %v255, %v435
    %v437 = vpop.f32.mrb[0].mxu0
    %438 = vmatprep.mubr.f32.mxu0 0.0
    %439 = vmatmul.mubr.f32.gmra.mrb[0].mxu0 %v299
    %v440 = vpop.f32.mrb[0].mxu0
    %v441 = vadd.f32 %v255, %v440
    %v442 = vpop.f32.mrb[0].mxu0
    %443 = vmatprep.mubr.f32.mxu0 0.0
    %444 = vmatmul.mubr.f32.gmra.mrb[0].mxu0 %v302
    %v445 = vpop.f32.mrb[0].mxu0
    %v446 = vadd.f32 %v255, %v445
    %v447 = vpop.f32.mrb[0].mxu0
    %448 = vdwg.mxu0
    %v449 = vmax.f32 %v371, 0.0
    %v450 = vmax.f32 %v376, 0.0
    %v451 = vmax.f32 %v381, 0.0
    %v452 = vmax.f32 %v386, 0.0
    %v453 = vmax.f32 %v391, 0.0
    %v454 = vmax.f32 %v396, 0.0
    %v455 = vmax.f32 %v401, 0.0
    %v456 = vmax.f32 %v406, 0.0
    %v457 = vmax.f32 %v411, 0.0
    %v458 = vmax.f32 %v416, 0.0
    %v459 = vmax.f32 %v421, 0.0
    %v460 = vmax.f32 %v426, 0.0
    %v461 = vmax.f32 %v431, 0.0
    %v462 = vmax.f32 %v436, 0.0
    %v463 = vmax.f32 %v441, 0.0
    %v464 = vmax.f32 %v446, 0.0
    %v465 = vlaneseq
    %v466 = vshrl.u32 %v465, 7
    %v467 = vsub.s32 0, %v466
    %v468 = vrot.slane %v41, %v467
    %vm469 = vcmask 523264
    %v471 = vsel %vm469, %v449, 0
    %v474 = vsel %vm469, %v450, 0
    %v477 = vsel %vm469, %v451, 0
    %v480 = vsel %vm469, %v452, 0
    %v483 = vsel %vm469, %v453, 0
    %v486 = vsel %vm469, %v454, 0
    %v489 = vsel %vm469, %v455, 0
    %v492 = vsel %vm469, %v456, 0
    %v495 = vsel %vm469, %v457, 0
    %v498 = vsel %vm469, %v458, 0
    %v501 = vsel %vm469, %v459, 0
    %v504 = vsel %vm469, %v460, 0
    %v507 = vsel %vm469, %v461, 0
    %v510 = vsel %vm469, %v462, 0
    %v513 = vsel %vm469, %v463, 0
    %v516 = vsel %vm469, %v464, 0
    %518 = vmatprep.subr.mxu0 0.0
    %519 = vmatpush1.msra.mxu0 %v33
    %520 = vmatprep.subr.mxu0 0.0
    %521 = vmatpush1.msra.mxu0 %v34
    %522 = vmatprep.subr.mxu0 0.0
    %523 = vmatpush1.msra.mxu0 %v35
    %524 = vmatprep.subr.mxu0 0.0
    %525 = vmatpush1.msra.mxu0 %v36
    %526 = vmatprep.subr.mxu0 0.0
    %527 = vmatpush1.msra.mxu0 %v37
    %528 = vmatprep.subr.mxu0 0.0
    %529 = vmatpush1.msra.mxu0 %v38
    %530 = vmatprep.subr.mxu0 0.0
    %531 = vmatpush1.msra.mxu0 %v39
    %532 = vmatprep.subr.mxu0 0.0
    %533 = vmatpush1.msra.mxu0 %v40
    %534 = vmatprep.subr.mxu0 0.0
    %535 = vmatpush1.msra.mxu0 0.0
    %536 = vmatprep.subr.mxu0 0.0
    %537 = vmatpush1.msra.mxu0 0.0
    %538 = vmatprep.subr.mxu0 0.0
    %539 = vmatpush1.msra.mxu0 0.0
    %540 = vmatprep.subr.mxu0 0.0
    %541 = vmatpush1.msra.mxu0 0.0
    %542 = vmatprep.subr.mxu0 0.0
    %543 = vmatpush1.msra.mxu0 0.0
    %544 = vmatprep.subr.mxu0 0.0
    %545 = vmatpush1.msra.mxu0 0.0
    %546 = vmatprep.subr.mxu0 0.0
    %547 = vmatpush1.msra.mxu0 0.0
    %548 = vmatprep.subr.mxu0 0.0
    %549 = vmatpush1.msra.mxu0 0.0
    %550 = vmatprep.subr.mxu0 0.0
    %551 = vmatpush1.msra.mxu0 0.0
    %552 = vmatprep.subr.mxu0 0.0
    %553 = vmatpush1.msra.mxu0 0.0
    %554 = vmatprep.subr.mxu0 0.0
    %555 = vmatpush1.msra.mxu0 0.0
    %556 = vmatprep.subr.mxu0 0.0
    %557 = vmatpush1.msra.mxu0 0.0
    %558 = vmatprep.subr.mxu0 0.0
    %559 = vmatpush1.msra.mxu0 0.0
    %560 = vmatprep.subr.mxu0 0.0
    %561 = vmatpush1.msra.mxu0 0.0
    %562 = vmatprep.subr.mxu0 0.0
    %563 = vmatpush1.msra.mxu0 0.0
    %564 = vmatprep.subr.mxu0 0.0
    %565 = vmatpush1.msra.mxu0 0.0
    %566 = vmatprep.subr.mxu0 0.0
    %567 = vmatpush1.msra.mxu0 0.0
    %568 = vmatprep.subr.mxu0 0.0
    %569 = vmatpush1.msra.mxu0 0.0
    %570 = vmatprep.subr.mxu0 0.0
    %571 = vmatpush1.msra.mxu0 0.0
    %572 = vmatprep.subr.mxu0 0.0
    %573 = vmatpush1.msra.mxu0 0.0
    %574 = vmatprep.subr.mxu0 0.0
    %575 = vmatpush1.msra.mxu0 0.0
    %576 = vmatprep.subr.mxu0 0.0
    %577 = vmatpush1.msra.mxu0 0.0
    %578 = vmatprep.subr.mxu0 0.0
    %579 = vmatpush1.msra.mxu0 0.0
    %580 = vmatprep.subr.mxu0 0.0
    %581 = vmatpush1.msra.mxu0 0.0
    %582 = vmatprep.mubr.f32.mxu0 0.0
    %583 = vmatmul.mubr.f32.gmra.mrb[0].mxu0 %v471
    %v584 = vpop.f32.mrb[0].mxu0
    %v585 = vadd.f32 %v468, %v584
    %v586 = vpop.f32.mrb[0].mxu0
    %587 = vmatprep.mubr.f32.mxu0 0.0
    %588 = vmatmul.mubr.f32.gmra.mrb[0].mxu0 %v474
    %v589 = vpop.f32.mrb[0].mxu0
    %v590 = vadd.f32 %v468, %v589
    %v591 = vpop.f32.mrb[0].mxu0
    %592 = vmatprep.mubr.f32.mxu0 0.0
    %593 = vmatmul.mubr.f32.gmra.mrb[0].mxu0 %v477
    %v594 = vpop.f32.mrb[0].mxu0
    %v595 = vadd.f32 %v468, %v594
    %v596 = vpop.f32.mrb[0].mxu0
    %597 = vmatprep.mubr.f32.mxu0 0.0
    %598 = vmatmul.mubr.f32.gmra.mrb[0].mxu0 %v480
    %v599 = vpop.f32.mrb[0].mxu0
    %v600 = vadd.f32 %v468, %v599
    %v601 = vpop.f32.mrb[0].mxu0
    %602 = vmatprep.mubr.f32.mxu0 0.0
    %603 = vmatmul.mubr.f32.gmra.mrb[0].mxu0 %v483
    %v604 = vpop.f32.mrb[0].mxu0
    %v605 = vadd.f32 %v468, %v604
    %v606 = vpop.f32.mrb[0].mxu0
    %607 = vmatprep.mubr.f32.mxu0 0.0
    %608 = vmatmul.mubr.f32.gmra.mrb[0].mxu0 %v486
    %v609 = vpop.f32.mrb[0].mxu0
    %v610 = vadd.f32 %v468, %v609
    %v611 = vpop.f32.mrb[0].mxu0
    %612 = vmatprep.mubr.f32.mxu0 0.0
    %613 = vmatmul.mubr.f32.gmra.mrb[0].mxu0 %v489
    %v614 = vpop.f32.mrb[0].mxu0
    %v615 = vadd.f32 %v468, %v614
    %v616 = vpop.f32.mrb[0].mxu0
    %617 = vmatprep.mubr.f32.mxu0 0.0
    %618 = vmatmul.mubr.f32.gmra.mrb[0].mxu0 %v492
    %v619 = vpop.f32.mrb[0].mxu0
    %v620 = vadd.f32 %v468, %v619
    %v621 = vpop.f32.mrb[0].mxu0
    %622 = vmatprep.mubr.f32.mxu0 0.0
    %623 = vmatmul.mubr.f32.gmra.mrb[0].mxu0 %v495
    %v624 = vpop.f32.mrb[0].mxu0
    %v625 = vadd.f32 %v468, %v624
    %v626 = vpop.f32.mrb[0].mxu0
    %627 = vmatprep.mubr.f32.mxu0 0.0
    %628 = vmatmul.mubr.f32.gmra.mrb[0].mxu0 %v498
    %v629 = vpop.f32.mrb[0].mxu0
    %v630 = vadd.f32 %v468, %v629
    %v631 = vpop.f32.mrb[0].mxu0
    %632 = vmatprep.mubr.f32.mxu0 0.0
    %633 = vmatmul.mubr.f32.gmra.mrb[0].mxu0 %v501
    %v634 = vpop.f32.mrb[0].mxu0
    %v635 = vadd.f32 %v468, %v634
    %v636 = vpop.f32.mrb[0].mxu0
    %637 = vmatprep.mubr.f32.mxu0 0.0
    %638 = vmatmul.mubr.f32.gmra.mrb[0].mxu0 %v504
    %v639 = vpop.f32.mrb[0].mxu0
    %v640 = vadd.f32 %v468, %v639
    %v641 = vpop.f32.mrb[0].mxu0
    %642 = vmatprep.mubr.f32.mxu0 0.0
    %643 = vmatmul.mubr.f32.gmra.mrb[0].mxu0 %v507
    %v644 = vpop.f32.mrb[0].mxu0
    %v645 = vadd.f32 %v468, %v644
    %v646 = vpop.f32.mrb[0].mxu0
    %647 = vmatprep.mubr.f32.mxu0 0.0
    %648 = vmatmul.mubr.f32.gmra.mrb[0].mxu0 %v510
    %v649 = vpop.f32.mrb[0].mxu0
    %v650 = vadd.f32 %v468, %v649
    %v651 = vpop.f32.mrb[0].mxu0
    %652 = vmatprep.mubr.f32.mxu0 0.0
    %653 = vmatmul.mubr.f32.gmra.mrb[0].mxu0 %v513
    %v654 = vpop.f32.mrb[0].mxu0
    %v655 = vadd.f32 %v468, %v654
    %v656 = vpop.f32.mrb[0].mxu0
    %657 = vmatprep.mubr.f32.mxu0 0.0
    %658 = vmatmul.mubr.f32.gmra.mrb[0].mxu0 %v516
    %v659 = vpop.f32.mrb[0].mxu0
    %v660 = vadd.f32 %v468, %v659
    %v661 = vpop.f32.mrb[0].mxu0
    %662 = vdwg.mxu0
    %v663 = vld [vmem:[%s0] sm:$0xff]
    %v664 = vld [vmem:[%s0 + $0x8] sm:$0xff]
    %v665 = vld [vmem:[%s0 + $0x10] sm:$0xff]
    %v666 = vld [vmem:[%s0 + $0x18] sm:$0xff]
    %v667 = vld [vmem:[%s0 + $0x20] sm:$0xff]
    %v668 = vld [vmem:[%s0 + $0x28] sm:$0xff]
    %v669 = vld [vmem:[%s0 + $0x30] sm:$0xff]
    %v670 = vld [vmem:[%s0 + $0x38] sm:$0xff]
    %v671 = vld [vmem:[%s0 + $0x40] sm:$0xff]
    %v672 = vld [vmem:[%s0 + $0x48] sm:$0xff]
    %v673 = vld [vmem:[%s0 + $0x50] sm:$0xff]
    %v674 = vld [vmem:[%s0 + $0x58] sm:$0xff]
    %v675 = vld [vmem:[%s0 + $0x60] sm:$0xff]
    %v676 = vld [vmem:[%s0 + $0x68] sm:$0xff]
    %v677 = vld [vmem:[%s0 + $0x70] sm:$0xff]
    %v678 = vld [vmem:[%s0 + $0x78] sm:$0xff]
    %v679 = vld [vmem:[%s0 + $0x80] sm:$0xff]
    %v680 = vld [vmem:[%s0 + $0x88] sm:$0xff]
    %v681 = vld [vmem:[%s0 + $0x90] sm:$0xff]
    %v682 = vld [vmem:[%s0 + $0x98] sm:$0xff]
    %v683 = vld [vmem:[%s0 + $0xa0] sm:$0xff]
    %v684 = vld [vmem:[%s0 + $0xa8] sm:$0xff]
    %v685 = vld [vmem:[%s0 + $0xb0] sm:$0xff]
    %v686 = vld [vmem:[%s0 + $0xb8] sm:$0xff]
    %v687 = vld [vmem:[%s0 + $0xc0] sm:$0xff]
    %v688 = vld [vmem:[%s0 + $0xc8] sm:$0xff]
    %v689 = vld [vmem:[%s0 + $0xd0] sm:$0xff]
    %v690 = vld [vmem:[%s0 + $0xd8] sm:$0xff]
    %v691 = vld [vmem:[%s0 + $0xe0] sm:$0xff]
    %v692 = vld [vmem:[%s0 + $0xe8] sm:$0xff]
    %v693 = vld [vmem:[%s0 + $0xf0] sm:$0xff]
    %v694 = vld [vmem:[%s0 + $0xf8] sm:$0xff]
    %v695 = vld [vmem:[%s0 + $0x100] sm:$0xff]
    %v696 = vld [vmem:[%s0 + $0x108] sm:$0xff]
    %v697 = vld [vmem:[%s0 + $0x110] sm:$0xff]
    %v698 = vld [vmem:[%s0 + $0x118] sm:$0xff]
    %v699 = vld [vmem:[%s0 + $0x120] sm:$0xff]
    %v700 = vld [vmem:[%s0 + $0x128] sm:$0xff]
    %v701 = vld [vmem:[%s0 + $0x130] sm:$0xff]
    %v702 = vld [vmem:[%s0 + $0x138] sm:$0xff]
    %v703 = vld [vmem:[%s0 + $0x140] sm:$0xff]
    %v704 = vld [vmem:[%s0 + $0x148] sm:$0xff]
    %v705 = vld [vmem:[%s0 + $0x150] sm:$0xff]
    %v706 = vld [vmem:[%s0 + $0x158] sm:$0xff]
    %v707 = vld [vmem:[%s0 + $0x160] sm:$0xff]
    %v708 = vld [vmem:[%s0 + $0x168] sm:$0xff]
    %v709 = vld [vmem:[%s0 + $0x170] sm:$0xff]
    %v710 = vld [vmem:[%s0 + $0x178] sm:$0xff]
    %v711 = vld [vmem:[%s0 + $0x180] sm:$0xff]
    %v712 = vld [vmem:[%s0 + $0x188] sm:$0xff]
    %v713 = vld [vmem:[%s0 + $0x190] sm:$0xff]
    %v714 = vld [vmem:[%s0 + $0x198] sm:$0xff]
    %v715 = vld [vmem:[%s0 + $0x1a0] sm:$0xff]
    %v716 = vld [vmem:[%s0 + $0x1a8] sm:$0xff]
    %v717 = vld [vmem:[%s0 + $0x1b0] sm:$0xff]
    %v718 = vld [vmem:[%s0 + $0x1b8] sm:$0xff]
    %v719 = vld [vmem:[%s0 + $0x1c0] sm:$0xff]
    %v720 = vld [vmem:[%s0 + $0x1c8] sm:$0xff]
    %v721 = vld [vmem:[%s0 + $0x1d0] sm:$0xff]
    %v722 = vld [vmem:[%s0 + $0x1d8] sm:$0xff]
    %v723 = vld [vmem:[%s0 + $0x1e0] sm:$0xff]
    %v724 = vld [vmem:[%s0 + $0x1e8] sm:$0xff]
    %v725 = vld [vmem:[%s0 + $0x1f0] sm:$0xff]
    %v726 = vld [vmem:[%s0 + $0x1f8] sm:$0xff]
    %v727 = vld [vmem:[%s0 + $0x200] sm:$0xff]
    %v728 = vld [vmem:[%s0 + $0x208] sm:$0xff]
    %v729 = vld [vmem:[%s0 + $0x210] sm:$0xff]
    %v730 = vld [vmem:[%s0 + $0x218] sm:$0xff]
    %v731 = vld [vmem:[%s0 + $0x220] sm:$0xff]
    %v732 = vld [vmem:[%s0 + $0x228] sm:$0xff]
    %v733 = vld [vmem:[%s0 + $0x230] sm:$0xff]
    %v734 = vld [vmem:[%s0 + $0x238] sm:$0xff]
    %v735 = vld [vmem:[%s0 + $0x240] sm:$0xff]
    %v736 = vld [vmem:[%s0 + $0x248] sm:$0xff]
    %v737 = vld [vmem:[%s0 + $0x250] sm:$0xff]
    %v738 = vld [vmem:[%s0 + $0x258] sm:$0xff]
    %v739 = vld [vmem:[%s0 + $0x260] sm:$0xff]
    %v740 = vld [vmem:[%s0 + $0x268] sm:$0xff]
    %v741 = vld [vmem:[%s0 + $0x270] sm:$0xff]
    %v742 = vld [vmem:[%s0 + $0x278] sm:$0xff]
    %v743 = vld [vmem:[%s0 + $0x280] sm:$0xff]
    %v744 = vld [vmem:[%s0 + $0x288] sm:$0xff]
    %v745 = vld [vmem:[%s0 + $0x290] sm:$0xff]
    %v746 = vld [vmem:[%s0 + $0x298] sm:$0xff]
    %v747 = vld [vmem:[%s0 + $0x2a0] sm:$0xff]
    %v748 = vld [vmem:[%s0 + $0x2a8] sm:$0xff]
    %v749 = vld [vmem:[%s0 + $0x2b0] sm:$0xff]
    %v750 = vld [vmem:[%s0 + $0x2b8] sm:$0xff]
    %v751 = vld [vmem:[%s0 + $0x2c0] sm:$0xff]
    %v752 = vld [vmem:[%s0 + $0x2c8] sm:$0xff]
    %v753 = vld [vmem:[%s0 + $0x2d0] sm:$0xff]
    %v754 = vld [vmem:[%s0 + $0x2d8] sm:$0xff]
    %v755 = vld [vmem:[%s0 + $0x2e0] sm:$0xff]
    %v756 = vld [vmem:[%s0 + $0x2e8] sm:$0xff]
    %v757 = vld [vmem:[%s0 + $0x2f0] sm:$0xff]
    %v758 = vld [vmem:[%s0 + $0x2f8] sm:$0xff]
    %v759 = vld [vmem:[%s0 + $0x300] sm:$0xff]
    %v760 = vld [vmem:[%s0 + $0x308] sm:$0xff]
    %v761 = vld [vmem:[%s0 + $0x310] sm:$0xff]
    %v762 = vld [vmem:[%s0 + $0x318] sm:$0xff]
    %v763 = vld [vmem:[%s0 + $0x320] sm:$0xff]
    %v764 = vld [vmem:[%s0 + $0x328] sm:$0xff]
    %v765 = vld [vmem:[%s0 + $0x330] sm:$0xff]
    %v766 = vld [vmem:[%s0 + $0x338] sm:$0xff]
    %v767 = vld [vmem:[%s0 + $0x340] sm:$0xff]
    %v768 = vld [vmem:[%s0 + $0x348] sm:$0xff]
    %v769 = vld [vmem:[%s0 + $0x350] sm:$0xff]
    %v770 = vld [vmem:[%s0 + $0x358] sm:$0xff]
    %v771 = vld [vmem:[%s0 + $0x360] sm:$0xff]
    %v772 = vld [vmem:[%s0 + $0x368] sm:$0xff]
    %v773 = vld [vmem:[%s0 + $0x370] sm:$0xff]
    %v774 = vld [vmem:[%s0 + $0x378] sm:$0xff]
    %v775 = vld [vmem:[%s0 + $0x380] sm:$0xff]
    %v776 = vld [vmem:[%s0 + $0x388] sm:$0xff]
    %v777 = vld [vmem:[%s0 + $0x390] sm:$0xff]
    %v778 = vld [vmem:[%s0 + $0x398] sm:$0xff]
    %v779 = vld [vmem:[%s0 + $0x3a0] sm:$0xff]
    %v780 = vld [vmem:[%s0 + $0x3a8] sm:$0xff]
    %v781 = vld [vmem:[%s0 + $0x3b0] sm:$0xff]
    %v782 = vld [vmem:[%s0 + $0x3b8] sm:$0xff]
    %v783 = vld [vmem:[%s0 + $0x3c0] sm:$0xff]
    %v784 = vld [vmem:[%s0 + $0x3c8] sm:$0xff]
    %v785 = vld [vmem:[%s0 + $0x3d0] sm:$0xff]
    %v786 = vld [vmem:[%s0 + $0x3d8] sm:$0xff]
    %v787 = vld [vmem:[%s0 + $0x3e0] sm:$0xff]
    %v788 = vld [vmem:[%s0 + $0x3e8] sm:$0xff]
    %v789 = vld [vmem:[%s0 + $0x3f0] sm:$0xff]
    %v790 = vld [vmem:[%s0 + $0x3f8] sm:$0xff]
    %v791 = vadd.s32 %v663, 1
    %v792 = vadd.s32 %v664, 1
    %v793 = vadd.s32 %v665, 1
    %v794 = vadd.s32 %v666, 1
    %v795 = vadd.s32 %v667, 1
    %v796 = vadd.s32 %v668, 1
    %v797 = vadd.s32 %v669, 1
    %v798 = vadd.s32 %v670, 1
    %v799 = vadd.s32 %v671, 1
    %v800 = vadd.s32 %v672, 1
    %v801 = vadd.s32 %v673, 1
    %v802 = vadd.s32 %v674, 1
    %v803 = vadd.s32 %v675, 1
    %v804 = vadd.s32 %v676, 1
    %v805 = vadd.s32 %v677, 1
    %v806 = vadd.s32 %v678, 1
    %v807 = vadd.s32 %v679, 1
    %v808 = vadd.s32 %v680, 1
    %v809 = vadd.s32 %v681, 1
    %v810 = vadd.s32 %v682, 1
    %v811 = vadd.s32 %v683, 1
    %v812 = vadd.s32 %v684, 1
    %v813 = vadd.s32 %v685, 1
    %v814 = vadd.s32 %v686, 1
    %v815 = vadd.s32 %v687, 1
    %v816 = vadd.s32 %v688, 1
    %v817 = vadd.s32 %v689, 1
    %v818 = vadd.s32 %v690, 1
    %v819 = vadd.s32 %v691, 1
    %v820 = vadd.s32 %v692, 1
    %v821 = vadd.s32 %v693, 1
    %v822 = vadd.s32 %v694, 1
    %v823 = vadd.s32 %v695, 1
    %v824 = vadd.s32 %v696, 1
    %v825 = vadd.s32 %v697, 1
    %v826 = vadd.s32 %v698, 1
    %v827 = vadd.s32 %v699, 1
    %v828 = vadd.s32 %v700, 1
    %v829 = vadd.s32 %v701, 1
    %v830 = vadd.s32 %v702, 1
    %v831 = vadd.s32 %v703, 1
    %v832 = vadd.s32 %v704, 1
    %v833 = vadd.s32 %v705, 1
    %v834 = vadd.s32 %v706, 1
    %v835 = vadd.s32 %v707, 1
    %v836 = vadd.s32 %v708, 1
    %v837 = vadd.s32 %v709, 1
    %v838 = vadd.s32 %v710, 1
    %v839 = vadd.s32 %v711, 1
    %v840 = vadd.s32 %v712, 1
    %v841 = vadd.s32 %v713, 1
    %v842 = vadd.s32 %v714, 1
    %v843 = vadd.s32 %v715, 1
    %v844 = vadd.s32 %v716, 1
    %v845 = vadd.s32 %v717, 1
    %v846 = vadd.s32 %v718, 1
    %v847 = vadd.s32 %v719, 1
    %v848 = vadd.s32 %v720, 1
    %v849 = vadd.s32 %v721, 1
    %v850 = vadd.s32 %v722, 1
    %v851 = vadd.s32 %v723, 1
    %v852 = vadd.s32 %v724, 1
    %v853 = vadd.s32 %v725, 1
    %v854 = vadd.s32 %v726, 1
    %v855 = vadd.s32 %v727, 1
    %v856 = vadd.s32 %v728, 1
    %v857 = vadd.s32 %v729, 1
    %v858 = vadd.s32 %v730, 1
    %v859 = vadd.s32 %v731, 1
    %v860 = vadd.s32 %v732, 1
    %v861 = vadd.s32 %v733, 1
    %v862 = vadd.s32 %v734, 1
    %v863 = vadd.s32 %v735, 1
    %v864 = vadd.s32 %v736, 1
    %v865 = vadd.s32 %v737, 1
    %v866 = vadd.s32 %v738, 1
    %v867 = vadd.s32 %v739, 1
    %v868 = vadd.s32 %v740, 1
    %v869 = vadd.s32 %v741, 1
    %v870 = vadd.s32 %v742, 1
    %v871 = vadd.s32 %v743, 1
    %v872 = vadd.s32 %v744, 1
    %v873 = vadd.s32 %v745, 1
    %v874 = vadd.s32 %v746, 1
    %v875 = vadd.s32 %v747, 1
    %v876 = vadd.s32 %v748, 1
    %v877 = vadd.s32 %v749, 1
    %v878 = vadd.s32 %v750, 1
    %v879 = vadd.s32 %v751, 1
    %v880 = vadd.s32 %v752, 1
    %v881 = vadd.s32 %v753, 1
    %v882 = vadd.s32 %v754, 1
    %v883 = vadd.s32 %v755, 1
    %v884 = vadd.s32 %v756, 1
    %v885 = vadd.s32 %v757, 1
    %v886 = vadd.s32 %v758, 1
    %v887 = vadd.s32 %v759, 1
    %v888 = vadd.s32 %v760, 1
    %v889 = vadd.s32 %v761, 1
    %v890 = vadd.s32 %v762, 1
    %v891 = vadd.s32 %v763, 1
    %v892 = vadd.s32 %v764, 1
    %v893 = vadd.s32 %v765, 1
    %v894 = vadd.s32 %v766, 1
    %v895 = vadd.s32 %v767, 1
    %v896 = vadd.s32 %v768, 1
    %v897 = vadd.s32 %v769, 1
    %v898 = vadd.s32 %v770, 1
    %v899 = vadd.s32 %v771, 1
    %v900 = vadd.s32 %v772, 1
    %v901 = vadd.s32 %v773, 1
    %v902 = vadd.s32 %v774, 1
    %v903 = vadd.s32 %v775, 1
    %v904 = vadd.s32 %v776, 1
    %v905 = vadd.s32 %v777, 1
    %v906 = vadd.s32 %v778, 1
    %v907 = vadd.s32 %v779, 1
    %v908 = vadd.s32 %v780, 1
    %v909 = vadd.s32 %v781, 1
    %v910 = vadd.s32 %v782, 1
    %v911 = vadd.s32 %v783, 1
    %v912 = vadd.s32 %v784, 1
    %v913 = vadd.s32 %v785, 1
    %v914 = vadd.s32 %v786, 1
    %v915 = vadd.s32 %v787, 1
    %v916 = vadd.s32 %v788, 1
    %v917 = vadd.s32 %v789, 1
    %v918 = vadd.s32 %v790, 1
    %v919 = vmul.u32 %v791, 5
    %v920 = vmul.u32 %v792, 5
    %v921 = vmul.u32 %v793, 5
    %v922 = vmul.u32 %v794, 5
    %v923 = vmul.u32 %v795, 5
    %v924 = vmul.u32 %v796, 5
    %v925 = vmul.u32 %v797, 5
    %v926 = vmul.u32 %v798, 5
    %v927 = vmul.u32 %v799, 5
    %v928 = vmul.u32 %v800, 5
    %v929 = vmul.u32 %v801, 5
    %v930 = vmul.u32 %v802, 5
    %v931 = vmul.u32 %v803, 5
    %v932 = vmul.u32 %v804, 5
    %v933 = vmul.u32 %v805, 5
    %v934 = vmul.u32 %v806, 5
    %v935 = vmul.u32 %v807, 5
    %v936 = vmul.u32 %v808, 5
    %v937 = vmul.u32 %v809, 5
    %v938 = vmul.u32 %v810, 5
    %v939 = vmul.u32 %v811, 5
    %v940 = vmul.u32 %v812, 5
    %v941 = vmul.u32 %v813, 5
    %v942 = vmul.u32 %v814, 5
    %v943 = vmul.u32 %v815, 5
    %v944 = vmul.u32 %v816, 5
    %v945 = vmul.u32 %v817, 5
    %v946 = vmul.u32 %v818, 5
    %v947 = vmul.u32 %v819, 5
    %v948 = vmul.u32 %v820, 5
    %v949 = vmul.u32 %v821, 5
    %v950 = vmul.u32 %v822, 5
    %v951 = vmul.u32 %v823, 5
    %v952 = vmul.u32 %v824, 5
    %v953 = vmul.u32 %v825, 5
    %v954 = vmul.u32 %v826, 5
    %v955 = vmul.u32 %v827, 5
    %v956 = vmul.u32 %v828, 5
    %v957 = vmul.u32 %v829, 5
    %v958 = vmul.u32 %v830, 5
    %v959 = vmul.u32 %v831, 5
    %v960 = vmul.u32 %v832, 5
    %v961 = vmul.u32 %v833, 5
    %v962 = vmul.u32 %v834, 5
    %v963 = vmul.u32 %v835, 5
    %v964 = vmul.u32 %v836, 5
    %v965 = vmul.u32 %v837, 5
    %v966 = vmul.u32 %v838, 5
    %v967 = vmul.u32 %v839, 5
    %v968 = vmul.u32 %v840, 5
    %v969 = vmul.u32 %v841, 5
    %v970 = vmul.u32 %v842, 5
    %v971 = vmul.u32 %v843, 5
    %v972 = vmul.u32 %v844, 5
    %v973 = vmul.u32 %v845, 5
    %v974 = vmul.u32 %v846, 5
    %v975 = vmul.u32 %v847, 5
    %v976 = vmul.u32 %v848, 5
    %v977 = vmul.u32 %v849, 5
    %v978 = vmul.u32 %v850, 5
    %v979 = vmul.u32 %v851, 5
    %v980 = vmul.u32 %v852, 5
    %v981 = vmul.u32 %v853, 5
    %v982 = vmul.u32 %v854, 5
    %v983 = vmul.u32 %v855, 5
    %v984 = vmul.u32 %v856, 5
    %v985 = vmul.u32 %v857, 5
    %v986 = vmul.u32 %v858, 5
    %v987 = vmul.u32 %v859, 5
    %v988 = vmul.u32 %v860, 5
    %v989 = vmul.u32 %v861, 5
    %v990 = vmul.u32 %v862, 5
    %v991 = vmul.u32 %v863, 5
    %v992 = vmul.u32 %v864, 5
    %v993 = vmul.u32 %v865, 5
    %v994 = vmul.u32 %v866, 5
    %v995 = vmul.u32 %v867, 5
    %v996 = vmul.u32 %v868, 5
    %v997 = vmul.u32 %v869, 5
    %v998 = vmul.u32 %v870, 5
    %v999 = vmul.u32 %v871, 5
    %v1000 = vmul.u32 %v872, 5
    %v1001 = vmul.u32 %v873, 5
    %v1002 = vmul.u32 %v874, 5
    %v1003 = vmul.u32 %v875, 5
    %v1004 = vmul.u32 %v876, 5
    %v1005 = vmul.u32 %v877, 5
    %v1006 = vmul.u32 %v878, 5
    %v1007 = vmul.u32 %v879, 5
    %v1008 = vmul.u32 %v880, 5
    %v1009 = vmul.u32 %v881, 5
    %v1010 = vmul.u32 %v882, 5
    %v1011 = vmul.u32 %v883, 5
    %v1012 = vmul.u32 %v884, 5
    %v1013 = vmul.u32 %v885, 5
    %v1014 = vmul.u32 %v886, 5
    %v1015 = vmul.u32 %v887, 5
    %v1016 = vmul.u32 %v888, 5
    %v1017 = vmul.u32 %v889, 5
    %v1018 = vmul.u32 %v890, 5
    %v1019 = vmul.u32 %v891, 5
    %v1020 = vmul.u32 %v892, 5
    %v1021 = vmul.u32 %v893, 5
    %v1022 = vmul.u32 %v894, 5
    %v1023 = vmul.u32 %v895, 5
    %v1024 = vmul.u32 %v896, 5
    %v1025 = vmul.u32 %v897, 5
    %v1026 = vmul.u32 %v898, 5
    %v1027 = vmul.u32 %v899, 5
    %v1028 = vmul.u32 %v900, 5
    %v1029 = vmul.u32 %v901, 5
    %v1030 = vmul.u32 %v902, 5
    %v1031 = vmul.u32 %v903, 5
    %v1032 = vmul.u32 %v904, 5
    %v1033 = vmul.u32 %v905, 5
    %v1034 = vmul.u32 %v906, 5
    %v1035 = vmul.u32 %v907, 5
    %v1036 = vmul.u32 %v908, 5
    %v1037 = vmul.u32 %v909, 5
    %v1038 = vmul.u32 %v910, 5
    %v1039 = vmul.u32 %v911, 5
    %v1040 = vmul.u32 %v912, 5
    %v1041 = vmul.u32 %v913, 5
    %v1042 = vmul.u32 %v914, 5
    %v1043 = vmul.u32 %v915, 5
    %v1044 = vmul.u32 %v916, 5
    %v1045 = vmul.u32 %v917, 5
    %v1046 = vmul.u32 %v918, 5
    %1047 = vrot.lane.b32.xlu0 %v791, 127
    %v1048 = vpop.permute.xlu0 %1047
    %1049 = vrot.lane.b32.xlu0 %v792, 127
    %v1050 = vpop.permute.xlu0 %1049
    %1051 = vrot.lane.b32.xlu0 %v793, 127
    %v1052 = vpop.permute.xlu0 %1051
    %1053 = vrot.lane.b32.xlu0 %v794, 127
    %v1054 = vpop.permute.xlu0 %1053
    %1055 = vrot.lane.b32.xlu0 %v795, 127
    %v1056 = vpop.permute.xlu0 %1055
    %1057 = vrot.lane.b32.xlu0 %v796, 127
    %v1058 = vpop.permute.xlu0 %1057
    %1059 = vrot.lane.b32.xlu0 %v797, 127
    %v1060 = vpop.permute.xlu0 %1059
    %1061 = vrot.lane.b32.xlu0 %v798, 127
    %v1062 = vpop.permute.xlu0 %1061
    %1063 = vrot.lane.b32.xlu0 %v799, 127
    %v1064 = vpop.permute.xlu0 %1063
    %1065 = vrot.lane.b32.xlu0 %v800, 127
    %v1066 = vpop.permute.xlu0 %1065
    %1067 = vrot.lane.b32.xlu0 %v801, 127
    %v1068 = vpop.permute.xlu0 %1067
    %1069 = vrot.lane.b32.xlu0 %v802, 127
    %v1070 = vpop.permute.xlu0 %1069
    %1071 = vrot.lane.b32.xlu0 %v803, 127
    %v1072 = vpop.permute.xlu0 %1071
    %1073 = vrot.lane.b32.xlu0 %v804, 127
    %v1074 = vpop.permute.xlu0 %1073
    %1075 = vrot.lane.b32.xlu0 %v805, 127
    %v1076 = vpop.permute.xlu0 %1075
    %1077 = vrot.lane.b32.xlu0 %v806, 127
    %v1078 = vpop.permute.xlu0 %1077
    %1079 = vrot.lane.b32.xlu0 %v807, 127
    %v1080 = vpop.permute.xlu0 %1079
    %1081 = vrot.lane.b32.xlu0 %v808, 127
    %v1082 = vpop.permute.xlu0 %1081
    %1083 = vrot.lane.b32.xlu0 %v809, 127
    %v1084 = vpop.permute.xlu0 %1083
    %1085 = vrot.lane.b32.xlu0 %v810, 127
    %v1086 = vpop.permute.xlu0 %1085
    %1087 = vrot.lane.b32.xlu0 %v811, 127
    %v1088 = vpop.permute.xlu0 %1087
    %1089 = vrot.lane.b32.xlu0 %v812, 127
    %v1090 = vpop.permute.xlu0 %1089
    %1091 = vrot.lane.b32.xlu0 %v813, 127
    %v1092 = vpop.permute.xlu0 %1091
    %1093 = vrot.lane.b32.xlu0 %v814, 127
    %v1094 = vpop.permute.xlu0 %1093
    %1095 = vrot.lane.b32.xlu0 %v815, 127
    %v1096 = vpop.permute.xlu0 %1095
    %1097 = vrot.lane.b32.xlu0 %v816, 127
    %v1098 = vpop.permute.xlu0 %1097
    %1099 = vrot.lane.b32.xlu0 %v817, 127
    %v1100 = vpop.permute.xlu0 %1099
    %1101 = vrot.lane.b32.xlu0 %v818, 127
    %v1102 = vpop.permute.xlu0 %1101
    %1103 = vrot.lane.b32.xlu0 %v819, 127
    %v1104 = vpop.permute.xlu0 %1103
    %1105 = vrot.lane.b32.xlu0 %v820, 127
    %v1106 = vpop.permute.xlu0 %1105
    %1107 = vrot.lane.b32.xlu0 %v821, 127
    %v1108 = vpop.permute.xlu0 %1107
    %1109 = vrot.lane.b32.xlu0 %v822, 127
    %v1110 = vpop.permute.xlu0 %1109
    %1111 = vrot.lane.b32.xlu0 %v823, 127
    %v1112 = vpop.permute.xlu0 %1111
    %1113 = vrot.lane.b32.xlu0 %v824, 127
    %v1114 = vpop.permute.xlu0 %1113
    %1115 = vrot.lane.b32.xlu0 %v825, 127
    %v1116 = vpop.permute.xlu0 %1115
    %1117 = vrot.lane.b32.xlu0 %v826, 127
    %v1118 = vpop.permute.xlu0 %1117
    %1119 = vrot.lane.b32.xlu0 %v827, 127
    %v1120 = vpop.permute.xlu0 %1119
    %1121 = vrot.lane.b32.xlu0 %v828, 127
    %v1122 = vpop.permute.xlu0 %1121
    %1123 = vrot.lane.b32.xlu0 %v829, 127
    %v1124 = vpop.permute.xlu0 %1123
    %1125 = vrot.lane.b32.xlu0 %v830, 127
    %v1126 = vpop.permute.xlu0 %1125
    %1127 = vrot.lane.b32.xlu0 %v831, 127
    %v1128 = vpop.permute.xlu0 %1127
    %1129 = vrot.lane.b32.xlu0 %v832, 127
    %v1130 = vpop.permute.xlu0 %1129
    %1131 = vrot.lane.b32.xlu0 %v833, 127
    %v1132 = vpop.permute.xlu0 %1131
    %1133 = vrot.lane.b32.xlu0 %v834, 127
    %v1134 = vpop.permute.xlu0 %1133
    %1135 = vrot.lane.b32.xlu0 %v835, 127
    %v1136 = vpop.permute.xlu0 %1135
    %1137 = vrot.lane.b32.xlu0 %v836, 127
    %v1138 = vpop.permute.xlu0 %1137
    %1139 = vrot.lane.b32.xlu0 %v837, 127
    %v1140 = vpop.permute.xlu0 %1139
    %1141 = vrot.lane.b32.xlu0 %v838, 127
    %v1142 = vpop.permute.xlu0 %1141
    %1143 = vrot.lane.b32.xlu0 %v839, 127
    %v1144 = vpop.permute.xlu0 %1143
    %1145 = vrot.lane.b32.xlu0 %v840, 127
    %v1146 = vpop.permute.xlu0 %1145
    %1147 = vrot.lane.b32.xlu0 %v841, 127
    %v1148 = vpop.permute.xlu0 %1147
    %1149 = vrot.lane.b32.xlu0 %v842, 127
    %v1150 = vpop.permute.xlu0 %1149
    %1151 = vrot.lane.b32.xlu0 %v843, 127
    %v1152 = vpop.permute.xlu0 %1151
    %1153 = vrot.lane.b32.xlu0 %v844, 127
    %v1154 = vpop.permute.xlu0 %1153
    %1155 = vrot.lane.b32.xlu0 %v845, 127
    %v1156 = vpop.permute.xlu0 %1155
    %1157 = vrot.lane.b32.xlu0 %v846, 127
    %v1158 = vpop.permute.xlu0 %1157
    %1159 = vrot.lane.b32.xlu0 %v847, 127
    %v1160 = vpop.permute.xlu0 %1159
    %1161 = vrot.lane.b32.xlu0 %v848, 127
    %v1162 = vpop.permute.xlu0 %1161
    %1163 = vrot.lane.b32.xlu0 %v849, 127
    %v1164 = vpop.permute.xlu0 %1163
    %1165 = vrot.lane.b32.xlu0 %v850, 127
    %v1166 = vpop.permute.xlu0 %1165
    %1167 = vrot.lane.b32.xlu0 %v851, 127
    %v1168 = vpop.permute.xlu0 %1167
    %1169 = vrot.lane.b32.xlu0 %v852, 127
    %v1170 = vpop.permute.xlu0 %1169
    %1171 = vrot.lane.b32.xlu0 %v853, 127
    %v1172 = vpop.permute.xlu0 %1171
    %1173 = vrot.lane.b32.xlu0 %v854, 127
    %v1174 = vpop.permute.xlu0 %1173
    %1175 = vrot.lane.b32.xlu0 %v855, 127
    %v1176 = vpop.permute.xlu0 %1175
    %1177 = vrot.lane.b32.xlu0 %v856, 127
    %v1178 = vpop.permute.xlu0 %1177
    %1179 = vrot.lane.b32.xlu0 %v857, 127
    %v1180 = vpop.permute.xlu0 %1179
    %1181 = vrot.lane.b32.xlu0 %v858, 127
    %v1182 = vpop.permute.xlu0 %1181
    %1183 = vrot.lane.b32.xlu0 %v859, 127
    %v1184 = vpop.permute.xlu0 %1183
    %1185 = vrot.lane.b32.xlu0 %v860, 127
    %v1186 = vpop.permute.xlu0 %1185
    %1187 = vrot.lane.b32.xlu0 %v861, 127
    %v1188 = vpop.permute.xlu0 %1187
    %1189 = vrot.lane.b32.xlu0 %v862, 127
    %v1190 = vpop.permute.xlu0 %1189
    %1191 = vrot.lane.b32.xlu0 %v863, 127
    %v1192 = vpop.permute.xlu0 %1191
    %1193 = vrot.lane.b32.xlu0 %v864, 127
    %v1194 = vpop.permute.xlu0 %1193
    %1195 = vrot.lane.b32.xlu0 %v865, 127
    %v1196 = vpop.permute.xlu0 %1195
    %1197 = vrot.lane.b32.xlu0 %v866, 127
    %v1198 = vpop.permute.xlu0 %1197
    %1199 = vrot.lane.b32.xlu0 %v867, 127
    %v1200 = vpop.permute.xlu0 %1199
    %1201 = vrot.lane.b32.xlu0 %v868, 127
    %v1202 = vpop.permute.xlu0 %1201
    %1203 = vrot.lane.b32.xlu0 %v869, 127
    %v1204 = vpop.permute.xlu0 %1203
    %1205 = vrot.lane.b32.xlu0 %v870, 127
    %v1206 = vpop.permute.xlu0 %1205
    %1207 = vrot.lane.b32.xlu0 %v871, 127
    %v1208 = vpop.permute.xlu0 %1207
    %1209 = vrot.lane.b32.xlu0 %v872, 127
    %v1210 = vpop.permute.xlu0 %1209
    %1211 = vrot.lane.b32.xlu0 %v873, 127
    %v1212 = vpop.permute.xlu0 %1211
    %1213 = vrot.lane.b32.xlu0 %v874, 127
    %v1214 = vpop.permute.xlu0 %1213
    %1215 = vrot.lane.b32.xlu0 %v875, 127
    %v1216 = vpop.permute.xlu0 %1215
    %1217 = vrot.lane.b32.xlu0 %v876, 127
    %v1218 = vpop.permute.xlu0 %1217
    %1219 = vrot.lane.b32.xlu0 %v877, 127
    %v1220 = vpop.permute.xlu0 %1219
    %1221 = vrot.lane.b32.xlu0 %v878, 127
    %v1222 = vpop.permute.xlu0 %1221
    %1223 = vrot.lane.b32.xlu0 %v879, 127
    %v1224 = vpop.permute.xlu0 %1223
    %1225 = vrot.lane.b32.xlu0 %v880, 127
    %v1226 = vpop.permute.xlu0 %1225
    %1227 = vrot.lane.b32.xlu0 %v881, 127
    %v1228 = vpop.permute.xlu0 %1227
    %1229 = vrot.lane.b32.xlu0 %v882, 127
    %v1230 = vpop.permute.xlu0 %1229
    %1231 = vrot.lane.b32.xlu0 %v883, 127
    %v1232 = vpop.permute.xlu0 %1231
    %1233 = vrot.lane.b32.xlu0 %v884, 127
    %v1234 = vpop.permute.xlu0 %1233
    %1235 = vrot.lane.b32.xlu0 %v885, 127
    %v1236 = vpop.permute.xlu0 %1235
    %1237 = vrot.lane.b32.xlu0 %v886, 127
    %v1238 = vpop.permute.xlu0 %1237
    %1239 = vrot.lane.b32.xlu0 %v887, 127
    %v1240 = vpop.permute.xlu0 %1239
    %1241 = vrot.lane.b32.xlu0 %v888, 127
    %v1242 = vpop.permute.xlu0 %1241
    %1243 = vrot.lane.b32.xlu0 %v889, 127
    %v1244 = vpop.permute.xlu0 %1243
    %1245 = vrot.lane.b32.xlu0 %v890, 127
    %v1246 = vpop.permute.xlu0 %1245
    %1247 = vrot.lane.b32.xlu0 %v891, 127
    %v1248 = vpop.permute.xlu0 %1247
    %1249 = vrot.lane.b32.xlu0 %v892, 127
    %v1250 = vpop.permute.xlu0 %1249
    %1251 = vrot.lane.b32.xlu0 %v893, 127
    %v1252 = vpop.permute.xlu0 %1251
    %1253 = vrot.lane.b32.xlu0 %v894, 127
    %v1254 = vpop.permute.xlu0 %1253
    %1255 = vrot.lane.b32.xlu0 %v895, 127
    %v1256 = vpop.permute.xlu0 %1255
    %1257 = vrot.lane.b32.xlu0 %v896, 127
    %v1258 = vpop.permute.xlu0 %1257
    %1259 = vrot.lane.b32.xlu0 %v897, 127
    %v1260 = vpop.permute.xlu0 %1259
    %1261 = vrot.lane.b32.xlu0 %v898, 127
    %v1262 = vpop.permute.xlu0 %1261
    %1263 = vrot.lane.b32.xlu0 %v899, 127
    %v1264 = vpop.permute.xlu0 %1263
    %1265 = vrot.lane.b32.xlu0 %v900, 127
    %v1266 = vpop.permute.xlu0 %1265
    %1267 = vrot.lane.b32.xlu0 %v901, 127
    %v1268 = vpop.permute.xlu0 %1267
    %1269 = vrot.lane.b32.xlu0 %v902, 127
    %v1270 = vpop.permute.xlu0 %1269
    %1271 = vrot.lane.b32.xlu0 %v903, 127
    %v1272 = vpop.permute.xlu0 %1271
    %1273 = vrot.lane.b32.xlu0 %v904, 127
    %v1274 = vpop.permute.xlu0 %1273
    %1275 = vrot.lane.b32.xlu0 %v905, 127
    %v1276 = vpop.permute.xlu0 %1275
    %1277 = vrot.lane.b32.xlu0 %v906, 127
    %v1278 = vpop.permute.xlu0 %1277
    %1279 = vrot.lane.b32.xlu0 %v907, 127
    %v1280 = vpop.permute.xlu0 %1279
    %1281 = vrot.lane.b32.xlu0 %v908, 127
    %v1282 = vpop.permute.xlu0 %1281
    %1283 = vrot.lane.b32.xlu0 %v909, 127
    %v1284 = vpop.permute.xlu0 %1283
    %1285 = vrot.lane.b32.xlu0 %v910, 127
    %v1286 = vpop.permute.xlu0 %1285
    %1287 = vrot.lane.b32.xlu0 %v911, 127
    %v1288 = vpop.permute.xlu0 %1287
    %1289 = vrot.lane.b32.xlu0 %v912, 127
    %v1290 = vpop.permute.xlu0 %1289
    %1291 = vrot.lane.b32.xlu0 %v913, 127
    %v1292 = vpop.permute.xlu0 %1291
    %1293 = vrot.lane.b32.xlu0 %v914, 127
    %v1294 = vpop.permute.xlu0 %1293
    %1295 = vrot.lane.b32.xlu0 %v915, 127
    %v1296 = vpop.permute.xlu0 %1295
    %1297 = vrot.lane.b32.xlu0 %v916, 127
    %v1298 = vpop.permute.xlu0 %1297
    %1299 = vrot.lane.b32.xlu0 %v917, 127
    %v1300 = vpop.permute.xlu0 %1299
    %1301 = vrot.lane.b32.xlu0 %v918, 127
    %v1302 = vpop.permute.xlu0 %1301
    %v1303 = vadd.s32 %v919, %v1048
    %v1304 = vadd.s32 %v920, %v1050
    %v1305 = vadd.s32 %v921, %v1052
    %v1306 = vadd.s32 %v922, %v1054
    %v1307 = vadd.s32 %v923, %v1056
    %v1308 = vadd.s32 %v924, %v1058
    %v1309 = vadd.s32 %v925, %v1060
    %v1310 = vadd.s32 %v926, %v1062
    %v1311 = vadd.s32 %v927, %v1064
    %v1312 = vadd.s32 %v928, %v1066
    %v1313 = vadd.s32 %v929, %v1068
    %v1314 = vadd.s32 %v930, %v1070
    %v1315 = vadd.s32 %v931, %v1072
    %v1316 = vadd.s32 %v932, %v1074
    %v1317 = vadd.s32 %v933, %v1076
    %v1318 = vadd.s32 %v934, %v1078
    %v1319 = vadd.s32 %v935, %v1080
    %v1320 = vadd.s32 %v936, %v1082
    %v1321 = vadd.s32 %v937, %v1084
    %v1322 = vadd.s32 %v938, %v1086
    %v1323 = vadd.s32 %v939, %v1088
    %v1324 = vadd.s32 %v940, %v1090
    %v1325 = vadd.s32 %v941, %v1092
    %v1326 = vadd.s32 %v942, %v1094
    %v1327 = vadd.s32 %v943, %v1096
    %v1328 = vadd.s32 %v944, %v1098
    %v1329 = vadd.s32 %v945, %v1100
    %v1330 = vadd.s32 %v946, %v1102
    %v1331 = vadd.s32 %v947, %v1104
    %v1332 = vadd.s32 %v948, %v1106
    %v1333 = vadd.s32 %v949, %v1108
    %v1334 = vadd.s32 %v950, %v1110
    %v1335 = vadd.s32 %v951, %v1112
    %v1336 = vadd.s32 %v952, %v1114
    %v1337 = vadd.s32 %v953, %v1116
    %v1338 = vadd.s32 %v954, %v1118
    %v1339 = vadd.s32 %v955, %v1120
    %v1340 = vadd.s32 %v956, %v1122
    %v1341 = vadd.s32 %v957, %v1124
    %v1342 = vadd.s32 %v958, %v1126
    %v1343 = vadd.s32 %v959, %v1128
    %v1344 = vadd.s32 %v960, %v1130
    %v1345 = vadd.s32 %v961, %v1132
    %v1346 = vadd.s32 %v962, %v1134
    %v1347 = vadd.s32 %v963, %v1136
    %v1348 = vadd.s32 %v964, %v1138
    %v1349 = vadd.s32 %v965, %v1140
    %v1350 = vadd.s32 %v966, %v1142
    %v1351 = vadd.s32 %v967, %v1144
    %v1352 = vadd.s32 %v968, %v1146
    %v1353 = vadd.s32 %v969, %v1148
    %v1354 = vadd.s32 %v970, %v1150
    %v1355 = vadd.s32 %v971, %v1152
    %v1356 = vadd.s32 %v972, %v1154
    %v1357 = vadd.s32 %v973, %v1156
    %v1358 = vadd.s32 %v974, %v1158
    %v1359 = vadd.s32 %v975, %v1160
    %v1360 = vadd.s32 %v976, %v1162
    %v1361 = vadd.s32 %v977, %v1164
    %v1362 = vadd.s32 %v978, %v1166
    %v1363 = vadd.s32 %v979, %v1168
    %v1364 = vadd.s32 %v980, %v1170
    %v1365 = vadd.s32 %v981, %v1172
    %v1366 = vadd.s32 %v982, %v1174
    %v1367 = vadd.s32 %v983, %v1176
    %v1368 = vadd.s32 %v984, %v1178
    %v1369 = vadd.s32 %v985, %v1180
    %v1370 = vadd.s32 %v986, %v1182
    %v1371 = vadd.s32 %v987, %v1184
    %v1372 = vadd.s32 %v988, %v1186
    %v1373 = vadd.s32 %v989, %v1188
    %v1374 = vadd.s32 %v990, %v1190
    %v1375 = vadd.s32 %v991, %v1192
    %v1376 = vadd.s32 %v992, %v1194
    %v1377 = vadd.s32 %v993, %v1196
    %v1378 = vadd.s32 %v994, %v1198
    %v1379 = vadd.s32 %v995, %v1200
    %v1380 = vadd.s32 %v996, %v1202
    %v1381 = vadd.s32 %v997, %v1204
    %v1382 = vadd.s32 %v998, %v1206
    %v1383 = vadd.s32 %v999, %v1208
    %v1384 = vadd.s32 %v1000, %v1210
    %v1385 = vadd.s32 %v1001, %v1212
    %v1386 = vadd.s32 %v1002, %v1214
    %v1387 = vadd.s32 %v1003, %v1216
    %v1388 = vadd.s32 %v1004, %v1218
    %v1389 = vadd.s32 %v1005, %v1220
    %v1390 = vadd.s32 %v1006, %v1222
    %v1391 = vadd.s32 %v1007, %v1224
    %v1392 = vadd.s32 %v1008, %v1226
    %v1393 = vadd.s32 %v1009, %v1228
    %v1394 = vadd.s32 %v1010, %v1230
    %v1395 = vadd.s32 %v1011, %v1232
    %v1396 = vadd.s32 %v1012, %v1234
    %v1397 = vadd.s32 %v1013, %v1236
    %v1398 = vadd.s32 %v1014, %v1238
    %v1399 = vadd.s32 %v1015, %v1240
    %v1400 = vadd.s32 %v1016, %v1242
    %v1401 = vadd.s32 %v1017, %v1244
    %v1402 = vadd.s32 %v1018, %v1246
    %v1403 = vadd.s32 %v1019, %v1248
    %v1404 = vadd.s32 %v1020, %v1250
    %v1405 = vadd.s32 %v1021, %v1252
    %v1406 = vadd.s32 %v1022, %v1254
    %v1407 = vadd.s32 %v1023, %v1256
    %v1408 = vadd.s32 %v1024, %v1258
    %v1409 = vadd.s32 %v1025, %v1260
    %v1410 = vadd.s32 %v1026, %v1262
    %v1411 = vadd.s32 %v1027, %v1264
    %v1412 = vadd.s32 %v1028, %v1266
    %v1413 = vadd.s32 %v1029, %v1268
    %v1414 = vadd.s32 %v1030, %v1270
    %v1415 = vadd.s32 %v1031, %v1272
    %v1416 = vadd.s32 %v1032, %v1274
    %v1417 = vadd.s32 %v1033, %v1276
    %v1418 = vadd.s32 %v1034, %v1278
    %v1419 = vadd.s32 %v1035, %v1280
    %v1420 = vadd.s32 %v1036, %v1282
    %v1421 = vadd.s32 %v1037, %v1284
    %v1422 = vadd.s32 %v1038, %v1286
    %v1423 = vadd.s32 %v1039, %v1288
    %v1424 = vadd.s32 %v1040, %v1290
    %v1425 = vadd.s32 %v1041, %v1292
    %v1426 = vadd.s32 %v1042, %v1294
    %v1427 = vadd.s32 %v1043, %v1296
    %v1428 = vadd.s32 %v1044, %v1298
    %v1429 = vadd.s32 %v1045, %v1300
    %v1430 = vadd.s32 %v1046, %v1302
    %v1431 = vlaneseq
    %v1432 = vand.u32 %v1431, 127
    %1433 = vset.pattern.permute.xlu0 0
    %1434 = vperm.xlu0 %1433, %v1303
    %v1435 = vpop.permute.xlu0 %1434
    %1436 = vset.pattern.permute.xlu0 0
    %1437 = vperm.xlu0 %1436, %v1304
    %v1438 = vpop.permute.xlu0 %1437
    %1439 = vset.pattern.permute.xlu0 0
    %1440 = vperm.xlu0 %1439, %v1305
    %v1441 = vpop.permute.xlu0 %1440
    %1442 = vset.pattern.permute.xlu0 0
    %1443 = vperm.xlu0 %1442, %v1306
    %v1444 = vpop.permute.xlu0 %1443
    %1445 = vset.pattern.permute.xlu0 0
    %1446 = vperm.xlu0 %1445, %v1307
    %v1447 = vpop.permute.xlu0 %1446
    %1448 = vset.pattern.permute.xlu0 0
    %1449 = vperm.xlu0 %1448, %v1308
    %v1450 = vpop.permute.xlu0 %1449
    %1451 = vset.pattern.permute.xlu0 0
    %1452 = vperm.xlu0 %1451, %v1309
    %v1453 = vpop.permute.xlu0 %1452
    %1454 = vset.pattern.permute.xlu0 0
    %1455 = vperm.xlu0 %1454, %v1310
    %v1456 = vpop.permute.xlu0 %1455
    %1457 = vset.pattern.permute.xlu0 0
    %1458 = vperm.xlu0 %1457, %v1311
    %v1459 = vpop.permute.xlu0 %1458
    %1460 = vset.pattern.permute.xlu0 0
    %1461 = vperm.xlu0 %1460, %v1312
    %v1462 = vpop.permute.xlu0 %1461
    %1463 = vset.pattern.permute.xlu0 0
    %1464 = vperm.xlu0 %1463, %v1313
    %v1465 = vpop.permute.xlu0 %1464
    %1466 = vset.pattern.permute.xlu0 0
    %1467 = vperm.xlu0 %1466, %v1314
    %v1468 = vpop.permute.xlu0 %1467
    %1469 = vset.pattern.permute.xlu0 0
    %1470 = vperm.xlu0 %1469, %v1315
    %v1471 = vpop.permute.xlu0 %1470
    %1472 = vset.pattern.permute.xlu0 0
    %1473 = vperm.xlu0 %1472, %v1316
    %v1474 = vpop.permute.xlu0 %1473
    %1475 = vset.pattern.permute.xlu0 0
    %1476 = vperm.xlu0 %1475, %v1317
    %v1477 = vpop.permute.xlu0 %1476
    %1478 = vset.pattern.permute.xlu0 0
    %1479 = vperm.xlu0 %1478, %v1318
    %v1480 = vpop.permute.xlu0 %1479
    %1481 = vset.pattern.permute.xlu0 0
    %1482 = vperm.xlu0 %1481, %v1319
    %v1483 = vpop.permute.xlu0 %1482
    %1484 = vset.pattern.permute.xlu0 0
    %1485 = vperm.xlu0 %1484, %v1320
    %v1486 = vpop.permute.xlu0 %1485
    %1487 = vset.pattern.permute.xlu0 0
    %1488 = vperm.xlu0 %1487, %v1321
    %v1489 = vpop.permute.xlu0 %1488
    %1490 = vset.pattern.permute.xlu0 0
    %1491 = vperm.xlu0 %1490, %v1322
    %v1492 = vpop.permute.xlu0 %1491
    %1493 = vset.pattern.permute.xlu0 0
    %1494 = vperm.xlu0 %1493, %v1323
    %v1495 = vpop.permute.xlu0 %1494
    %1496 = vset.pattern.permute.xlu0 0
    %1497 = vperm.xlu0 %1496, %v1324
    %v1498 = vpop.permute.xlu0 %1497
    %1499 = vset.pattern.permute.xlu0 0
    %1500 = vperm.xlu0 %1499, %v1325
    %v1501 = vpop.permute.xlu0 %1500
    %1502 = vset.pattern.permute.xlu0 0
    %1503 = vperm.xlu0 %1502, %v1326
    %v1504 = vpop.permute.xlu0 %1503
    %1505 = vset.pattern.permute.xlu0 0
    %1506 = vperm.xlu0 %1505, %v1327
    %v1507 = vpop.permute.xlu0 %1506
    %1508 = vset.pattern.permute.xlu0 0
    %1509 = vperm.xlu0 %1508, %v1328
    %v1510 = vpop.permute.xlu0 %1509
    %1511 = vset.pattern.permute.xlu0 0
    %1512 = vperm.xlu0 %1511, %v1329
    %v1513 = vpop.permute.xlu0 %1512
    %1514 = vset.pattern.permute.xlu0 0
    %1515 = vperm.xlu0 %1514, %v1330
    %v1516 = vpop.permute.xlu0 %1515
    %1517 = vset.pattern.permute.xlu0 0
    %1518 = vperm.xlu0 %1517, %v1331
    %v1519 = vpop.permute.xlu0 %1518
    %1520 = vset.pattern.permute.xlu0 0
    %1521 = vperm.xlu0 %1520, %v1332
    %v1522 = vpop.permute.xlu0 %1521
    %1523 = vset.pattern.permute.xlu0 0
    %1524 = vperm.xlu0 %1523, %v1333
    %v1525 = vpop.permute.xlu0 %1524
    %1526 = vset.pattern.permute.xlu0 0
    %1527 = vperm.xlu0 %1526, %v1334
    %v1528 = vpop.permute.xlu0 %1527
    %1529 = vset.pattern.permute.xlu0 0
    %1530 = vperm.xlu0 %1529, %v1335
    %v1531 = vpop.permute.xlu0 %1530
    %1532 = vset.pattern.permute.xlu0 0
    %1533 = vperm.xlu0 %1532, %v1336
    %v1534 = vpop.permute.xlu0 %1533
    %1535 = vset.pattern.permute.xlu0 0
    %1536 = vperm.xlu0 %1535, %v1337
    %v1537 = vpop.permute.xlu0 %1536
    %1538 = vset.pattern.permute.xlu0 0
    %1539 = vperm.xlu0 %1538, %v1338
    %v1540 = vpop.permute.xlu0 %1539
    %1541 = vset.pattern.permute.xlu0 0
    %1542 = vperm.xlu0 %1541, %v1339
    %v1543 = vpop.permute.xlu0 %1542
    %1544 = vset.pattern.permute.xlu0 0
    %1545 = vperm.xlu0 %1544, %v1340
    %v1546 = vpop.permute.xlu0 %1545
    %1547 = vset.pattern.permute.xlu0 0
    %1548 = vperm.xlu0 %1547, %v1341
    %v1549 = vpop.permute.xlu0 %1548
    %1550 = vset.pattern.permute.xlu0 0
    %1551 = vperm.xlu0 %1550, %v1342
    %v1552 = vpop.permute.xlu0 %1551
    %1553 = vset.pattern.permute.xlu0 0
    %1554 = vperm.xlu0 %1553, %v1343
    %v1555 = vpop.permute.xlu0 %1554
    %1556 = vset.pattern.permute.xlu0 0
    %1557 = vperm.xlu0 %1556, %v1344
    %v1558 = vpop.permute.xlu0 %1557
    %1559 = vset.pattern.permute.xlu0 0
    %1560 = vperm.xlu0 %1559, %v1345
    %v1561 = vpop.permute.xlu0 %1560
    %1562 = vset.pattern.permute.xlu0 0
    %1563 = vperm.xlu0 %1562, %v1346
    %v1564 = vpop.permute.xlu0 %1563
    %1565 = vset.pattern.permute.xlu0 0
    %1566 = vperm.xlu0 %1565, %v1347
    %v1567 = vpop.permute.xlu0 %1566
    %1568 = vset.pattern.permute.xlu0 0
    %1569 = vperm.xlu0 %1568, %v1348
    %v1570 = vpop.permute.xlu0 %1569
    %1571 = vset.pattern.permute.xlu0 0
    %1572 = vperm.xlu0 %1571, %v1349
    %v1573 = vpop.permute.xlu0 %1572
    %1574 = vset.pattern.permute.xlu0 0
    %1575 = vperm.xlu0 %1574, %v1350
    %v1576 = vpop.permute.xlu0 %1575
    %1577 = vset.pattern.permute.xlu0 0
    %1578 = vperm.xlu0 %1577, %v1351
    %v1579 = vpop.permute.xlu0 %1578
    %1580 = vset.pattern.permute.xlu0 0
    %1581 = vperm.xlu0 %1580, %v1352
    %v1582 = vpop.permute.xlu0 %1581
    %1583 = vset.pattern.permute.xlu0 0
    %1584 = vperm.xlu0 %1583, %v1353
    %v1585 = vpop.permute.xlu0 %1584
    %1586 = vset.pattern.permute.xlu0 0
    %1587 = vperm.xlu0 %1586, %v1354
    %v1588 = vpop.permute.xlu0 %1587
    %1589 = vset.pattern.permute.xlu0 0
    %1590 = vperm.xlu0 %1589, %v1355
    %v1591 = vpop.permute.xlu0 %1590
    %1592 = vset.pattern.permute.xlu0 0
    %1593 = vperm.xlu0 %1592, %v1356
    %v1594 = vpop.permute.xlu0 %1593
    %1595 = vset.pattern.permute.xlu0 0
    %1596 = vperm.xlu0 %1595, %v1357
    %v1597 = vpop.permute.xlu0 %1596
    %1598 = vset.pattern.permute.xlu0 0
    %1599 = vperm.xlu0 %1598, %v1358
    %v1600 = vpop.permute.xlu0 %1599
    %1601 = vset.pattern.permute.xlu0 0
    %1602 = vperm.xlu0 %1601, %v1359
    %v1603 = vpop.permute.xlu0 %1602
    %1604 = vset.pattern.permute.xlu0 0
    %1605 = vperm.xlu0 %1604, %v1360
    %v1606 = vpop.permute.xlu0 %1605
    %1607 = vset.pattern.permute.xlu0 0
    %1608 = vperm.xlu0 %1607, %v1361
    %v1609 = vpop.permute.xlu0 %1608
    %1610 = vset.pattern.permute.xlu0 0
    %1611 = vperm.xlu0 %1610, %v1362
    %v1612 = vpop.permute.xlu0 %1611
    %1613 = vset.pattern.permute.xlu0 0
    %1614 = vperm.xlu0 %1613, %v1363
    %v1615 = vpop.permute.xlu0 %1614
    %1616 = vset.pattern.permute.xlu0 0
    %1617 = vperm.xlu0 %1616, %v1364
    %v1618 = vpop.permute.xlu0 %1617
    %1619 = vset.pattern.permute.xlu0 0
    %1620 = vperm.xlu0 %1619, %v1365
    %v1621 = vpop.permute.xlu0 %1620
    %1622 = vset.pattern.permute.xlu0 0
    %1623 = vperm.xlu0 %1622, %v1366
    %v1624 = vpop.permute.xlu0 %1623
    %1625 = vset.pattern.permute.xlu0 0
    %1626 = vperm.xlu0 %1625, %v1367
    %v1627 = vpop.permute.xlu0 %1626
    %1628 = vset.pattern.permute.xlu0 0
    %1629 = vperm.xlu0 %1628, %v1368
    %v1630 = vpop.permute.xlu0 %1629
    %1631 = vset.pattern.permute.xlu0 0
    %1632 = vperm.xlu0 %1631, %v1369
    %v1633 = vpop.permute.xlu0 %1632
    %1634 = vset.pattern.permute.xlu0 0
    %1635 = vperm.xlu0 %1634, %v1370
    %v1636 = vpop.permute.xlu0 %1635
    %1637 = vset.pattern.permute.xlu0 0
    %1638 = vperm.xlu0 %1637, %v1371
    %v1639 = vpop.permute.xlu0 %1638
    %1640 = vset.pattern.permute.xlu0 0
    %1641 = vperm.xlu0 %1640, %v1372
    %v1642 = vpop.permute.xlu0 %1641
    %1643 = vset.pattern.permute.xlu0 0
    %1644 = vperm.xlu0 %1643, %v1373
    %v1645 = vpop.permute.xlu0 %1644
    %1646 = vset.pattern.permute.xlu0 0
    %1647 = vperm.xlu0 %1646, %v1374
    %v1648 = vpop.permute.xlu0 %1647
    %1649 = vset.pattern.permute.xlu0 0
    %1650 = vperm.xlu0 %1649, %v1375
    %v1651 = vpop.permute.xlu0 %1650
    %1652 = vset.pattern.permute.xlu0 0
    %1653 = vperm.xlu0 %1652, %v1376
    %v1654 = vpop.permute.xlu0 %1653
    %1655 = vset.pattern.permute.xlu0 0
    %1656 = vperm.xlu0 %1655, %v1377
    %v1657 = vpop.permute.xlu0 %1656
    %1658 = vset.pattern.permute.xlu0 0
    %1659 = vperm.xlu0 %1658, %v1378
    %v1660 = vpop.permute.xlu0 %1659
    %1661 = vset.pattern.permute.xlu0 0
    %1662 = vperm.xlu0 %1661, %v1379
    %v1663 = vpop.permute.xlu0 %1662
    %1664 = vset.pattern.permute.xlu0 0
    %1665 = vperm.xlu0 %1664, %v1380
    %v1666 = vpop.permute.xlu0 %1665
    %1667 = vset.pattern.permute.xlu0 0
    %1668 = vperm.xlu0 %1667, %v1381
    %v1669 = vpop.permute.xlu0 %1668
    %1670 = vset.pattern.permute.xlu0 0
    %1671 = vperm.xlu0 %1670, %v1382
    %v1672 = vpop.permute.xlu0 %1671
    %1673 = vset.pattern.permute.xlu0 0
    %1674 = vperm.xlu0 %1673, %v1383
    %v1675 = vpop.permute.xlu0 %1674
    %1676 = vset.pattern.permute.xlu0 0
    %1677 = vperm.xlu0 %1676, %v1384
    %v1678 = vpop.permute.xlu0 %1677
    %1679 = vset.pattern.permute.xlu0 0
    %1680 = vperm.xlu0 %1679, %v1385
    %v1681 = vpop.permute.xlu0 %1680
    %1682 = vset.pattern.permute.xlu0 0
    %1683 = vperm.xlu0 %1682, %v1386
    %v1684 = vpop.permute.xlu0 %1683
    %1685 = vset.pattern.permute.xlu0 0
    %1686 = vperm.xlu0 %1685, %v1387
    %v1687 = vpop.permute.xlu0 %1686
    %1688 = vset.pattern.permute.xlu0 0
    %1689 = vperm.xlu0 %1688, %v1388
    %v1690 = vpop.permute.xlu0 %1689
    %1691 = vset.pattern.permute.xlu0 0
    %1692 = vperm.xlu0 %1691, %v1389
    %v1693 = vpop.permute.xlu0 %1692
    %1694 = vset.pattern.permute.xlu0 0
    %1695 = vperm.xlu0 %1694, %v1390
    %v1696 = vpop.permute.xlu0 %1695
    %1697 = vset.pattern.permute.xlu0 0
    %1698 = vperm.xlu0 %1697, %v1391
    %v1699 = vpop.permute.xlu0 %1698
    %1700 = vset.pattern.permute.xlu0 0
    %1701 = vperm.xlu0 %1700, %v1392
    %v1702 = vpop.permute.xlu0 %1701
    %1703 = vset.pattern.permute.xlu0 0
    %1704 = vperm.xlu0 %1703, %v1393
    %v1705 = vpop.permute.xlu0 %1704
    %1706 = vset.pattern.permute.xlu0 0
    %1707 = vperm.xlu0 %1706, %v1394
    %v1708 = vpop.permute.xlu0 %1707
    %1709 = vset.pattern.permute.xlu0 0
    %1710 = vperm.xlu0 %1709, %v1395
    %v1711 = vpop.permute.xlu0 %1710
    %1712 = vset.pattern.permute.xlu0 0
    %1713 = vperm.xlu0 %1712, %v1396
    %v1714 = vpop.permute.xlu0 %1713
    %1715 = vset.pattern.permute.xlu0 0
    %1716 = vperm.xlu0 %1715, %v1397
    %v1717 = vpop.permute.xlu0 %1716
    %1718 = vset.pattern.permute.xlu0 0
    %1719 = vperm.xlu0 %1718, %v1398
    %v1720 = vpop.permute.xlu0 %1719
    %1721 = vset.pattern.permute.xlu0 0
    %1722 = vperm.xlu0 %1721, %v1399
    %v1723 = vpop.permute.xlu0 %1722
    %1724 = vset.pattern.permute.xlu0 0
    %1725 = vperm.xlu0 %1724, %v1400
    %v1726 = vpop.permute.xlu0 %1725
    %1727 = vset.pattern.permute.xlu0 0
    %1728 = vperm.xlu0 %1727, %v1401
    %v1729 = vpop.permute.xlu0 %1728
    %1730 = vset.pattern.permute.xlu0 0
    %1731 = vperm.xlu0 %1730, %v1402
    %v1732 = vpop.permute.xlu0 %1731
    %1733 = vset.pattern.permute.xlu0 0
    %1734 = vperm.xlu0 %1733, %v1403
    %v1735 = vpop.permute.xlu0 %1734
    %1736 = vset.pattern.permute.xlu0 0
    %1737 = vperm.xlu0 %1736, %v1404
    %v1738 = vpop.permute.xlu0 %1737
    %1739 = vset.pattern.permute.xlu0 0
    %1740 = vperm.xlu0 %1739, %v1405
    %v1741 = vpop.permute.xlu0 %1740
    %1742 = vset.pattern.permute.xlu0 0
    %1743 = vperm.xlu0 %1742, %v1406
    %v1744 = vpop.permute.xlu0 %1743
    %1745 = vset.pattern.permute.xlu0 0
    %1746 = vperm.xlu0 %1745, %v1407
    %v1747 = vpop.permute.xlu0 %1746
    %1748 = vset.pattern.permute.xlu0 0
    %1749 = vperm.xlu0 %1748, %v1408
    %v1750 = vpop.permute.xlu0 %1749
    %1751 = vset.pattern.permute.xlu0 0
    %1752 = vperm.xlu0 %1751, %v1409
    %v1753 = vpop.permute.xlu0 %1752
    %1754 = vset.pattern.permute.xlu0 0
    %1755 = vperm.xlu0 %1754, %v1410
    %v1756 = vpop.permute.xlu0 %1755
    %1757 = vset.pattern.permute.xlu0 0
    %1758 = vperm.xlu0 %1757, %v1411
    %v1759 = vpop.permute.xlu0 %1758
    %1760 = vset.pattern.permute.xlu0 0
    %1761 = vperm.xlu0 %1760, %v1412
    %v1762 = vpop.permute.xlu0 %1761
    %1763 = vset.pattern.permute.xlu0 0
    %1764 = vperm.xlu0 %1763, %v1413
    %v1765 = vpop.permute.xlu0 %1764
    %1766 = vset.pattern.permute.xlu0 0
    %1767 = vperm.xlu0 %1766, %v1414
    %v1768 = vpop.permute.xlu0 %1767
    %1769 = vset.pattern.permute.xlu0 0
    %1770 = vperm.xlu0 %1769, %v1415
    %v1771 = vpop.permute.xlu0 %1770
    %1772 = vset.pattern.permute.xlu0 0
    %1773 = vperm.xlu0 %1772, %v1416
    %v1774 = vpop.permute.xlu0 %1773
    %1775 = vset.pattern.permute.xlu0 0
    %1776 = vperm.xlu0 %1775, %v1417
    %v1777 = vpop.permute.xlu0 %1776
    %1778 = vset.pattern.permute.xlu0 0
    %1779 = vperm.xlu0 %1778, %v1418
    %v1780 = vpop.permute.xlu0 %1779
    %1781 = vset.pattern.permute.xlu0 0
    %1782 = vperm.xlu0 %1781, %v1419
    %v1783 = vpop.permute.xlu0 %1782
    %1784 = vset.pattern.permute.xlu0 0
    %1785 = vperm.xlu0 %1784, %v1420
    %v1786 = vpop.permute.xlu0 %1785
    %1787 = vset.pattern.permute.xlu0 0
    %1788 = vperm.xlu0 %1787, %v1421
    %v1789 = vpop.permute.xlu0 %1788
    %1790 = vset.pattern.permute.xlu0 0
    %1791 = vperm.xlu0 %1790, %v1422
    %v1792 = vpop.permute.xlu0 %1791
    %1793 = vset.pattern.permute.xlu0 0
    %1794 = vperm.xlu0 %1793, %v1423
    %v1795 = vpop.permute.xlu0 %1794
    %1796 = vset.pattern.permute.xlu0 0
    %1797 = vperm.xlu0 %1796, %v1424
    %v1798 = vpop.permute.xlu0 %1797
    %1799 = vset.pattern.permute.xlu0 0
    %1800 = vperm.xlu0 %1799, %v1425
    %v1801 = vpop.permute.xlu0 %1800
    %1802 = vset.pattern.permute.xlu0 0
    %1803 = vperm.xlu0 %1802, %v1426
    %v1804 = vpop.permute.xlu0 %1803
    %1805 = vset.pattern.permute.xlu0 0
    %1806 = vperm.xlu0 %1805, %v1427
    %v1807 = vpop.permute.xlu0 %1806
    %1808 = vset.pattern.permute.xlu0 0
    %1809 = vperm.xlu0 %1808, %v1428
    %v1810 = vpop.permute.xlu0 %1809
    %1811 = vset.pattern.permute.xlu0 0
    %1812 = vperm.xlu0 %1811, %v1429
    %v1813 = vpop.permute.xlu0 %1812
    %1814 = vset.pattern.permute.xlu0 0
    %1815 = vperm.xlu0 %1814, %v1430
    %v1816 = vpop.permute.xlu0 %1815
    %vm1817 = vcmp.eq.s32.totalorder %v1435, %v1432
    %vm1818 = vcmp.eq.s32.totalorder %v1438, %v1432
    %vm1819 = vcmp.eq.s32.totalorder %v1441, %v1432
    %vm1820 = vcmp.eq.s32.totalorder %v1444, %v1432
    %vm1821 = vcmp.eq.s32.totalorder %v1447, %v1432
    %vm1822 = vcmp.eq.s32.totalorder %v1450, %v1432
    %vm1823 = vcmp.eq.s32.totalorder %v1453, %v1432
    %vm1824 = vcmp.eq.s32.totalorder %v1456, %v1432
    %vm1825 = vcmp.eq.s32.totalorder %v1459, %v1432
    %vm1826 = vcmp.eq.s32.totalorder %v1462, %v1432
    %vm1827 = vcmp.eq.s32.totalorder %v1465, %v1432
    %vm1828 = vcmp.eq.s32.totalorder %v1468, %v1432
    %vm1829 = vcmp.eq.s32.totalorder %v1471, %v1432
    %vm1830 = vcmp.eq.s32.totalorder %v1474, %v1432
    %vm1831 = vcmp.eq.s32.totalorder %v1477, %v1432
    %vm1832 = vcmp.eq.s32.totalorder %v1480, %v1432
    %vm1833 = vcmp.eq.s32.totalorder %v1483, %v1432
    %vm1834 = vcmp.eq.s32.totalorder %v1486, %v1432
    %vm1835 = vcmp.eq.s32.totalorder %v1489, %v1432
    %vm1836 = vcmp.eq.s32.totalorder %v1492, %v1432
    %vm1837 = vcmp.eq.s32.totalorder %v1495, %v1432
    %vm1838 = vcmp.eq.s32.totalorder %v1498, %v1432
    %vm1839 = vcmp.eq.s32.totalorder %v1501, %v1432
    %vm1840 = vcmp.eq.s32.totalorder %v1504, %v1432
    %vm1841 = vcmp.eq.s32.totalorder %v1507, %v1432
    %vm1842 = vcmp.eq.s32.totalorder %v1510, %v1432
    %vm1843 = vcmp.eq.s32.totalorder %v1513, %v1432
    %vm1844 = vcmp.eq.s32.totalorder %v1516, %v1432
    %vm1845 = vcmp.eq.s32.totalorder %v1519, %v1432
    %vm1846 = vcmp.eq.s32.totalorder %v1522, %v1432
    %vm1847 = vcmp.eq.s32.totalorder %v1525, %v1432
    %vm1848 = vcmp.eq.s32.totalorder %v1528, %v1432
    %vm1849 = vcmp.eq.s32.totalorder %v1531, %v1432
    %vm1850 = vcmp.eq.s32.totalorder %v1534, %v1432
    %vm1851 = vcmp.eq.s32.totalorder %v1537, %v1432
    %vm1852 = vcmp.eq.s32.totalorder %v1540, %v1432
    %vm1853 = vcmp.eq.s32.totalorder %v1543, %v1432
    %vm1854 = vcmp.eq.s32.totalorder %v1546, %v1432
    %vm1855 = vcmp.eq.s32.totalorder %v1549, %v1432
    %vm1856 = vcmp.eq.s32.totalorder %v1552, %v1432
    %vm1857 = vcmp.eq.s32.totalorder %v1555, %v1432
    %vm1858 = vcmp.eq.s32.totalorder %v1558, %v1432
    %vm1859 = vcmp.eq.s32.totalorder %v1561, %v1432
    %vm1860 = vcmp.eq.s32.totalorder %v1564, %v1432
    %vm1861 = vcmp.eq.s32.totalorder %v1567, %v1432
    %vm1862 = vcmp.eq.s32.totalorder %v1570, %v1432
    %vm1863 = vcmp.eq.s32.totalorder %v1573, %v1432
    %vm1864 = vcmp.eq.s32.totalorder %v1576, %v1432
    %vm1865 = vcmp.eq.s32.totalorder %v1579, %v1432
    %vm1866 = vcmp.eq.s32.totalorder %v1582, %v1432
    %vm1867 = vcmp.eq.s32.totalorder %v1585, %v1432
    %vm1868 = vcmp.eq.s32.totalorder %v1588, %v1432
    %vm1869 = vcmp.eq.s32.totalorder %v1591, %v1432
    %vm1870 = vcmp.eq.s32.totalorder %v1594, %v1432
    %vm1871 = vcmp.eq.s32.totalorder %v1597, %v1432
    %vm1872 = vcmp.eq.s32.totalorder %v1600, %v1432
    %vm1873 = vcmp.eq.s32.totalorder %v1603, %v1432
    %vm1874 = vcmp.eq.s32.totalorder %v1606, %v1432
    %vm1875 = vcmp.eq.s32.totalorder %v1609, %v1432
    %vm1876 = vcmp.eq.s32.totalorder %v1612, %v1432
    %vm1877 = vcmp.eq.s32.totalorder %v1615, %v1432
    %vm1878 = vcmp.eq.s32.totalorder %v1618, %v1432
    %vm1879 = vcmp.eq.s32.totalorder %v1621, %v1432
    %vm1880 = vcmp.eq.s32.totalorder %v1624, %v1432
    %vm1881 = vcmp.eq.s32.totalorder %v1627, %v1432
    %vm1882 = vcmp.eq.s32.totalorder %v1630, %v1432
    %vm1883 = vcmp.eq.s32.totalorder %v1633, %v1432
    %vm1884 = vcmp.eq.s32.totalorder %v1636, %v1432
    %vm1885 = vcmp.eq.s32.totalorder %v1639, %v1432
    %vm1886 = vcmp.eq.s32.totalorder %v1642, %v1432
    %vm1887 = vcmp.eq.s32.totalorder %v1645, %v1432
    %vm1888 = vcmp.eq.s32.totalorder %v1648, %v1432
    %vm1889 = vcmp.eq.s32.totalorder %v1651, %v1432
    %vm1890 = vcmp.eq.s32.totalorder %v1654, %v1432
    %vm1891 = vcmp.eq.s32.totalorder %v1657, %v1432
    %vm1892 = vcmp.eq.s32.totalorder %v1660, %v1432
    %vm1893 = vcmp.eq.s32.totalorder %v1663, %v1432
    %vm1894 = vcmp.eq.s32.totalorder %v1666, %v1432
    %vm1895 = vcmp.eq.s32.totalorder %v1669, %v1432
    %vm1896 = vcmp.eq.s32.totalorder %v1672, %v1432
    %vm1897 = vcmp.eq.s32.totalorder %v1675, %v1432
    %vm1898 = vcmp.eq.s32.totalorder %v1678, %v1432
    %vm1899 = vcmp.eq.s32.totalorder %v1681, %v1432
    %vm1900 = vcmp.eq.s32.totalorder %v1684, %v1432
    %vm1901 = vcmp.eq.s32.totalorder %v1687, %v1432
    %vm1902 = vcmp.eq.s32.totalorder %v1690, %v1432
    %vm1903 = vcmp.eq.s32.totalorder %v1693, %v1432
    %vm1904 = vcmp.eq.s32.totalorder %v1696, %v1432
    %vm1905 = vcmp.eq.s32.totalorder %v1699, %v1432
    %vm1906 = vcmp.eq.s32.totalorder %v1702, %v1432
    %vm1907 = vcmp.eq.s32.totalorder %v1705, %v1432
    %vm1908 = vcmp.eq.s32.totalorder %v1708, %v1432
    %vm1909 = vcmp.eq.s32.totalorder %v1711, %v1432
    %vm1910 = vcmp.eq.s32.totalorder %v1714, %v1432
    %vm1911 = vcmp.eq.s32.totalorder %v1717, %v1432
    %vm1912 = vcmp.eq.s32.totalorder %v1720, %v1432
    %vm1913 = vcmp.eq.s32.totalorder %v1723, %v1432
    %vm1914 = vcmp.eq.s32.totalorder %v1726, %v1432
    %vm1915 = vcmp.eq.s32.totalorder %v1729, %v1432
    %vm1916 = vcmp.eq.s32.totalorder %v1732, %v1432
    %vm1917 = vcmp.eq.s32.totalorder %v1735, %v1432
    %vm1918 = vcmp.eq.s32.totalorder %v1738, %v1432
    %vm1919 = vcmp.eq.s32.totalorder %v1741, %v1432
    %vm1920 = vcmp.eq.s32.totalorder %v1744, %v1432
    %vm1921 = vcmp.eq.s32.totalorder %v1747, %v1432
    %vm1922 = vcmp.eq.s32.totalorder %v1750, %v1432
    %vm1923 = vcmp.eq.s32.totalorder %v1753, %v1432
    %vm1924 = vcmp.eq.s32.totalorder %v1756, %v1432
    %vm1925 = vcmp.eq.s32.totalorder %v1759, %v1432
    %vm1926 = vcmp.eq.s32.totalorder %v1762, %v1432
    %vm1927 = vcmp.eq.s32.totalorder %v1765, %v1432
    %vm1928 = vcmp.eq.s32.totalorder %v1768, %v1432
    %vm1929 = vcmp.eq.s32.totalorder %v1771, %v1432
    %vm1930 = vcmp.eq.s32.totalorder %v1774, %v1432
    %vm1931 = vcmp.eq.s32.totalorder %v1777, %v1432
    %vm1932 = vcmp.eq.s32.totalorder %v1780, %v1432
    %vm1933 = vcmp.eq.s32.totalorder %v1783, %v1432
    %vm1934 = vcmp.eq.s32.totalorder %v1786, %v1432
    %vm1935 = vcmp.eq.s32.totalorder %v1789, %v1432
    %vm1936 = vcmp.eq.s32.totalorder %v1792, %v1432
    %vm1937 = vcmp.eq.s32.totalorder %v1795, %v1432
    %vm1938 = vcmp.eq.s32.totalorder %v1798, %v1432
    %vm1939 = vcmp.eq.s32.totalorder %v1801, %v1432
    %vm1940 = vcmp.eq.s32.totalorder %v1804, %v1432
    %vm1941 = vcmp.eq.s32.totalorder %v1807, %v1432
    %vm1942 = vcmp.eq.s32.totalorder %v1810, %v1432
    %vm1943 = vcmp.eq.s32.totalorder %v1813, %v1432
    %vm1944 = vcmp.eq.s32.totalorder %v1816, %v1432
    %v1945 = vsel %vm1817, 1, 0
    %v1946 = vsel %vm1818, 1, 0
    %v1947 = vsel %vm1819, 1, 0
    %v1948 = vsel %vm1820, 1, 0
    %v1949 = vsel %vm1821, 1, 0
    %v1950 = vsel %vm1822, 1, 0
    %v1951 = vsel %vm1823, 1, 0
    %v1952 = vsel %vm1824, 1, 0
    %v1953 = vsel %vm1825, 1, 0
    %v1954 = vsel %vm1826, 1, 0
    %v1955 = vsel %vm1827, 1, 0
    %v1956 = vsel %vm1828, 1, 0
    %v1957 = vsel %vm1829, 1, 0
    %v1958 = vsel %vm1830, 1, 0
    %v1959 = vsel %vm1831, 1, 0
    %v1960 = vsel %vm1832, 1, 0
    %v1961 = vsel %vm1833, 1, 0
    %v1962 = vsel %vm1834, 1, 0
    %v1963 = vsel %vm1835, 1, 0
    %v1964 = vsel %vm1836, 1, 0
    %v1965 = vsel %vm1837, 1, 0
    %v1966 = vsel %vm1838, 1, 0
    %v1967 = vsel %vm1839, 1, 0
    %v1968 = vsel %vm1840, 1, 0
    %v1969 = vsel %vm1841, 1, 0
    %v1970 = vsel %vm1842, 1, 0
    %v1971 = vsel %vm1843, 1, 0
    %v1972 = vsel %vm1844, 1, 0
    %v1973 = vsel %vm1845, 1, 0
    %v1974 = vsel %vm1846, 1, 0
    %v1975 = vsel %vm1847, 1, 0
    %v1976 = vsel %vm1848, 1, 0
    %v1977 = vsel %vm1849, 1, 0
    %v1978 = vsel %vm1850, 1, 0
    %v1979 = vsel %vm1851, 1, 0
    %v1980 = vsel %vm1852, 1, 0
    %v1981 = vsel %vm1853, 1, 0
    %v1982 = vsel %vm1854, 1, 0
    %v1983 = vsel %vm1855, 1, 0
    %v1984 = vsel %vm1856, 1, 0
    %v1985 = vsel %vm1857, 1, 0
    %v1986 = vsel %vm1858, 1, 0
    %v1987 = vsel %vm1859, 1, 0
    %v1988 = vsel %vm1860, 1, 0
    %v1989 = vsel %vm1861, 1, 0
    %v1990 = vsel %vm1862, 1, 0
    %v1991 = vsel %vm1863, 1, 0
    %v1992 = vsel %vm1864, 1, 0
    %v1993 = vsel %vm1865, 1, 0
    %v1994 = vsel %vm1866, 1, 0
    %v1995 = vsel %vm1867, 1, 0
    %v1996 = vsel %vm1868, 1, 0
    %v1997 = vsel %vm1869, 1, 0
    %v1998 = vsel %vm1870, 1, 0
    %v1999 = vsel %vm1871, 1, 0
    %v2000 = vsel %vm1872, 1, 0
    %v2001 = vsel %vm1873, 1, 0
    %v2002 = vsel %vm1874, 1, 0
    %v2003 = vsel %vm1875, 1, 0
    %v2004 = vsel %vm1876, 1, 0
    %v2005 = vsel %vm1877, 1, 0
    %v2006 = vsel %vm1878, 1, 0
    %v2007 = vsel %vm1879, 1, 0
    %v2008 = vsel %vm1880, 1, 0
    %v2009 = vsel %vm1881, 1, 0
    %v2010 = vsel %vm1882, 1, 0
    %v2011 = vsel %vm1883, 1, 0
    %v2012 = vsel %vm1884, 1, 0
    %v2013 = vsel %vm1885, 1, 0
    %v2014 = vsel %vm1886, 1, 0
    %v2015 = vsel %vm1887, 1, 0
    %v2016 = vsel %vm1888, 1, 0
    %v2017 = vsel %vm1889, 1, 0
    %v2018 = vsel %vm1890, 1, 0
    %v2019 = vsel %vm1891, 1, 0
    %v2020 = vsel %vm1892, 1, 0
    %v2021 = vsel %vm1893, 1, 0
    %v2022 = vsel %vm1894, 1, 0
    %v2023 = vsel %vm1895, 1, 0
    %v2024 = vsel %vm1896, 1, 0
    %v2025 = vsel %vm1897, 1, 0
    %v2026 = vsel %vm1898, 1, 0
    %v2027 = vsel %vm1899, 1, 0
    %v2028 = vsel %vm1900, 1, 0
    %v2029 = vsel %vm1901, 1, 0
    %v2030 = vsel %vm1902, 1, 0
    %v2031 = vsel %vm1903, 1, 0
    %v2032 = vsel %vm1904, 1, 0
    %v2033 = vsel %vm1905, 1, 0
    %v2034 = vsel %vm1906, 1, 0
    %v2035 = vsel %vm1907, 1, 0
    %v2036 = vsel %vm1908, 1, 0
    %v2037 = vsel %vm1909, 1, 0
    %v2038 = vsel %vm1910, 1, 0
    %v2039 = vsel %vm1911, 1, 0
    %v2040 = vsel %vm1912, 1, 0
    %v2041 = vsel %vm1913, 1, 0
    %v2042 = vsel %vm1914, 1, 0
    %v2043 = vsel %vm1915, 1, 0
    %v2044 = vsel %vm1916, 1, 0
    %v2045 = vsel %vm1917, 1, 0
    %v2046 = vsel %vm1918, 1, 0
    %v2047 = vsel %vm1919, 1, 0
    %v2048 = vsel %vm1920, 1, 0
    %v2049 = vsel %vm1921, 1, 0
    %v2050 = vsel %vm1922, 1, 0
    %v2051 = vsel %vm1923, 1, 0
    %v2052 = vsel %vm1924, 1, 0
    %v2053 = vsel %vm1925, 1, 0
    %v2054 = vsel %vm1926, 1, 0
    %v2055 = vsel %vm1927, 1, 0
    %v2056 = vsel %vm1928, 1, 0
    %v2057 = vsel %vm1929, 1, 0
    %v2058 = vsel %vm1930, 1, 0
    %v2059 = vsel %vm1931, 1, 0
    %v2060 = vsel %vm1932, 1, 0
    %v2061 = vsel %vm1933, 1, 0
    %v2062 = vsel %vm1934, 1, 0
    %v2063 = vsel %vm1935, 1, 0
    %v2064 = vsel %vm1936, 1, 0
    %v2065 = vsel %vm1937, 1, 0
    %v2066 = vsel %vm1938, 1, 0
    %v2067 = vsel %vm1939, 1, 0
    %v2068 = vsel %vm1940, 1, 0
    %v2069 = vsel %vm1941, 1, 0
    %v2070 = vsel %vm1942, 1, 0
    %v2071 = vsel %vm1943, 1, 0
    %v2072 = vsel %vm1944, 1, 0
    %v2073 = vcvt.s32.f32 %v1945
    %v2074 = vcvt.s32.f32 %v1946
    %v2075 = vcvt.s32.f32 %v1947
    %v2076 = vcvt.s32.f32 %v1948
    %v2077 = vcvt.s32.f32 %v1949
    %v2078 = vcvt.s32.f32 %v1950
    %v2079 = vcvt.s32.f32 %v1951
    %v2080 = vcvt.s32.f32 %v1952
    %v2081 = vcvt.s32.f32 %v1953
    %v2082 = vcvt.s32.f32 %v1954
    %v2083 = vcvt.s32.f32 %v1955
    %v2084 = vcvt.s32.f32 %v1956
    %v2085 = vcvt.s32.f32 %v1957
    %v2086 = vcvt.s32.f32 %v1958
    %v2087 = vcvt.s32.f32 %v1959
    %v2088 = vcvt.s32.f32 %v1960
    %v2089 = vcvt.s32.f32 %v1961
    %v2090 = vcvt.s32.f32 %v1962
    %v2091 = vcvt.s32.f32 %v1963
    %v2092 = vcvt.s32.f32 %v1964
    %v2093 = vcvt.s32.f32 %v1965
    %v2094 = vcvt.s32.f32 %v1966
    %v2095 = vcvt.s32.f32 %v1967
    %v2096 = vcvt.s32.f32 %v1968
    %v2097 = vcvt.s32.f32 %v1969
    %v2098 = vcvt.s32.f32 %v1970
    %v2099 = vcvt.s32.f32 %v1971
    %v2100 = vcvt.s32.f32 %v1972
    %v2101 = vcvt.s32.f32 %v1973
    %v2102 = vcvt.s32.f32 %v1974
    %v2103 = vcvt.s32.f32 %v1975
    %v2104 = vcvt.s32.f32 %v1976
    %v2105 = vcvt.s32.f32 %v1977
    %v2106 = vcvt.s32.f32 %v1978
    %v2107 = vcvt.s32.f32 %v1979
    %v2108 = vcvt.s32.f32 %v1980
    %v2109 = vcvt.s32.f32 %v1981
    %v2110 = vcvt.s32.f32 %v1982
    %v2111 = vcvt.s32.f32 %v1983
    %v2112 = vcvt.s32.f32 %v1984
    %v2113 = vcvt.s32.f32 %v1985
    %v2114 = vcvt.s32.f32 %v1986
    %v2115 = vcvt.s32.f32 %v1987
    %v2116 = vcvt.s32.f32 %v1988
    %v2117 = vcvt.s32.f32 %v1989
    %v2118 = vcvt.s32.f32 %v1990
    %v2119 = vcvt.s32.f32 %v1991
    %v2120 = vcvt.s32.f32 %v1992
    %v2121 = vcvt.s32.f32 %v1993
    %v2122 = vcvt.s32.f32 %v1994
    %v2123 = vcvt.s32.f32 %v1995
    %v2124 = vcvt.s32.f32 %v1996
    %v2125 = vcvt.s32.f32 %v1997
    %v2126 = vcvt.s32.f32 %v1998
    %v2127 = vcvt.s32.f32 %v1999
    %v2128 = vcvt.s32.f32 %v2000
    %v2129 = vcvt.s32.f32 %v2001
    %v2130 = vcvt.s32.f32 %v2002
    %v2131 = vcvt.s32.f32 %v2003
    %v2132 = vcvt.s32.f32 %v2004
    %v2133 = vcvt.s32.f32 %v2005
    %v2134 = vcvt.s32.f32 %v2006
    %v2135 = vcvt.s32.f32 %v2007
    %v2136 = vcvt.s32.f32 %v2008
    %v2137 = vcvt.s32.f32 %v2009
    %v2138 = vcvt.s32.f32 %v2010
    %v2139 = vcvt.s32.f32 %v2011
    %v2140 = vcvt.s32.f32 %v2012
    %v2141 = vcvt.s32.f32 %v2013
    %v2142 = vcvt.s32.f32 %v2014
    %v2143 = vcvt.s32.f32 %v2015
    %v2144 = vcvt.s32.f32 %v2016
    %v2145 = vcvt.s32.f32 %v2017
    %v2146 = vcvt.s32.f32 %v2018
    %v2147 = vcvt.s32.f32 %v2019
    %v2148 = vcvt.s32.f32 %v2020
    %v2149 = vcvt.s32.f32 %v2021
    %v2150 = vcvt.s32.f32 %v2022
    %v2151 = vcvt.s32.f32 %v2023
    %v2152 = vcvt.s32.f32 %v2024
    %v2153 = vcvt.s32.f32 %v2025
    %v2154 = vcvt.s32.f32 %v2026
    %v2155 = vcvt.s32.f32 %v2027
    %v2156 = vcvt.s32.f32 %v2028
    %v2157 = vcvt.s32.f32 %v2029
    %v2158 = vcvt.s32.f32 %v2030
    %v2159 = vcvt.s32.f32 %v2031
    %v2160 = vcvt.s32.f32 %v2032
    %v2161 = vcvt.s32.f32 %v2033
    %v2162 = vcvt.s32.f32 %v2034
    %v2163 = vcvt.s32.f32 %v2035
    %v2164 = vcvt.s32.f32 %v2036
    %v2165 = vcvt.s32.f32 %v2037
    %v2166 = vcvt.s32.f32 %v2038
    %v2167 = vcvt.s32.f32 %v2039
    %v2168 = vcvt.s32.f32 %v2040
    %v2169 = vcvt.s32.f32 %v2041
    %v2170 = vcvt.s32.f32 %v2042
    %v2171 = vcvt.s32.f32 %v2043
    %v2172 = vcvt.s32.f32 %v2044
    %v2173 = vcvt.s32.f32 %v2045
    %v2174 = vcvt.s32.f32 %v2046
    %v2175 = vcvt.s32.f32 %v2047
    %v2176 = vcvt.s32.f32 %v2048
    %v2177 = vcvt.s32.f32 %v2049
    %v2178 = vcvt.s32.f32 %v2050
    %v2179 = vcvt.s32.f32 %v2051
    %v2180 = vcvt.s32.f32 %v2052
    %v2181 = vcvt.s32.f32 %v2053
    %v2182 = vcvt.s32.f32 %v2054
    %v2183 = vcvt.s32.f32 %v2055
    %v2184 = vcvt.s32.f32 %v2056
    %v2185 = vcvt.s32.f32 %v2057
    %v2186 = vcvt.s32.f32 %v2058
    %v2187 = vcvt.s32.f32 %v2059
    %v2188 = vcvt.s32.f32 %v2060
    %v2189 = vcvt.s32.f32 %v2061
    %v2190 = vcvt.s32.f32 %v2062
    %v2191 = vcvt.s32.f32 %v2063
    %v2192 = vcvt.s32.f32 %v2064
    %v2193 = vcvt.s32.f32 %v2065
    %v2194 = vcvt.s32.f32 %v2066
    %v2195 = vcvt.s32.f32 %v2067
    %v2196 = vcvt.s32.f32 %v2068
    %v2197 = vcvt.s32.f32 %v2069
    %v2198 = vcvt.s32.f32 %v2070
    %v2199 = vcvt.s32.f32 %v2071
    %v2200 = vcvt.s32.f32 %v2072
    %2201 = vmatprep.subr.mxu0 0.0
    %2202 = vmatpush1.msra.mxu0 %v585
    %2203 = vmatprep.subr.mxu0 0.0
    %2204 = vmatpush1.msra.mxu0 %v590
    %2205 = vmatprep.subr.mxu0 0.0
    %2206 = vmatpush1.msra.mxu0 %v595
    %2207 = vmatprep.subr.mxu0 0.0
    %2208 = vmatpush1.msra.mxu0 %v600
    %2209 = vmatprep.subr.mxu0 0.0
    %2210 = vmatpush1.msra.mxu0 %v605
    %2211 = vmatprep.subr.mxu0 0.0
    %2212 = vmatpush1.msra.mxu0 %v610
    %2213 = vmatprep.subr.mxu0 0.0
    %2214 = vmatpush1.msra.mxu0 %v615
    %2215 = vmatprep.subr.mxu0 0.0
    %2216 = vmatpush1.msra.mxu0 %v620
    %2217 = vmatprep.subr.mxu0 0.0
    %2218 = vmatpush1.msra.mxu0 %v625
    %2219 = vmatprep.subr.mxu0 0.0
    %2220 = vmatpush1.msra.mxu0 %v630
    %2221 = vmatprep.subr.mxu0 0.0
    %2222 = vmatpush1.msra.mxu0 %v635
    %2223 = vmatprep.subr.mxu0 0.0
    %2224 = vmatpush1.msra.mxu0 %v640
    %2225 = vmatprep.subr.mxu0 0.0
    %2226 = vmatpush1.msra.mxu0 %v645
    %2227 = vmatprep.subr.mxu0 0.0
    %2228 = vmatpush1.msra.mxu0 %v650
    %2229 = vmatprep.subr.mxu0 0.0
    %2230 = vmatpush1.msra.mxu0 %v655
    %2231 = vmatprep.subr.mxu0 0.0
    %2232 = vmatpush1.msra.mxu0 %v660
    %2233 = vmatprep.subr.mxu0 0.0
    %2234 = vmatpush1.msra.mxu0 0.0
    %2235 = vmatprep.subr.mxu0 0.0
    %2236 = vmatpush1.msra.mxu0 0.0
    %2237 = vmatprep.subr.mxu0 0.0
    %2238 = vmatpush1.msra.mxu0 0.0
    %2239 = vmatprep.subr.mxu0 0.0
    %2240 = vmatpush1.msra.mxu0 0.0
    %2241 = vmatprep.subr.mxu0 0.0
    %2242 = vmatpush1.msra.mxu0 0.0
    %2243 = vmatprep.subr.mxu0 0.0
    %2244 = vmatpush1.msra.mxu0 0.0
    %2245 = vmatprep.subr.mxu0 0.0
    %2246 = vmatpush1.msra.mxu0 0.0
    %2247 = vmatprep.subr.mxu0 0.0
    %2248 = vmatpush1.msra.mxu0 0.0
    %2249 = vmatprep.subr.mxu0 0.0
    %2250 = vmatpush1.msra.mxu0 0.0
    %2251 = vmatprep.subr.mxu0 0.0
    %2252 = vmatpush1.msra.mxu0 0.0
    %2253 = vmatprep.subr.mxu0 0.0
    %2254 = vmatpush1.msra.mxu0 0.0
    %2255 = vmatprep.subr.mxu0 0.0
    %2256 = vmatpush1.msra.mxu0 0.0
    %2257 = vmatprep.subr.mxu0 0.0
    %2258 = vmatpush1.msra.mxu0 0.0
    %2259 = vmatprep.subr.mxu0 0.0
    %2260 = vmatpush1.msra.mxu0 0.0
    %2261 = vmatprep.subr.mxu0 0.0
    %2262 = vmatpush1.msra.mxu0 0.0
    %2263 = vmatprep.subr.mxu0 0.0
    %2264 = vmatpush1.msra.mxu0 0.0
    %2265 = vmatprep.mubr.f32.mxu0 0.0
    %2266 = vmatmul.mubr.f32.gmra.mrb[0].mxu0 %v2073
    %v2267 = vpop.f32.mrb[0].mxu0
    %v2268 = vadd.f32 0.0, %v2267
    %v2269 = vpop.f32.mrb[0].mxu0
    %2270 = vmatprep.mubr.f32.mxu0 0.0
    %2271 = vmatmul.mubr.f32.gmra.mrb[0].mxu0 %v2074
    %v2272 = vpop.f32.mrb[0].mxu0
    %v2273 = vadd.f32 0.0, %v2272
    %v2274 = vpop.f32.mrb[0].mxu0
    %2275 = vmatprep.mubr.f32.mxu0 0.0
    %2276 = vmatmul.mubr.f32.gmra.mrb[0].mxu0 %v2075
    %v2277 = vpop.f32.mrb[0].mxu0
    %v2278 = vadd.f32 0.0, %v2277
    %v2279 = vpop.f32.mrb[0].mxu0
    %2280 = vmatprep.mubr.f32.mxu0 0.0
    %2281 = vmatmul.mubr.f32.gmra.mrb[0].mxu0 %v2076
    %v2282 = vpop.f32.mrb[0].mxu0
    %v2283 = vadd.f32 0.0, %v2282
    %v2284 = vpop.f32.mrb[0].mxu0
    %2285 = vmatprep.mubr.f32.mxu0 0.0
    %2286 = vmatmul.mubr.f32.gmra.mrb[0].mxu0 %v2077
    %v2287 = vpop.f32.mrb[0].mxu0
    %v2288 = vadd.f32 0.0, %v2287
    %v2289 = vpop.f32.mrb[0].mxu0
    %2290 = vmatprep.mubr.f32.mxu0 0.0
    %2291 = vmatmul.mubr.f32.gmra.mrb[0].mxu0 %v2078
    %v2292 = vpop.f32.mrb[0].mxu0
    %v2293 = vadd.f32 0.0, %v2292
    %v2294 = vpop.f32.mrb[0].mxu0
    %2295 = vmatprep.mubr.f32.mxu0 0.0
    %2296 = vmatmul.mubr.f32.gmra.mrb[0].mxu0 %v2079
    %v2297 = vpop.f32.mrb[0].mxu0
    %v2298 = vadd.f32 0.0, %v2297
    %v2299 = vpop.f32.mrb[0].mxu0
    %2300 = vmatprep.mubr.f32.mxu0 0.0
    %2301 = vmatmul.mubr.f32.gmra.mrb[0].mxu0 %v2080
    %v2302 = vpop.f32.mrb[0].mxu0
    %v2303 = vadd.f32 0.0, %v2302
    %v2304 = vpop.f32.mrb[0].mxu0
    %2305 = vmatprep.mubr.f32.mxu0 0.0
    %2306 = vmatmul.mubr.f32.gmra.mrb[0].mxu0 %v2081
    %v2307 = vpop.f32.mrb[0].mxu0
    %v2308 = vadd.f32 0.0, %v2307
    %v2309 = vpop.f32.mrb[0].mxu0
    %2310 = vmatprep.mubr.f32.mxu0 0.0
    %2311 = vmatmul.mubr.f32.gmra.mrb[0].mxu0 %v2082
    %v2312 = vpop.f32.mrb[0].mxu0
    %v2313 = vadd.f32 0.0, %v2312
    %v2314 = vpop.f32.mrb[0].mxu0
    %2315 = vmatprep.mubr.f32.mxu0 0.0
    %2316 = vmatmul.mubr.f32.gmra.mrb[0].mxu0 %v2083
    %v2317 = vpop.f32.mrb[0].mxu0
    %v2318 = vadd.f32 0.0, %v2317
    %v2319 = vpop.f32.mrb[0].mxu0
    %2320 = vmatprep.mubr.f32.mxu0 0.0
    %2321 = vmatmul.mubr.f32.gmra.mrb[0].mxu0 %v2084
    %v2322 = vpop.f32.mrb[0].mxu0
    %v2323 = vadd.f32 0.0, %v2322
    %v2324 = vpop.f32.mrb[0].mxu0
    %2325 = vmatprep.mubr.f32.mxu0 0.0
    %2326 = vmatmul.mubr.f32.gmra.mrb[0].mxu0 %v2085
    %v2327 = vpop.f32.mrb[0].mxu0
    %v2328 = vadd.f32 0.0, %v2327
    %v2329 = vpop.f32.mrb[0].mxu0
    %2330 = vmatprep.mubr.f32.mxu0 0.0
    %2331 = vmatmul.mubr.f32.gmra.mrb[0].mxu0 %v2086
    %v2332 = vpop.f32.mrb[0].mxu0
    %v2333 = vadd.f32 0.0, %v2332
    %v2334 = vpop.f32.mrb[0].mxu0
    %2335 = vmatprep.mubr.f32.mxu0 0.0
    %2336 = vmatmul.mubr.f32.gmra.mrb[0].mxu0 %v2087
    %v2337 = vpop.f32.mrb[0].mxu0
    %v2338 = vadd.f32 0.0, %v2337
    %v2339 = vpop.f32.mrb[0].mxu0
    %2340 = vmatprep.mubr.f32.mxu0 0.0
    %2341 = vmatmul.mubr.f32.gmra.mrb[0].mxu0 %v2088
    %v2342 = vpop.f32.mrb[0].mxu0
    %v2343 = vadd.f32 0.0, %v2342
    %v2344 = vpop.f32.mrb[0].mxu0
    %2345 = vmatprep.mubr.f32.mxu0 0.0
    %2346 = vmatmul.mubr.f32.gmra.mrb[0].mxu0 %v2089
    %v2347 = vpop.f32.mrb[0].mxu0
    %v2348 = vadd.f32 0.0, %v2347
    %v2349 = vpop.f32.mrb[0].mxu0
    %2350 = vmatprep.mubr.f32.mxu0 0.0
    %2351 = vmatmul.mubr.f32.gmra.mrb[0].mxu0 %v2090
    %v2352 = vpop.f32.mrb[0].mxu0
    %v2353 = vadd.f32 0.0, %v2352
    %v2354 = vpop.f32.mrb[0].mxu0
    %2355 = vmatprep.mubr.f32.mxu0 0.0
    %2356 = vmatmul.mubr.f32.gmra.mrb[0].mxu0 %v2091
    %v2357 = vpop.f32.mrb[0].mxu0
    %v2358 = vadd.f32 0.0, %v2357
    %v2359 = vpop.f32.mrb[0].mxu0
    %2360 = vmatprep.mubr.f32.mxu0 0.0
    %2361 = vmatmul.mubr.f32.gmra.mrb[0].mxu0 %v2092
    %v2362 = vpop.f32.mrb[0].mxu0
    %v2363 = vadd.f32 0.0, %v2362
    %v2364 = vpop.f32.mrb[0].mxu0
    %2365 = vmatprep.mubr.f32.mxu0 0.0
    %2366 = vmatmul.mubr.f32.gmra.mrb[0].mxu0 %v2093
    %v2367 = vpop.f32.mrb[0].mxu0
    %v2368 = vadd.f32 0.0, %v2367
    %v2369 = vpop.f32.mrb[0].mxu0
    %2370 = vmatprep.mubr.f32.mxu0 0.0
    %2371 = vmatmul.mubr.f32.gmra.mrb[0].mxu0 %v2094
    %v2372 = vpop.f32.mrb[0].mxu0
    %v2373 = vadd.f32 0.0, %v2372
    %v2374 = vpop.f32.mrb[0].mxu0
    %2375 = vmatprep.mubr.f32.mxu0 0.0
    %2376 = vmatmul.mubr.f32.gmra.mrb[0].mxu0 %v2095
    %v2377 = vpop.f32.mrb[0].mxu0
    %v2378 = vadd.f32 0.0, %v2377
    %v2379 = vpop.f32.mrb[0].mxu0
    %2380 = vmatprep.mubr.f32.mxu0 0.0
    %2381 = vmatmul.mubr.f32.gmra.mrb[0].mxu0 %v2096
    %v2382 = vpop.f32.mrb[0].mxu0
    %v2383 = vadd.f32 0.0, %v2382
    %v2384 = vpop.f32.mrb[0].mxu0
    %2385 = vmatprep.mubr.f32.mxu0 0.0
    %2386 = vmatmul.mubr.f32.gmra.mrb[0].mxu0 %v2097
    %v2387 = vpop.f32.mrb[0].mxu0
    %v2388 = vadd.f32 0.0, %v2387
    %v2389 = vpop.f32.mrb[0].mxu0
    %2390 = vmatprep.mubr.f32.mxu0 0.0
    %2391 = vmatmul.mubr.f32.gmra.mrb[0].mxu0 %v2098
    %v2392 = vpop.f32.mrb[0].mxu0
    %v2393 = vadd.f32 0.0, %v2392
    %v2394 = vpop.f32.mrb[0].mxu0
    %2395 = vmatprep.mubr.f32.mxu0 0.0
    %2396 = vmatmul.mubr.f32.gmra.mrb[0].mxu0 %v2099
    %v2397 = vpop.f32.mrb[0].mxu0
    %v2398 = vadd.f32 0.0, %v2397
    %v2399 = vpop.f32.mrb[0].mxu0
    %2400 = vmatprep.mubr.f32.mxu0 0.0
    %2401 = vmatmul.mubr.f32.gmra.mrb[0].mxu0 %v2100
    %v2402 = vpop.f32.mrb[0].mxu0
    %v2403 = vadd.f32 0.0, %v2402
    %v2404 = vpop.f32.mrb[0].mxu0
    %2405 = vmatprep.mubr.f32.mxu0 0.0
    %2406 = vmatmul.mubr.f32.gmra.mrb[0].mxu0 %v2101
    %v2407 = vpop.f32.mrb[0].mxu0
    %v2408 = vadd.f32 0.0, %v2407
    %v2409 = vpop.f32.mrb[0].mxu0
    %2410 = vmatprep.mubr.f32.mxu0 0.0
    %2411 = vmatmul.mubr.f32.gmra.mrb[0].mxu0 %v2102
    %v2412 = vpop.f32.mrb[0].mxu0
    %v2413 = vadd.f32 0.0, %v2412
    %v2414 = vpop.f32.mrb[0].mxu0
    %2415 = vmatprep.mubr.f32.mxu0 0.0
    %2416 = vmatmul.mubr.f32.gmra.mrb[0].mxu0 %v2103
    %v2417 = vpop.f32.mrb[0].mxu0
    %v2418 = vadd.f32 0.0, %v2417
    %v2419 = vpop.f32.mrb[0].mxu0
    %2420 = vmatprep.mubr.f32.mxu0 0.0
    %2421 = vmatmul.mubr.f32.gmra.mrb[0].mxu0 %v2104
    %v2422 = vpop.f32.mrb[0].mxu0
    %v2423 = vadd.f32 0.0, %v2422
    %v2424 = vpop.f32.mrb[0].mxu0
    %2425 = vmatprep.mubr.f32.mxu0 0.0
    %2426 = vmatmul.mubr.f32.gmra.mrb[0].mxu0 %v2105
    %v2427 = vpop.f32.mrb[0].mxu0
    %v2428 = vadd.f32 0.0, %v2427
    %v2429 = vpop.f32.mrb[0].mxu0
    %2430 = vmatprep.mubr.f32.mxu0 0.0
    %2431 = vmatmul.mubr.f32.gmra.mrb[0].mxu0 %v2106
    %v2432 = vpop.f32.mrb[0].mxu0
    %v2433 = vadd.f32 0.0, %v2432
    %v2434 = vpop.f32.mrb[0].mxu0
    %2435 = vmatprep.mubr.f32.mxu0 0.0
    %2436 = vmatmul.mubr.f32.gmra.mrb[0].mxu0 %v2107
    %v2437 = vpop.f32.mrb[0].mxu0
    %v2438 = vadd.f32 0.0, %v2437
    %v2439 = vpop.f32.mrb[0].mxu0
    %2440 = vmatprep.mubr.f32.mxu0 0.0
    %2441 = vmatmul.mubr.f32.gmra.mrb[0].mxu0 %v2108
    %v2442 = vpop.f32.mrb[0].mxu0
    %v2443 = vadd.f32 0.0, %v2442
    %v2444 = vpop.f32.mrb[0].mxu0
    %2445 = vmatprep.mubr.f32.mxu0 0.0
    %2446 = vmatmul.mubr.f32.gmra.mrb[0].mxu0 %v2109
    %v2447 = vpop.f32.mrb[0].mxu0
    %v2448 = vadd.f32 0.0, %v2447
    %v2449 = vpop.f32.mrb[0].mxu0
    %2450 = vmatprep.mubr.f32.mxu0 0.0
    %2451 = vmatmul.mubr.f32.gmra.mrb[0].mxu0 %v2110
    %v2452 = vpop.f32.mrb[0].mxu0
    %v2453 = vadd.f32 0.0, %v2452
    %v2454 = vpop.f32.mrb[0].mxu0
    %2455 = vmatprep.mubr.f32.mxu0 0.0
    %2456 = vmatmul.mubr.f32.gmra.mrb[0].mxu0 %v2111
    %v2457 = vpop.f32.mrb[0].mxu0
    %v2458 = vadd.f32 0.0, %v2457
    %v2459 = vpop.f32.mrb[0].mxu0
    %2460 = vmatprep.mubr.f32.mxu0 0.0
    %2461 = vmatmul.mubr.f32.gmra.mrb[0].mxu0 %v2112
    %v2462 = vpop.f32.mrb[0].mxu0
    %v2463 = vadd.f32 0.0, %v2462
    %v2464 = vpop.f32.mrb[0].mxu0
    %2465 = vmatprep.mubr.f32.mxu0 0.0
    %2466 = vmatmul.mubr.f32.gmra.mrb[0].mxu0 %v2113
    %v2467 = vpop.f32.mrb[0].mxu0
    %v2468 = vadd.f32 0.0, %v2467
    %v2469 = vpop.f32.mrb[0].mxu0
    %2470 = vmatprep.mubr.f32.mxu0 0.0
    %2471 = vmatmul.mubr.f32.gmra.mrb[0].mxu0 %v2114
    %v2472 = vpop.f32.mrb[0].mxu0
    %v2473 = vadd.f32 0.0, %v2472
    %v2474 = vpop.f32.mrb[0].mxu0
    %2475 = vmatprep.mubr.f32.mxu0 0.0
    %2476 = vmatmul.mubr.f32.gmra.mrb[0].mxu0 %v2115
    %v2477 = vpop.f32.mrb[0].mxu0
    %v2478 = vadd.f32 0.0, %v2477
    %v2479 = vpop.f32.mrb[0].mxu0
    %2480 = vmatprep.mubr.f32.mxu0 0.0
    %2481 = vmatmul.mubr.f32.gmra.mrb[0].mxu0 %v2116
    %v2482 = vpop.f32.mrb[0].mxu0
    %v2483 = vadd.f32 0.0, %v2482
    %v2484 = vpop.f32.mrb[0].mxu0
    %2485 = vmatprep.mubr.f32.mxu0 0.0
    %2486 = vmatmul.mubr.f32.gmra.mrb[0].mxu0 %v2117
    %v2487 = vpop.f32.mrb[0].mxu0
    %v2488 = vadd.f32 0.0, %v2487
    %v2489 = vpop.f32.mrb[0].mxu0
    %2490 = vmatprep.mubr.f32.mxu0 0.0
    %2491 = vmatmul.mubr.f32.gmra.mrb[0].mxu0 %v2118
    %v2492 = vpop.f32.mrb[0].mxu0
    %v2493 = vadd.f32 0.0, %v2492
    %v2494 = vpop.f32.mrb[0].mxu0
    %2495 = vmatprep.mubr.f32.mxu0 0.0
    %2496 = vmatmul.mubr.f32.gmra.mrb[0].mxu0 %v2119
    %v2497 = vpop.f32.mrb[0].mxu0
    %v2498 = vadd.f32 0.0, %v2497
    %v2499 = vpop.f32.mrb[0].mxu0
    %2500 = vmatprep.mubr.f32.mxu0 0.0
    %2501 = vmatmul.mubr.f32.gmra.mrb[0].mxu0 %v2120
    %v2502 = vpop.f32.mrb[0].mxu0
    %v2503 = vadd.f32 0.0, %v2502
    %v2504 = vpop.f32.mrb[0].mxu0
    %2505 = vmatprep.mubr.f32.mxu0 0.0
    %2506 = vmatmul.mubr.f32.gmra.mrb[0].mxu0 %v2121
    %v2507 = vpop.f32.mrb[0].mxu0
    %v2508 = vadd.f32 0.0, %v2507
    %v2509 = vpop.f32.mrb[0].mxu0
    %2510 = vmatprep.mubr.f32.mxu0 0.0
    %2511 = vmatmul.mubr.f32.gmra.mrb[0].mxu0 %v2122
    %v2512 = vpop.f32.mrb[0].mxu0
    %v2513 = vadd.f32 0.0, %v2512
    %v2514 = vpop.f32.mrb[0].mxu0
    %2515 = vmatprep.mubr.f32.mxu0 0.0
    %2516 = vmatmul.mubr.f32.gmra.mrb[0].mxu0 %v2123
    %v2517 = vpop.f32.mrb[0].mxu0
    %v2518 = vadd.f32 0.0, %v2517
    %v2519 = vpop.f32.mrb[0].mxu0
    %2520 = vmatprep.mubr.f32.mxu0 0.0
    %2521 = vmatmul.mubr.f32.gmra.mrb[0].mxu0 %v2124
    %v2522 = vpop.f32.mrb[0].mxu0
    %v2523 = vadd.f32 0.0, %v2522
    %v2524 = vpop.f32.mrb[0].mxu0
    %2525 = vmatprep.mubr.f32.mxu0 0.0
    %2526 = vmatmul.mubr.f32.gmra.mrb[0].mxu0 %v2125
    %v2527 = vpop.f32.mrb[0].mxu0
    %v2528 = vadd.f32 0.0, %v2527
    %v2529 = vpop.f32.mrb[0].mxu0
    %2530 = vmatprep.mubr.f32.mxu0 0.0
    %2531 = vmatmul.mubr.f32.gmra.mrb[0].mxu0 %v2126
    %v2532 = vpop.f32.mrb[0].mxu0
    %v2533 = vadd.f32 0.0, %v2532
    %v2534 = vpop.f32.mrb[0].mxu0
    %2535 = vmatprep.mubr.f32.mxu0 0.0
    %2536 = vmatmul.mubr.f32.gmra.mrb[0].mxu0 %v2127
    %v2537 = vpop.f32.mrb[0].mxu0
    %v2538 = vadd.f32 0.0, %v2537
    %v2539 = vpop.f32.mrb[0].mxu0
    %2540 = vmatprep.mubr.f32.mxu0 0.0
    %2541 = vmatmul.mubr.f32.gmra.mrb[0].mxu0 %v2128
    %v2542 = vpop.f32.mrb[0].mxu0
    %v2543 = vadd.f32 0.0, %v2542
    %v2544 = vpop.f32.mrb[0].mxu0
    %2545 = vmatprep.mubr.f32.mxu0 0.0
    %2546 = vmatmul.mubr.f32.gmra.mrb[0].mxu0 %v2129
    %v2547 = vpop.f32.mrb[0].mxu0
    %v2548 = vadd.f32 0.0, %v2547
    %v2549 = vpop.f32.mrb[0].mxu0
    %2550 = vmatprep.mubr.f32.mxu0 0.0
    %2551 = vmatmul.mubr.f32.gmra.mrb[0].mxu0 %v2130
    %v2552 = vpop.f32.mrb[0].mxu0
    %v2553 = vadd.f32 0.0, %v2552
    %v2554 = vpop.f32.mrb[0].mxu0
    %2555 = vmatprep.mubr.f32.mxu0 0.0
    %2556 = vmatmul.mubr.f32.gmra.mrb[0].mxu0 %v2131
    %v2557 = vpop.f32.mrb[0].mxu0
    %v2558 = vadd.f32 0.0, %v2557
    %v2559 = vpop.f32.mrb[0].mxu0
    %2560 = vmatprep.mubr.f32.mxu0 0.0
    %2561 = vmatmul.mubr.f32.gmra.mrb[0].mxu0 %v2132
    %v2562 = vpop.f32.mrb[0].mxu0
    %v2563 = vadd.f32 0.0, %v2562
    %v2564 = vpop.f32.mrb[0].mxu0
    %2565 = vmatprep.mubr.f32.mxu0 0.0
    %2566 = vmatmul.mubr.f32.gmra.mrb[0].mxu0 %v2133
    %v2567 = vpop.f32.mrb[0].mxu0
    %v2568 = vadd.f32 0.0, %v2567
    %v2569 = vpop.f32.mrb[0].mxu0
    %2570 = vmatprep.mubr.f32.mxu0 0.0
    %2571 = vmatmul.mubr.f32.gmra.mrb[0].mxu0 %v2134
    %v2572 = vpop.f32.mrb[0].mxu0
    %v2573 = vadd.f32 0.0, %v2572
    %v2574 = vpop.f32.mrb[0].mxu0
    %2575 = vmatprep.mubr.f32.mxu0 0.0
    %2576 = vmatmul.mubr.f32.gmra.mrb[0].mxu0 %v2135
    %v2577 = vpop.f32.mrb[0].mxu0
    %v2578 = vadd.f32 0.0, %v2577
    %v2579 = vpop.f32.mrb[0].mxu0
    %2580 = vmatprep.mubr.f32.mxu0 0.0
    %2581 = vmatmul.mubr.f32.gmra.mrb[0].mxu0 %v2136
    %v2582 = vpop.f32.mrb[0].mxu0
    %v2583 = vadd.f32 0.0, %v2582
    %v2584 = vpop.f32.mrb[0].mxu0
    %2585 = vmatprep.mubr.f32.mxu0 0.0
    %2586 = vmatmul.mubr.f32.gmra.mrb[0].mxu0 %v2137
    %v2587 = vpop.f32.mrb[0].mxu0
    %v2588 = vadd.f32 0.0, %v2587
    %v2589 = vpop.f32.mrb[0].mxu0
    %2590 = vmatprep.mubr.f32.mxu0 0.0
    %2591 = vmatmul.mubr.f32.gmra.mrb[0].mxu0 %v2138
    %v2592 = vpop.f32.mrb[0].mxu0
    %v2593 = vadd.f32 0.0, %v2592
    %v2594 = vpop.f32.mrb[0].mxu0
    %2595 = vmatprep.mubr.f32.mxu0 0.0
    %2596 = vmatmul.mubr.f32.gmra.mrb[0].mxu0 %v2139
    %v2597 = vpop.f32.mrb[0].mxu0
    %v2598 = vadd.f32 0.0, %v2597
    %v2599 = vpop.f32.mrb[0].mxu0
    %2600 = vmatprep.mubr.f32.mxu0 0.0
    %2601 = vmatmul.mubr.f32.gmra.mrb[0].mxu0 %v2140
    %v2602 = vpop.f32.mrb[0].mxu0
    %v2603 = vadd.f32 0.0, %v2602
    %v2604 = vpop.f32.mrb[0].mxu0
    %2605 = vmatprep.mubr.f32.mxu0 0.0
    %2606 = vmatmul.mubr.f32.gmra.mrb[0].mxu0 %v2141
    %v2607 = vpop.f32.mrb[0].mxu0
    %v2608 = vadd.f32 0.0, %v2607
    %v2609 = vpop.f32.mrb[0].mxu0
    %2610 = vmatprep.mubr.f32.mxu0 0.0
    %2611 = vmatmul.mubr.f32.gmra.mrb[0].mxu0 %v2142
    %v2612 = vpop.f32.mrb[0].mxu0
    %v2613 = vadd.f32 0.0, %v2612
    %v2614 = vpop.f32.mrb[0].mxu0
    %2615 = vmatprep.mubr.f32.mxu0 0.0
    %2616 = vmatmul.mubr.f32.gmra.mrb[0].mxu0 %v2143
    %v2617 = vpop.f32.mrb[0].mxu0
    %v2618 = vadd.f32 0.0, %v2617
    %v2619 = vpop.f32.mrb[0].mxu0
    %2620 = vmatprep.mubr.f32.mxu0 0.0
    %2621 = vmatmul.mubr.f32.gmra.mrb[0].mxu0 %v2144
    %v2622 = vpop.f32.mrb[0].mxu0
    %v2623 = vadd.f32 0.0, %v2622
    %v2624 = vpop.f32.mrb[0].mxu0
    %2625 = vmatprep.mubr.f32.mxu0 0.0
    %2626 = vmatmul.mubr.f32.gmra.mrb[0].mxu0 %v2145
    %v2627 = vpop.f32.mrb[0].mxu0
    %v2628 = vadd.f32 0.0, %v2627
    %v2629 = vpop.f32.mrb[0].mxu0
    %2630 = vmatprep.mubr.f32.mxu0 0.0
    %2631 = vmatmul.mubr.f32.gmra.mrb[0].mxu0 %v2146
    %v2632 = vpop.f32.mrb[0].mxu0
    %v2633 = vadd.f32 0.0, %v2632
    %v2634 = vpop.f32.mrb[0].mxu0
    %2635 = vmatprep.mubr.f32.mxu0 0.0
    %2636 = vmatmul.mubr.f32.gmra.mrb[0].mxu0 %v2147
    %v2637 = vpop.f32.mrb[0].mxu0
    %v2638 = vadd.f32 0.0, %v2637
    %v2639 = vpop.f32.mrb[0].mxu0
    %2640 = vmatprep.mubr.f32.mxu0 0.0
    %2641 = vmatmul.mubr.f32.gmra.mrb[0].mxu0 %v2148
    %v2642 = vpop.f32.mrb[0].mxu0
    %v2643 = vadd.f32 0.0, %v2642
    %v2644 = vpop.f32.mrb[0].mxu0
    %2645 = vmatprep.mubr.f32.mxu0 0.0
    %2646 = vmatmul.mubr.f32.gmra.mrb[0].mxu0 %v2149
    %v2647 = vpop.f32.mrb[0].mxu0
    %v2648 = vadd.f32 0.0, %v2647
    %v2649 = vpop.f32.mrb[0].mxu0
    %2650 = vmatprep.mubr.f32.mxu0 0.0
    %2651 = vmatmul.mubr.f32.gmra.mrb[0].mxu0 %v2150
    %v2652 = vpop.f32.mrb[0].mxu0
    %v2653 = vadd.f32 0.0, %v2652
    %v2654 = vpop.f32.mrb[0].mxu0
    %2655 = vmatprep.mubr.f32.mxu0 0.0
    %2656 = vmatmul.mubr.f32.gmra.mrb[0].mxu0 %v2151
    %v2657 = vpop.f32.mrb[0].mxu0
    %v2658 = vadd.f32 0.0, %v2657
    %v2659 = vpop.f32.mrb[0].mxu0
    %2660 = vmatprep.mubr.f32.mxu0 0.0
    %2661 = vmatmul.mubr.f32.gmra.mrb[0].mxu0 %v2152
    %v2662 = vpop.f32.mrb[0].mxu0
    %v2663 = vadd.f32 0.0, %v2662
    %v2664 = vpop.f32.mrb[0].mxu0
    %2665 = vmatprep.mubr.f32.mxu0 0.0
    %2666 = vmatmul.mubr.f32.gmra.mrb[0].mxu0 %v2153
    %v2667 = vpop.f32.mrb[0].mxu0
    %v2668 = vadd.f32 0.0, %v2667
    %v2669 = vpop.f32.mrb[0].mxu0
    %2670 = vmatprep.mubr.f32.mxu0 0.0
    %2671 = vmatmul.mubr.f32.gmra.mrb[0].mxu0 %v2154
    %v2672 = vpop.f32.mrb[0].mxu0
    %v2673 = vadd.f32 0.0, %v2672
    %v2674 = vpop.f32.mrb[0].mxu0
    %2675 = vmatprep.mubr.f32.mxu0 0.0
    %2676 = vmatmul.mubr.f32.gmra.mrb[0].mxu0 %v2155
    %v2677 = vpop.f32.mrb[0].mxu0
    %v2678 = vadd.f32 0.0, %v2677
    %v2679 = vpop.f32.mrb[0].mxu0
    %2680 = vmatprep.mubr.f32.mxu0 0.0
    %2681 = vmatmul.mubr.f32.gmra.mrb[0].mxu0 %v2156
    %v2682 = vpop.f32.mrb[0].mxu0
    %v2683 = vadd.f32 0.0, %v2682
    %v2684 = vpop.f32.mrb[0].mxu0
    %2685 = vmatprep.mubr.f32.mxu0 0.0
    %2686 = vmatmul.mubr.f32.gmra.mrb[0].mxu0 %v2157
    %v2687 = vpop.f32.mrb[0].mxu0
    %v2688 = vadd.f32 0.0, %v2687
    %v2689 = vpop.f32.mrb[0].mxu0
    %2690 = vmatprep.mubr.f32.mxu0 0.0
    %2691 = vmatmul.mubr.f32.gmra.mrb[0].mxu0 %v2158
    %v2692 = vpop.f32.mrb[0].mxu0
    %v2693 = vadd.f32 0.0, %v2692
    %v2694 = vpop.f32.mrb[0].mxu0
    %2695 = vmatprep.mubr.f32.mxu0 0.0
    %2696 = vmatmul.mubr.f32.gmra.mrb[0].mxu0 %v2159
    %v2697 = vpop.f32.mrb[0].mxu0
    %v2698 = vadd.f32 0.0, %v2697
    %v2699 = vpop.f32.mrb[0].mxu0
    %2700 = vmatprep.mubr.f32.mxu0 0.0
    %2701 = vmatmul.mubr.f32.gmra.mrb[0].mxu0 %v2160
    %v2702 = vpop.f32.mrb[0].mxu0
    %v2703 = vadd.f32 0.0, %v2702
    %v2704 = vpop.f32.mrb[0].mxu0
    %2705 = vmatprep.mubr.f32.mxu0 0.0
    %2706 = vmatmul.mubr.f32.gmra.mrb[0].mxu0 %v2161
    %v2707 = vpop.f32.mrb[0].mxu0
    %v2708 = vadd.f32 0.0, %v2707
    %v2709 = vpop.f32.mrb[0].mxu0
    %2710 = vmatprep.mubr.f32.mxu0 0.0
    %2711 = vmatmul.mubr.f32.gmra.mrb[0].mxu0 %v2162
    %v2712 = vpop.f32.mrb[0].mxu0
    %v2713 = vadd.f32 0.0, %v2712
    %v2714 = vpop.f32.mrb[0].mxu0
    %2715 = vmatprep.mubr.f32.mxu0 0.0
    %2716 = vmatmul.mubr.f32.gmra.mrb[0].mxu0 %v2163
    %v2717 = vpop.f32.mrb[0].mxu0
    %v2718 = vadd.f32 0.0, %v2717
    %v2719 = vpop.f32.mrb[0].mxu0
    %2720 = vmatprep.mubr.f32.mxu0 0.0
    %2721 = vmatmul.mubr.f32.gmra.mrb[0].mxu0 %v2164
    %v2722 = vpop.f32.mrb[0].mxu0
    %v2723 = vadd.f32 0.0, %v2722
    %v2724 = vpop.f32.mrb[0].mxu0
    %2725 = vmatprep.mubr.f32.mxu0 0.0
    %2726 = vmatmul.mubr.f32.gmra.mrb[0].mxu0 %v2165
    %v2727 = vpop.f32.mrb[0].mxu0
    %v2728 = vadd.f32 0.0, %v2727
    %v2729 = vpop.f32.mrb[0].mxu0
    %2730 = vmatprep.mubr.f32.mxu0 0.0
    %2731 = vmatmul.mubr.f32.gmra.mrb[0].mxu0 %v2166
    %v2732 = vpop.f32.mrb[0].mxu0
    %v2733 = vadd.f32 0.0, %v2732
    %v2734 = vpop.f32.mrb[0].mxu0
    %2735 = vmatprep.mubr.f32.mxu0 0.0
    %2736 = vmatmul.mubr.f32.gmra.mrb[0].mxu0 %v2167
    %v2737 = vpop.f32.mrb[0].mxu0
    %v2738 = vadd.f32 0.0, %v2737
    %v2739 = vpop.f32.mrb[0].mxu0
    %2740 = vmatprep.mubr.f32.mxu0 0.0
    %2741 = vmatmul.mubr.f32.gmra.mrb[0].mxu0 %v2168
    %v2742 = vpop.f32.mrb[0].mxu0
    %v2743 = vadd.f32 0.0, %v2742
    %v2744 = vpop.f32.mrb[0].mxu0
    %2745 = vmatprep.mubr.f32.mxu0 0.0
    %2746 = vmatmul.mubr.f32.gmra.mrb[0].mxu0 %v2169
    %v2747 = vpop.f32.mrb[0].mxu0
    %v2748 = vadd.f32 0.0, %v2747
    %v2749 = vpop.f32.mrb[0].mxu0
    %2750 = vmatprep.mubr.f32.mxu0 0.0
    %2751 = vmatmul.mubr.f32.gmra.mrb[0].mxu0 %v2170
    %v2752 = vpop.f32.mrb[0].mxu0
    %v2753 = vadd.f32 0.0, %v2752
    %v2754 = vpop.f32.mrb[0].mxu0
    %2755 = vmatprep.mubr.f32.mxu0 0.0
    %2756 = vmatmul.mubr.f32.gmra.mrb[0].mxu0 %v2171
    %v2757 = vpop.f32.mrb[0].mxu0
    %v2758 = vadd.f32 0.0, %v2757
    %v2759 = vpop.f32.mrb[0].mxu0
    %2760 = vmatprep.mubr.f32.mxu0 0.0
    %2761 = vmatmul.mubr.f32.gmra.mrb[0].mxu0 %v2172
    %v2762 = vpop.f32.mrb[0].mxu0
    %v2763 = vadd.f32 0.0, %v2762
    %v2764 = vpop.f32.mrb[0].mxu0
    %2765 = vmatprep.mubr.f32.mxu0 0.0
    %2766 = vmatmul.mubr.f32.gmra.mrb[0].mxu0 %v2173
    %v2767 = vpop.f32.mrb[0].mxu0
    %v2768 = vadd.f32 0.0, %v2767
    %v2769 = vpop.f32.mrb[0].mxu0
    %2770 = vmatprep.mubr.f32.mxu0 0.0
    %2771 = vmatmul.mubr.f32.gmra.mrb[0].mxu0 %v2174
    %v2772 = vpop.f32.mrb[0].mxu0
    %v2773 = vadd.f32 0.0, %v2772
    %v2774 = vpop.f32.mrb[0].mxu0
    %2775 = vmatprep.mubr.f32.mxu0 0.0
    %2776 = vmatmul.mubr.f32.gmra.mrb[0].mxu0 %v2175
    %v2777 = vpop.f32.mrb[0].mxu0
    %v2778 = vadd.f32 0.0, %v2777
    %v2779 = vpop.f32.mrb[0].mxu0
    %2780 = vmatprep.mubr.f32.mxu0 0.0
    %2781 = vmatmul.mubr.f32.gmra.mrb[0].mxu0 %v2176
    %v2782 = vpop.f32.mrb[0].mxu0
    %v2783 = vadd.f32 0.0, %v2782
    %v2784 = vpop.f32.mrb[0].mxu0
    %2785 = vmatprep.mubr.f32.mxu0 0.0
    %2786 = vmatmul.mubr.f32.gmra.mrb[0].mxu0 %v2177
    %v2787 = vpop.f32.mrb[0].mxu0
    %v2788 = vadd.f32 0.0, %v2787
    %v2789 = vpop.f32.mrb[0].mxu0
    %2790 = vmatprep.mubr.f32.mxu0 0.0
    %2791 = vmatmul.mubr.f32.gmra.mrb[0].mxu0 %v2178
    %v2792 = vpop.f32.mrb[0].mxu0
    %v2793 = vadd.f32 0.0, %v2792
    %v2794 = vpop.f32.mrb[0].mxu0
    %2795 = vmatprep.mubr.f32.mxu0 0.0
    %2796 = vmatmul.mubr.f32.gmra.mrb[0].mxu0 %v2179
    %v2797 = vpop.f32.mrb[0].mxu0
    %v2798 = vadd.f32 0.0, %v2797
    %v2799 = vpop.f32.mrb[0].mxu0
    %2800 = vmatprep.mubr.f32.mxu0 0.0
    %2801 = vmatmul.mubr.f32.gmra.mrb[0].mxu0 %v2180
    %v2802 = vpop.f32.mrb[0].mxu0
    %v2803 = vadd.f32 0.0, %v2802
    %v2804 = vpop.f32.mrb[0].mxu0
    %2805 = vmatprep.mubr.f32.mxu0 0.0
    %2806 = vmatmul.mubr.f32.gmra.mrb[0].mxu0 %v2181
    %v2807 = vpop.f32.mrb[0].mxu0
    %v2808 = vadd.f32 0.0, %v2807
    %v2809 = vpop.f32.mrb[0].mxu0
    %2810 = vmatprep.mubr.f32.mxu0 0.0
    %2811 = vmatmul.mubr.f32.gmra.mrb[0].mxu0 %v2182
    %v2812 = vpop.f32.mrb[0].mxu0
    %v2813 = vadd.f32 0.0, %v2812
    %v2814 = vpop.f32.mrb[0].mxu0
    %2815 = vmatprep.mubr.f32.mxu0 0.0
    %2816 = vmatmul.mubr.f32.gmra.mrb[0].mxu0 %v2183
    %v2817 = vpop.f32.mrb[0].mxu0
    %v2818 = vadd.f32 0.0, %v2817
    %v2819 = vpop.f32.mrb[0].mxu0
    %2820 = vmatprep.mubr.f32.mxu0 0.0
    %2821 = vmatmul.mubr.f32.gmra.mrb[0].mxu0 %v2184
    %v2822 = vpop.f32.mrb[0].mxu0
    %v2823 = vadd.f32 0.0, %v2822
    %v2824 = vpop.f32.mrb[0].mxu0
    %2825 = vmatprep.mubr.f32.mxu0 0.0
    %2826 = vmatmul.mubr.f32.gmra.mrb[0].mxu0 %v2185
    %v2827 = vpop.f32.mrb[0].mxu0
    %v2828 = vadd.f32 0.0, %v2827
    %v2829 = vpop.f32.mrb[0].mxu0
    %2830 = vmatprep.mubr.f32.mxu0 0.0
    %2831 = vmatmul.mubr.f32.gmra.mrb[0].mxu0 %v2186
    %v2832 = vpop.f32.mrb[0].mxu0
    %v2833 = vadd.f32 0.0, %v2832
    %v2834 = vpop.f32.mrb[0].mxu0
    %2835 = vmatprep.mubr.f32.mxu0 0.0
    %2836 = vmatmul.mubr.f32.gmra.mrb[0].mxu0 %v2187
    %v2837 = vpop.f32.mrb[0].mxu0
    %v2838 = vadd.f32 0.0, %v2837
    %v2839 = vpop.f32.mrb[0].mxu0
    %2840 = vmatprep.mubr.f32.mxu0 0.0
    %2841 = vmatmul.mubr.f32.gmra.mrb[0].mxu0 %v2188
    %v2842 = vpop.f32.mrb[0].mxu0
    %v2843 = vadd.f32 0.0, %v2842
    %v2844 = vpop.f32.mrb[0].mxu0
    %2845 = vmatprep.mubr.f32.mxu0 0.0
    %2846 = vmatmul.mubr.f32.gmra.mrb[0].mxu0 %v2189
    %v2847 = vpop.f32.mrb[0].mxu0
    %v2848 = vadd.f32 0.0, %v2847
    %v2849 = vpop.f32.mrb[0].mxu0
    %2850 = vmatprep.mubr.f32.mxu0 0.0
    %2851 = vmatmul.mubr.f32.gmra.mrb[0].mxu0 %v2190
    %v2852 = vpop.f32.mrb[0].mxu0
    %v2853 = vadd.f32 0.0, %v2852
    %v2854 = vpop.f32.mrb[0].mxu0
    %2855 = vmatprep.mubr.f32.mxu0 0.0
    %2856 = vmatmul.mubr.f32.gmra.mrb[0].mxu0 %v2191
    %v2857 = vpop.f32.mrb[0].mxu0
    %v2858 = vadd.f32 0.0, %v2857
    %v2859 = vpop.f32.mrb[0].mxu0
    %2860 = vmatprep.mubr.f32.mxu0 0.0
    %2861 = vmatmul.mubr.f32.gmra.mrb[0].mxu0 %v2192
    %v2862 = vpop.f32.mrb[0].mxu0
    %v2863 = vadd.f32 0.0, %v2862
    %v2864 = vpop.f32.mrb[0].mxu0
    %2865 = vmatprep.mubr.f32.mxu0 0.0
    %2866 = vmatmul.mubr.f32.gmra.mrb[0].mxu0 %v2193
    %v2867 = vpop.f32.mrb[0].mxu0
    %v2868 = vadd.f32 0.0, %v2867
    %v2869 = vpop.f32.mrb[0].mxu0
    %2870 = vmatprep.mubr.f32.mxu0 0.0
    %2871 = vmatmul.mubr.f32.gmra.mrb[0].mxu0 %v2194
    %v2872 = vpop.f32.mrb[0].mxu0
    %v2873 = vadd.f32 0.0, %v2872
    %v2874 = vpop.f32.mrb[0].mxu0
    %2875 = vmatprep.mubr.f32.mxu0 0.0
    %2876 = vmatmul.mubr.f32.gmra.mrb[0].mxu0 %v2195
    %v2877 = vpop.f32.mrb[0].mxu0
    %v2878 = vadd.f32 0.0, %v2877
    %v2879 = vpop.f32.mrb[0].mxu0
    %2880 = vmatprep.mubr.f32.mxu0 0.0
    %2881 = vmatmul.mubr.f32.gmra.mrb[0].mxu0 %v2196
    %v2882 = vpop.f32.mrb[0].mxu0
    %v2883 = vadd.f32 0.0, %v2882
    %v2884 = vpop.f32.mrb[0].mxu0
    %2885 = vmatprep.mubr.f32.mxu0 0.0
    %2886 = vmatmul.mubr.f32.gmra.mrb[0].mxu0 %v2197
    %v2887 = vpop.f32.mrb[0].mxu0
    %v2888 = vadd.f32 0.0, %v2887
    %v2889 = vpop.f32.mrb[0].mxu0
    %2890 = vmatprep.mubr.f32.mxu0 0.0
    %2891 = vmatmul.mubr.f32.gmra.mrb[0].mxu0 %v2198
    %v2892 = vpop.f32.mrb[0].mxu0
    %v2893 = vadd.f32 0.0, %v2892
    %v2894 = vpop.f32.mrb[0].mxu0
    %2895 = vmatprep.mubr.f32.mxu0 0.0
    %2896 = vmatmul.mubr.f32.gmra.mrb[0].mxu0 %v2199
    %v2897 = vpop.f32.mrb[0].mxu0
    %v2898 = vadd.f32 0.0, %v2897
    %v2899 = vpop.f32.mrb[0].mxu0
    %2900 = vmatprep.mubr.f32.mxu0 0.0
    %2901 = vmatmul.mubr.f32.gmra.mrb[0].mxu0 %v2200
    %v2902 = vpop.f32.mrb[0].mxu0
    %v2903 = vadd.f32 0.0, %v2902
    %v2904 = vpop.f32.mrb[0].mxu0
    %2905 = vdwg.mxu0
    %vm2906 = vcmp.eq.s32.totalorder %v663, 4294967295
    %vm2907 = vcmp.eq.s32.totalorder %v664, 4294967295
    %vm2908 = vcmp.eq.s32.totalorder %v665, 4294967295
    %vm2909 = vcmp.eq.s32.totalorder %v666, 4294967295
    %vm2910 = vcmp.eq.s32.totalorder %v667, 4294967295
    %vm2911 = vcmp.eq.s32.totalorder %v668, 4294967295
    %vm2912 = vcmp.eq.s32.totalorder %v669, 4294967295
    %vm2913 = vcmp.eq.s32.totalorder %v670, 4294967295
    %vm2914 = vcmp.eq.s32.totalorder %v671, 4294967295
    %vm2915 = vcmp.eq.s32.totalorder %v672, 4294967295
    %vm2916 = vcmp.eq.s32.totalorder %v673, 4294967295
    %vm2917 = vcmp.eq.s32.totalorder %v674, 4294967295
    %vm2918 = vcmp.eq.s32.totalorder %v675, 4294967295
    %vm2919 = vcmp.eq.s32.totalorder %v676, 4294967295
    %vm2920 = vcmp.eq.s32.totalorder %v677, 4294967295
    %vm2921 = vcmp.eq.s32.totalorder %v678, 4294967295
    %vm2922 = vcmp.eq.s32.totalorder %v679, 4294967295
    %vm2923 = vcmp.eq.s32.totalorder %v680, 4294967295
    %vm2924 = vcmp.eq.s32.totalorder %v681, 4294967295
    %vm2925 = vcmp.eq.s32.totalorder %v682, 4294967295
    %vm2926 = vcmp.eq.s32.totalorder %v683, 4294967295
    %vm2927 = vcmp.eq.s32.totalorder %v684, 4294967295
    %vm2928 = vcmp.eq.s32.totalorder %v685, 4294967295
    %vm2929 = vcmp.eq.s32.totalorder %v686, 4294967295
    %vm2930 = vcmp.eq.s32.totalorder %v687, 4294967295
    %vm2931 = vcmp.eq.s32.totalorder %v688, 4294967295
    %vm2932 = vcmp.eq.s32.totalorder %v689, 4294967295
    %vm2933 = vcmp.eq.s32.totalorder %v690, 4294967295
    %vm2934 = vcmp.eq.s32.totalorder %v691, 4294967295
    %vm2935 = vcmp.eq.s32.totalorder %v692, 4294967295
    %vm2936 = vcmp.eq.s32.totalorder %v693, 4294967295
    %vm2937 = vcmp.eq.s32.totalorder %v694, 4294967295
    %vm2938 = vcmp.eq.s32.totalorder %v695, 4294967295
    %vm2939 = vcmp.eq.s32.totalorder %v696, 4294967295
    %vm2940 = vcmp.eq.s32.totalorder %v697, 4294967295
    %vm2941 = vcmp.eq.s32.totalorder %v698, 4294967295
    %vm2942 = vcmp.eq.s32.totalorder %v699, 4294967295
    %vm2943 = vcmp.eq.s32.totalorder %v700, 4294967295
    %vm2944 = vcmp.eq.s32.totalorder %v701, 4294967295
    %vm2945 = vcmp.eq.s32.totalorder %v702, 4294967295
    %vm2946 = vcmp.eq.s32.totalorder %v703, 4294967295
    %vm2947 = vcmp.eq.s32.totalorder %v704, 4294967295
    %vm2948 = vcmp.eq.s32.totalorder %v705, 4294967295
    %vm2949 = vcmp.eq.s32.totalorder %v706, 4294967295
    %vm2950 = vcmp.eq.s32.totalorder %v707, 4294967295
    %vm2951 = vcmp.eq.s32.totalorder %v708, 4294967295
    %vm2952 = vcmp.eq.s32.totalorder %v709, 4294967295
    %vm2953 = vcmp.eq.s32.totalorder %v710, 4294967295
    %vm2954 = vcmp.eq.s32.totalorder %v711, 4294967295
    %vm2955 = vcmp.eq.s32.totalorder %v712, 4294967295
    %vm2956 = vcmp.eq.s32.totalorder %v713, 4294967295
    %vm2957 = vcmp.eq.s32.totalorder %v714, 4294967295
    %vm2958 = vcmp.eq.s32.totalorder %v715, 4294967295
    %vm2959 = vcmp.eq.s32.totalorder %v716, 4294967295
    %vm2960 = vcmp.eq.s32.totalorder %v717, 4294967295
    %vm2961 = vcmp.eq.s32.totalorder %v718, 4294967295
    %vm2962 = vcmp.eq.s32.totalorder %v719, 4294967295
    %vm2963 = vcmp.eq.s32.totalorder %v720, 4294967295
    %vm2964 = vcmp.eq.s32.totalorder %v721, 4294967295
    %vm2965 = vcmp.eq.s32.totalorder %v722, 4294967295
    %vm2966 = vcmp.eq.s32.totalorder %v723, 4294967295
    %vm2967 = vcmp.eq.s32.totalorder %v724, 4294967295
    %vm2968 = vcmp.eq.s32.totalorder %v725, 4294967295
    %vm2969 = vcmp.eq.s32.totalorder %v726, 4294967295
    %vm2970 = vcmp.eq.s32.totalorder %v727, 4294967295
    %vm2971 = vcmp.eq.s32.totalorder %v728, 4294967295
    %vm2972 = vcmp.eq.s32.totalorder %v729, 4294967295
    %vm2973 = vcmp.eq.s32.totalorder %v730, 4294967295
    %vm2974 = vcmp.eq.s32.totalorder %v731, 4294967295
    %vm2975 = vcmp.eq.s32.totalorder %v732, 4294967295
    %vm2976 = vcmp.eq.s32.totalorder %v733, 4294967295
    %vm2977 = vcmp.eq.s32.totalorder %v734, 4294967295
    %vm2978 = vcmp.eq.s32.totalorder %v735, 4294967295
    %vm2979 = vcmp.eq.s32.totalorder %v736, 4294967295
    %vm2980 = vcmp.eq.s32.totalorder %v737, 4294967295
    %vm2981 = vcmp.eq.s32.totalorder %v738, 4294967295
    %vm2982 = vcmp.eq.s32.totalorder %v739, 4294967295
    %vm2983 = vcmp.eq.s32.totalorder %v740, 4294967295
    %vm2984 = vcmp.eq.s32.totalorder %v741, 4294967295
    %vm2985 = vcmp.eq.s32.totalorder %v742, 4294967295
    %vm2986 = vcmp.eq.s32.totalorder %v743, 4294967295
    %vm2987 = vcmp.eq.s32.totalorder %v744, 4294967295
    %vm2988 = vcmp.eq.s32.totalorder %v745, 4294967295
    %vm2989 = vcmp.eq.s32.totalorder %v746, 4294967295
    %vm2990 = vcmp.eq.s32.totalorder %v747, 4294967295
    %vm2991 = vcmp.eq.s32.totalorder %v748, 4294967295
    %vm2992 = vcmp.eq.s32.totalorder %v749, 4294967295
    %vm2993 = vcmp.eq.s32.totalorder %v750, 4294967295
    %vm2994 = vcmp.eq.s32.totalorder %v751, 4294967295
    %vm2995 = vcmp.eq.s32.totalorder %v752, 4294967295
    %vm2996 = vcmp.eq.s32.totalorder %v753, 4294967295
    %vm2997 = vcmp.eq.s32.totalorder %v754, 4294967295
    %vm2998 = vcmp.eq.s32.totalorder %v755, 4294967295
    %vm2999 = vcmp.eq.s32.totalorder %v756, 4294967295
    %vm3000 = vcmp.eq.s32.totalorder %v757, 4294967295
    %vm3001 = vcmp.eq.s32.totalorder %v758, 4294967295
    %vm3002 = vcmp.eq.s32.totalorder %v759, 4294967295
    %vm3003 = vcmp.eq.s32.totalorder %v760, 4294967295
    %vm3004 = vcmp.eq.s32.totalorder %v761, 4294967295
    %vm3005 = vcmp.eq.s32.totalorder %v762, 4294967295
    %vm3006 = vcmp.eq.s32.totalorder %v763, 4294967295
    %vm3007 = vcmp.eq.s32.totalorder %v764, 4294967295
    %vm3008 = vcmp.eq.s32.totalorder %v765, 4294967295
    %vm3009 = vcmp.eq.s32.totalorder %v766, 4294967295
    %vm3010 = vcmp.eq.s32.totalorder %v767, 4294967295
    %vm3011 = vcmp.eq.s32.totalorder %v768, 4294967295
    %vm3012 = vcmp.eq.s32.totalorder %v769, 4294967295
    %vm3013 = vcmp.eq.s32.totalorder %v770, 4294967295
    %vm3014 = vcmp.eq.s32.totalorder %v771, 4294967295
    %vm3015 = vcmp.eq.s32.totalorder %v772, 4294967295
    %vm3016 = vcmp.eq.s32.totalorder %v773, 4294967295
    %vm3017 = vcmp.eq.s32.totalorder %v774, 4294967295
    %vm3018 = vcmp.eq.s32.totalorder %v775, 4294967295
    %vm3019 = vcmp.eq.s32.totalorder %v776, 4294967295
    %vm3020 = vcmp.eq.s32.totalorder %v777, 4294967295
    %vm3021 = vcmp.eq.s32.totalorder %v778, 4294967295
    %vm3022 = vcmp.eq.s32.totalorder %v779, 4294967295
    %vm3023 = vcmp.eq.s32.totalorder %v780, 4294967295
    %vm3024 = vcmp.eq.s32.totalorder %v781, 4294967295
    %vm3025 = vcmp.eq.s32.totalorder %v782, 4294967295
    %vm3026 = vcmp.eq.s32.totalorder %v783, 4294967295
    %vm3027 = vcmp.eq.s32.totalorder %v784, 4294967295
    %vm3028 = vcmp.eq.s32.totalorder %v785, 4294967295
    %vm3029 = vcmp.eq.s32.totalorder %v786, 4294967295
    %vm3030 = vcmp.eq.s32.totalorder %v787, 4294967295
    %vm3031 = vcmp.eq.s32.totalorder %v788, 4294967295
    %vm3032 = vcmp.eq.s32.totalorder %v789, 4294967295
    %vm3033 = vcmp.eq.s32.totalorder %v790, 4294967295
    %v3034 = vsel %vm2906, 1, 0
    %v3035 = vsel %vm2907, 1, 0
    %v3036 = vsel %vm2908, 1, 0
    %v3037 = vsel %vm2909, 1, 0
    %v3038 = vsel %vm2910, 1, 0
    %v3039 = vsel %vm2911, 1, 0
    %v3040 = vsel %vm2912, 1, 0
    %v3041 = vsel %vm2913, 1, 0
    %v3042 = vsel %vm2914, 1, 0
    %v3043 = vsel %vm2915, 1, 0
    %v3044 = vsel %vm2916, 1, 0
    %v3045 = vsel %vm2917, 1, 0
    %v3046 = vsel %vm2918, 1, 0
    %v3047 = vsel %vm2919, 1, 0
    %v3048 = vsel %vm2920, 1, 0
    %v3049 = vsel %vm2921, 1, 0
    %v3050 = vsel %vm2922, 1, 0
    %v3051 = vsel %vm2923, 1, 0
    %v3052 = vsel %vm2924, 1, 0
    %v3053 = vsel %vm2925, 1, 0
    %v3054 = vsel %vm2926, 1, 0
    %v3055 = vsel %vm2927, 1, 0
    %v3056 = vsel %vm2928, 1, 0
    %v3057 = vsel %vm2929, 1, 0
    %v3058 = vsel %vm2930, 1, 0
    %v3059 = vsel %vm2931, 1, 0
    %v3060 = vsel %vm2932, 1, 0
    %v3061 = vsel %vm2933, 1, 0
    %v3062 = vsel %vm2934, 1, 0
    %v3063 = vsel %vm2935, 1, 0
    %v3064 = vsel %vm2936, 1, 0
    %v3065 = vsel %vm2937, 1, 0
    %v3066 = vsel %vm2938, 1, 0
    %v3067 = vsel %vm2939, 1, 0
    %v3068 = vsel %vm2940, 1, 0
    %v3069 = vsel %vm2941, 1, 0
    %v3070 = vsel %vm2942, 1, 0
    %v3071 = vsel %vm2943, 1, 0
    %v3072 = vsel %vm2944, 1, 0
    %v3073 = vsel %vm2945, 1, 0
    %v3074 = vsel %vm2946, 1, 0
    %v3075 = vsel %vm2947, 1, 0
    %v3076 = vsel %vm2948, 1, 0
    %v3077 = vsel %vm2949, 1, 0
    %v3078 = vsel %vm2950, 1, 0
    %v3079 = vsel %vm2951, 1, 0
    %v3080 = vsel %vm2952, 1, 0
    %v3081 = vsel %vm2953, 1, 0
    %v3082 = vsel %vm2954, 1, 0
    %v3083 = vsel %vm2955, 1, 0
    %v3084 = vsel %vm2956, 1, 0
    %v3085 = vsel %vm2957, 1, 0
    %v3086 = vsel %vm2958, 1, 0
    %v3087 = vsel %vm2959, 1, 0
    %v3088 = vsel %vm2960, 1, 0
    %v3089 = vsel %vm2961, 1, 0
    %v3090 = vsel %vm2962, 1, 0
    %v3091 = vsel %vm2963, 1, 0
    %v3092 = vsel %vm2964, 1, 0
    %v3093 = vsel %vm2965, 1, 0
    %v3094 = vsel %vm2966, 1, 0
    %v3095 = vsel %vm2967, 1, 0
    %v3096 = vsel %vm2968, 1, 0
    %v3097 = vsel %vm2969, 1, 0
    %v3098 = vsel %vm2970, 1, 0
    %v3099 = vsel %vm2971, 1, 0
    %v3100 = vsel %vm2972, 1, 0
    %v3101 = vsel %vm2973, 1, 0
    %v3102 = vsel %vm2974, 1, 0
    %v3103 = vsel %vm2975, 1, 0
    %v3104 = vsel %vm2976, 1, 0
    %v3105 = vsel %vm2977, 1, 0
    %v3106 = vsel %vm2978, 1, 0
    %v3107 = vsel %vm2979, 1, 0
    %v3108 = vsel %vm2980, 1, 0
    %v3109 = vsel %vm2981, 1, 0
    %v3110 = vsel %vm2982, 1, 0
    %v3111 = vsel %vm2983, 1, 0
    %v3112 = vsel %vm2984, 1, 0
    %v3113 = vsel %vm2985, 1, 0
    %v3114 = vsel %vm2986, 1, 0
    %v3115 = vsel %vm2987, 1, 0
    %v3116 = vsel %vm2988, 1, 0
    %v3117 = vsel %vm2989, 1, 0
    %v3118 = vsel %vm2990, 1, 0
    %v3119 = vsel %vm2991, 1, 0
    %v3120 = vsel %vm2992, 1, 0
    %v3121 = vsel %vm2993, 1, 0
    %v3122 = vsel %vm2994, 1, 0
    %v3123 = vsel %vm2995, 1, 0
    %v3124 = vsel %vm2996, 1, 0
    %v3125 = vsel %vm2997, 1, 0
    %v3126 = vsel %vm2998, 1, 0
    %v3127 = vsel %vm2999, 1, 0
    %v3128 = vsel %vm3000, 1, 0
    %v3129 = vsel %vm3001, 1, 0
    %v3130 = vsel %vm3002, 1, 0
    %v3131 = vsel %vm3003, 1, 0
    %v3132 = vsel %vm3004, 1, 0
    %v3133 = vsel %vm3005, 1, 0
    %v3134 = vsel %vm3006, 1, 0
    %v3135 = vsel %vm3007, 1, 0
    %v3136 = vsel %vm3008, 1, 0
    %v3137 = vsel %vm3009, 1, 0
    %v3138 = vsel %vm3010, 1, 0
    %v3139 = vsel %vm3011, 1, 0
    %v3140 = vsel %vm3012, 1, 0
    %v3141 = vsel %vm3013, 1, 0
    %v3142 = vsel %vm3014, 1, 0
    %v3143 = vsel %vm3015, 1, 0
    %v3144 = vsel %vm3016, 1, 0
    %v3145 = vsel %vm3017, 1, 0
    %v3146 = vsel %vm3018, 1, 0
    %v3147 = vsel %vm3019, 1, 0
    %v3148 = vsel %vm3020, 1, 0
    %v3149 = vsel %vm3021, 1, 0
    %v3150 = vsel %vm3022, 1, 0
    %v3151 = vsel %vm3023, 1, 0
    %v3152 = vsel %vm3024, 1, 0
    %v3153 = vsel %vm3025, 1, 0
    %v3154 = vsel %vm3026, 1, 0
    %v3155 = vsel %vm3027, 1, 0
    %v3156 = vsel %vm3028, 1, 0
    %v3157 = vsel %vm3029, 1, 0
    %v3158 = vsel %vm3030, 1, 0
    %v3159 = vsel %vm3031, 1, 0
    %v3160 = vsel %vm3032, 1, 0
    %v3161 = vsel %vm3033, 1, 0
    %3162 = vset.pattern.permute.xlu0 0
    %3163 = vperm.xlu0 %3162, %v3034
    %v3164 = vpop.permute.xlu0 %3163
    %3165 = vset.pattern.permute.xlu0 0
    %3166 = vperm.xlu0 %3165, %v3035
    %v3167 = vpop.permute.xlu0 %3166
    %3168 = vset.pattern.permute.xlu0 0
    %3169 = vperm.xlu0 %3168, %v3036
    %v3170 = vpop.permute.xlu0 %3169
    %3171 = vset.pattern.permute.xlu0 0
    %3172 = vperm.xlu0 %3171, %v3037
    %v3173 = vpop.permute.xlu0 %3172
    %3174 = vset.pattern.permute.xlu0 0
    %3175 = vperm.xlu0 %3174, %v3038
    %v3176 = vpop.permute.xlu0 %3175
    %3177 = vset.pattern.permute.xlu0 0
    %3178 = vperm.xlu0 %3177, %v3039
    %v3179 = vpop.permute.xlu0 %3178
    %3180 = vset.pattern.permute.xlu0 0
    %3181 = vperm.xlu0 %3180, %v3040
    %v3182 = vpop.permute.xlu0 %3181
    %3183 = vset.pattern.permute.xlu0 0
    %3184 = vperm.xlu0 %3183, %v3041
    %v3185 = vpop.permute.xlu0 %3184
    %3186 = vset.pattern.permute.xlu0 0
    %3187 = vperm.xlu0 %3186, %v3042
    %v3188 = vpop.permute.xlu0 %3187
    %3189 = vset.pattern.permute.xlu0 0
    %3190 = vperm.xlu0 %3189, %v3043
    %v3191 = vpop.permute.xlu0 %3190
    %3192 = vset.pattern.permute.xlu0 0
    %3193 = vperm.xlu0 %3192, %v3044
    %v3194 = vpop.permute.xlu0 %3193
    %3195 = vset.pattern.permute.xlu0 0
    %3196 = vperm.xlu0 %3195, %v3045
    %v3197 = vpop.permute.xlu0 %3196
    %3198 = vset.pattern.permute.xlu0 0
    %3199 = vperm.xlu0 %3198, %v3046
    %v3200 = vpop.permute.xlu0 %3199
    %3201 = vset.pattern.permute.xlu0 0
    %3202 = vperm.xlu0 %3201, %v3047
    %v3203 = vpop.permute.xlu0 %3202
    %3204 = vset.pattern.permute.xlu0 0
    %3205 = vperm.xlu0 %3204, %v3048
    %v3206 = vpop.permute.xlu0 %3205
    %3207 = vset.pattern.permute.xlu0 0
    %3208 = vperm.xlu0 %3207, %v3049
    %v3209 = vpop.permute.xlu0 %3208
    %3210 = vset.pattern.permute.xlu0 0
    %3211 = vperm.xlu0 %3210, %v3050
    %v3212 = vpop.permute.xlu0 %3211
    %3213 = vset.pattern.permute.xlu0 0
    %3214 = vperm.xlu0 %3213, %v3051
    %v3215 = vpop.permute.xlu0 %3214
    %3216 = vset.pattern.permute.xlu0 0
    %3217 = vperm.xlu0 %3216, %v3052
    %v3218 = vpop.permute.xlu0 %3217
    %3219 = vset.pattern.permute.xlu0 0
    %3220 = vperm.xlu0 %3219, %v3053
    %v3221 = vpop.permute.xlu0 %3220
    %3222 = vset.pattern.permute.xlu0 0
    %3223 = vperm.xlu0 %3222, %v3054
    %v3224 = vpop.permute.xlu0 %3223
    %3225 = vset.pattern.permute.xlu0 0
    %3226 = vperm.xlu0 %3225, %v3055
    %v3227 = vpop.permute.xlu0 %3226
    %3228 = vset.pattern.permute.xlu0 0
    %3229 = vperm.xlu0 %3228, %v3056
    %v3230 = vpop.permute.xlu0 %3229
    %3231 = vset.pattern.permute.xlu0 0
    %3232 = vperm.xlu0 %3231, %v3057
    %v3233 = vpop.permute.xlu0 %3232
    %3234 = vset.pattern.permute.xlu0 0
    %3235 = vperm.xlu0 %3234, %v3058
    %v3236 = vpop.permute.xlu0 %3235
    %3237 = vset.pattern.permute.xlu0 0
    %3238 = vperm.xlu0 %3237, %v3059
    %v3239 = vpop.permute.xlu0 %3238
    %3240 = vset.pattern.permute.xlu0 0
    %3241 = vperm.xlu0 %3240, %v3060
    %v3242 = vpop.permute.xlu0 %3241
    %3243 = vset.pattern.permute.xlu0 0
    %3244 = vperm.xlu0 %3243, %v3061
    %v3245 = vpop.permute.xlu0 %3244
    %3246 = vset.pattern.permute.xlu0 0
    %3247 = vperm.xlu0 %3246, %v3062
    %v3248 = vpop.permute.xlu0 %3247
    %3249 = vset.pattern.permute.xlu0 0
    %3250 = vperm.xlu0 %3249, %v3063
    %v3251 = vpop.permute.xlu0 %3250
    %3252 = vset.pattern.permute.xlu0 0
    %3253 = vperm.xlu0 %3252, %v3064
    %v3254 = vpop.permute.xlu0 %3253
    %3255 = vset.pattern.permute.xlu0 0
    %3256 = vperm.xlu0 %3255, %v3065
    %v3257 = vpop.permute.xlu0 %3256
    %3258 = vset.pattern.permute.xlu0 0
    %3259 = vperm.xlu0 %3258, %v3066
    %v3260 = vpop.permute.xlu0 %3259
    %3261 = vset.pattern.permute.xlu0 0
    %3262 = vperm.xlu0 %3261, %v3067
    %v3263 = vpop.permute.xlu0 %3262
    %3264 = vset.pattern.permute.xlu0 0
    %3265 = vperm.xlu0 %3264, %v3068
    %v3266 = vpop.permute.xlu0 %3265
    %3267 = vset.pattern.permute.xlu0 0
    %3268 = vperm.xlu0 %3267, %v3069
    %v3269 = vpop.permute.xlu0 %3268
    %3270 = vset.pattern.permute.xlu0 0
    %3271 = vperm.xlu0 %3270, %v3070
    %v3272 = vpop.permute.xlu0 %3271
    %3273 = vset.pattern.permute.xlu0 0
    %3274 = vperm.xlu0 %3273, %v3071
    %v3275 = vpop.permute.xlu0 %3274
    %3276 = vset.pattern.permute.xlu0 0
    %3277 = vperm.xlu0 %3276, %v3072
    %v3278 = vpop.permute.xlu0 %3277
    %3279 = vset.pattern.permute.xlu0 0
    %3280 = vperm.xlu0 %3279, %v3073
    %v3281 = vpop.permute.xlu0 %3280
    %3282 = vset.pattern.permute.xlu0 0
    %3283 = vperm.xlu0 %3282, %v3074
    %v3284 = vpop.permute.xlu0 %3283
    %3285 = vset.pattern.permute.xlu0 0
    %3286 = vperm.xlu0 %3285, %v3075
    %v3287 = vpop.permute.xlu0 %3286
    %3288 = vset.pattern.permute.xlu0 0
    %3289 = vperm.xlu0 %3288, %v3076
    %v3290 = vpop.permute.xlu0 %3289
    %3291 = vset.pattern.permute.xlu0 0
    %3292 = vperm.xlu0 %3291, %v3077
    %v3293 = vpop.permute.xlu0 %3292
    %3294 = vset.pattern.permute.xlu0 0
    %3295 = vperm.xlu0 %3294, %v3078
    %v3296 = vpop.permute.xlu0 %3295
    %3297 = vset.pattern.permute.xlu0 0
    %3298 = vperm.xlu0 %3297, %v3079
    %v3299 = vpop.permute.xlu0 %3298
    %3300 = vset.pattern.permute.xlu0 0
    %3301 = vperm.xlu0 %3300, %v3080
    %v3302 = vpop.permute.xlu0 %3301
    %3303 = vset.pattern.permute.xlu0 0
    %3304 = vperm.xlu0 %3303, %v3081
    %v3305 = vpop.permute.xlu0 %3304
    %3306 = vset.pattern.permute.xlu0 0
    %3307 = vperm.xlu0 %3306, %v3082
    %v3308 = vpop.permute.xlu0 %3307
    %3309 = vset.pattern.permute.xlu0 0
    %3310 = vperm.xlu0 %3309, %v3083
    %v3311 = vpop.permute.xlu0 %3310
    %3312 = vset.pattern.permute.xlu0 0
    %3313 = vperm.xlu0 %3312, %v3084
    %v3314 = vpop.permute.xlu0 %3313
    %3315 = vset.pattern.permute.xlu0 0
    %3316 = vperm.xlu0 %3315, %v3085
    %v3317 = vpop.permute.xlu0 %3316
    %3318 = vset.pattern.permute.xlu0 0
    %3319 = vperm.xlu0 %3318, %v3086
    %v3320 = vpop.permute.xlu0 %3319
    %3321 = vset.pattern.permute.xlu0 0
    %3322 = vperm.xlu0 %3321, %v3087
    %v3323 = vpop.permute.xlu0 %3322
    %3324 = vset.pattern.permute.xlu0 0
    %3325 = vperm.xlu0 %3324, %v3088
    %v3326 = vpop.permute.xlu0 %3325
    %3327 = vset.pattern.permute.xlu0 0
    %3328 = vperm.xlu0 %3327, %v3089
    %v3329 = vpop.permute.xlu0 %3328
    %3330 = vset.pattern.permute.xlu0 0
    %3331 = vperm.xlu0 %3330, %v3090
    %v3332 = vpop.permute.xlu0 %3331
    %3333 = vset.pattern.permute.xlu0 0
    %3334 = vperm.xlu0 %3333, %v3091
    %v3335 = vpop.permute.xlu0 %3334
    %3336 = vset.pattern.permute.xlu0 0
    %3337 = vperm.xlu0 %3336, %v3092
    %v3338 = vpop.permute.xlu0 %3337
    %3339 = vset.pattern.permute.xlu0 0
    %3340 = vperm.xlu0 %3339, %v3093
    %v3341 = vpop.permute.xlu0 %3340
    %3342 = vset.pattern.permute.xlu0 0
    %3343 = vperm.xlu0 %3342, %v3094
    %v3344 = vpop.permute.xlu0 %3343
    %3345 = vset.pattern.permute.xlu0 0
    %3346 = vperm.xlu0 %3345, %v3095
    %v3347 = vpop.permute.xlu0 %3346
    %3348 = vset.pattern.permute.xlu0 0
    %3349 = vperm.xlu0 %3348, %v3096
    %v3350 = vpop.permute.xlu0 %3349
    %3351 = vset.pattern.permute.xlu0 0
    %3352 = vperm.xlu0 %3351, %v3097
    %v3353 = vpop.permute.xlu0 %3352
    %3354 = vset.pattern.permute.xlu0 0
    %3355 = vperm.xlu0 %3354, %v3098
    %v3356 = vpop.permute.xlu0 %3355
    %3357 = vset.pattern.permute.xlu0 0
    %3358 = vperm.xlu0 %3357, %v3099
    %v3359 = vpop.permute.xlu0 %3358
    %3360 = vset.pattern.permute.xlu0 0
    %3361 = vperm.xlu0 %3360, %v3100
    %v3362 = vpop.permute.xlu0 %3361
    %3363 = vset.pattern.permute.xlu0 0
    %3364 = vperm.xlu0 %3363, %v3101
    %v3365 = vpop.permute.xlu0 %3364
    %3366 = vset.pattern.permute.xlu0 0
    %3367 = vperm.xlu0 %3366, %v3102
    %v3368 = vpop.permute.xlu0 %3367
    %3369 = vset.pattern.permute.xlu0 0
    %3370 = vperm.xlu0 %3369, %v3103
    %v3371 = vpop.permute.xlu0 %3370
    %3372 = vset.pattern.permute.xlu0 0
    %3373 = vperm.xlu0 %3372, %v3104
    %v3374 = vpop.permute.xlu0 %3373
    %3375 = vset.pattern.permute.xlu0 0
    %3376 = vperm.xlu0 %3375, %v3105
    %v3377 = vpop.permute.xlu0 %3376
    %3378 = vset.pattern.permute.xlu0 0
    %3379 = vperm.xlu0 %3378, %v3106
    %v3380 = vpop.permute.xlu0 %3379
    %3381 = vset.pattern.permute.xlu0 0
    %3382 = vperm.xlu0 %3381, %v3107
    %v3383 = vpop.permute.xlu0 %3382
    %3384 = vset.pattern.permute.xlu0 0
    %3385 = vperm.xlu0 %3384, %v3108
    %v3386 = vpop.permute.xlu0 %3385
    %3387 = vset.pattern.permute.xlu0 0
    %3388 = vperm.xlu0 %3387, %v3109
    %v3389 = vpop.permute.xlu0 %3388
    %3390 = vset.pattern.permute.xlu0 0
    %3391 = vperm.xlu0 %3390, %v3110
    %v3392 = vpop.permute.xlu0 %3391
    %3393 = vset.pattern.permute.xlu0 0
    %3394 = vperm.xlu0 %3393, %v3111
    %v3395 = vpop.permute.xlu0 %3394
    %3396 = vset.pattern.permute.xlu0 0
    %3397 = vperm.xlu0 %3396, %v3112
    %v3398 = vpop.permute.xlu0 %3397
    %3399 = vset.pattern.permute.xlu0 0
    %3400 = vperm.xlu0 %3399, %v3113
    %v3401 = vpop.permute.xlu0 %3400
    %3402 = vset.pattern.permute.xlu0 0
    %3403 = vperm.xlu0 %3402, %v3114
    %v3404 = vpop.permute.xlu0 %3403
    %3405 = vset.pattern.permute.xlu0 0
    %3406 = vperm.xlu0 %3405, %v3115
    %v3407 = vpop.permute.xlu0 %3406
    %3408 = vset.pattern.permute.xlu0 0
    %3409 = vperm.xlu0 %3408, %v3116
    %v3410 = vpop.permute.xlu0 %3409
    %3411 = vset.pattern.permute.xlu0 0
    %3412 = vperm.xlu0 %3411, %v3117
    %v3413 = vpop.permute.xlu0 %3412
    %3414 = vset.pattern.permute.xlu0 0
    %3415 = vperm.xlu0 %3414, %v3118
    %v3416 = vpop.permute.xlu0 %3415
    %3417 = vset.pattern.permute.xlu0 0
    %3418 = vperm.xlu0 %3417, %v3119
    %v3419 = vpop.permute.xlu0 %3418
    %3420 = vset.pattern.permute.xlu0 0
    %3421 = vperm.xlu0 %3420, %v3120
    %v3422 = vpop.permute.xlu0 %3421
    %3423 = vset.pattern.permute.xlu0 0
    %3424 = vperm.xlu0 %3423, %v3121
    %v3425 = vpop.permute.xlu0 %3424
    %3426 = vset.pattern.permute.xlu0 0
    %3427 = vperm.xlu0 %3426, %v3122
    %v3428 = vpop.permute.xlu0 %3427
    %3429 = vset.pattern.permute.xlu0 0
    %3430 = vperm.xlu0 %3429, %v3123
    %v3431 = vpop.permute.xlu0 %3430
    %3432 = vset.pattern.permute.xlu0 0
    %3433 = vperm.xlu0 %3432, %v3124
    %v3434 = vpop.permute.xlu0 %3433
    %3435 = vset.pattern.permute.xlu0 0
    %3436 = vperm.xlu0 %3435, %v3125
    %v3437 = vpop.permute.xlu0 %3436
    %3438 = vset.pattern.permute.xlu0 0
    %3439 = vperm.xlu0 %3438, %v3126
    %v3440 = vpop.permute.xlu0 %3439
    %3441 = vset.pattern.permute.xlu0 0
    %3442 = vperm.xlu0 %3441, %v3127
    %v3443 = vpop.permute.xlu0 %3442
    %3444 = vset.pattern.permute.xlu0 0
    %3445 = vperm.xlu0 %3444, %v3128
    %v3446 = vpop.permute.xlu0 %3445
    %3447 = vset.pattern.permute.xlu0 0
    %3448 = vperm.xlu0 %3447, %v3129
    %v3449 = vpop.permute.xlu0 %3448
    %3450 = vset.pattern.permute.xlu0 0
    %3451 = vperm.xlu0 %3450, %v3130
    %v3452 = vpop.permute.xlu0 %3451
    %3453 = vset.pattern.permute.xlu0 0
    %3454 = vperm.xlu0 %3453, %v3131
    %v3455 = vpop.permute.xlu0 %3454
    %3456 = vset.pattern.permute.xlu0 0
    %3457 = vperm.xlu0 %3456, %v3132
    %v3458 = vpop.permute.xlu0 %3457
    %3459 = vset.pattern.permute.xlu0 0
    %3460 = vperm.xlu0 %3459, %v3133
    %v3461 = vpop.permute.xlu0 %3460
    %3462 = vset.pattern.permute.xlu0 0
    %3463 = vperm.xlu0 %3462, %v3134
    %v3464 = vpop.permute.xlu0 %3463
    %3465 = vset.pattern.permute.xlu0 0
    %3466 = vperm.xlu0 %3465, %v3135
    %v3467 = vpop.permute.xlu0 %3466
    %3468 = vset.pattern.permute.xlu0 0
    %3469 = vperm.xlu0 %3468, %v3136
    %v3470 = vpop.permute.xlu0 %3469
    %3471 = vset.pattern.permute.xlu0 0
    %3472 = vperm.xlu0 %3471, %v3137
    %v3473 = vpop.permute.xlu0 %3472
    %3474 = vset.pattern.permute.xlu0 0
    %3475 = vperm.xlu0 %3474, %v3138
    %v3476 = vpop.permute.xlu0 %3475
    %3477 = vset.pattern.permute.xlu0 0
    %3478 = vperm.xlu0 %3477, %v3139
    %v3479 = vpop.permute.xlu0 %3478
    %3480 = vset.pattern.permute.xlu0 0
    %3481 = vperm.xlu0 %3480, %v3140
    %v3482 = vpop.permute.xlu0 %3481
    %3483 = vset.pattern.permute.xlu0 0
    %3484 = vperm.xlu0 %3483, %v3141
    %v3485 = vpop.permute.xlu0 %3484
    %3486 = vset.pattern.permute.xlu0 0
    %3487 = vperm.xlu0 %3486, %v3142
    %v3488 = vpop.permute.xlu0 %3487
    %3489 = vset.pattern.permute.xlu0 0
    %3490 = vperm.xlu0 %3489, %v3143
    %v3491 = vpop.permute.xlu0 %3490
    %3492 = vset.pattern.permute.xlu0 0
    %3493 = vperm.xlu0 %3492, %v3144
    %v3494 = vpop.permute.xlu0 %3493
    %3495 = vset.pattern.permute.xlu0 0
    %3496 = vperm.xlu0 %3495, %v3145
    %v3497 = vpop.permute.xlu0 %3496
    %3498 = vset.pattern.permute.xlu0 0
    %3499 = vperm.xlu0 %3498, %v3146
    %v3500 = vpop.permute.xlu0 %3499
    %3501 = vset.pattern.permute.xlu0 0
    %3502 = vperm.xlu0 %3501, %v3147
    %v3503 = vpop.permute.xlu0 %3502
    %3504 = vset.pattern.permute.xlu0 0
    %3505 = vperm.xlu0 %3504, %v3148
    %v3506 = vpop.permute.xlu0 %3505
    %3507 = vset.pattern.permute.xlu0 0
    %3508 = vperm.xlu0 %3507, %v3149
    %v3509 = vpop.permute.xlu0 %3508
    %3510 = vset.pattern.permute.xlu0 0
    %3511 = vperm.xlu0 %3510, %v3150
    %v3512 = vpop.permute.xlu0 %3511
    %3513 = vset.pattern.permute.xlu0 0
    %3514 = vperm.xlu0 %3513, %v3151
    %v3515 = vpop.permute.xlu0 %3514
    %3516 = vset.pattern.permute.xlu0 0
    %3517 = vperm.xlu0 %3516, %v3152
    %v3518 = vpop.permute.xlu0 %3517
    %3519 = vset.pattern.permute.xlu0 0
    %3520 = vperm.xlu0 %3519, %v3153
    %v3521 = vpop.permute.xlu0 %3520
    %3522 = vset.pattern.permute.xlu0 0
    %3523 = vperm.xlu0 %3522, %v3154
    %v3524 = vpop.permute.xlu0 %3523
    %3525 = vset.pattern.permute.xlu0 0
    %3526 = vperm.xlu0 %3525, %v3155
    %v3527 = vpop.permute.xlu0 %3526
    %3528 = vset.pattern.permute.xlu0 0
    %3529 = vperm.xlu0 %3528, %v3156
    %v3530 = vpop.permute.xlu0 %3529
    %3531 = vset.pattern.permute.xlu0 0
    %3532 = vperm.xlu0 %3531, %v3157
    %v3533 = vpop.permute.xlu0 %3532
    %3534 = vset.pattern.permute.xlu0 0
    %3535 = vperm.xlu0 %3534, %v3158
    %v3536 = vpop.permute.xlu0 %3535
    %3537 = vset.pattern.permute.xlu0 0
    %3538 = vperm.xlu0 %3537, %v3159
    %v3539 = vpop.permute.xlu0 %3538
    %3540 = vset.pattern.permute.xlu0 0
    %3541 = vperm.xlu0 %3540, %v3160
    %v3542 = vpop.permute.xlu0 %3541
    %3543 = vset.pattern.permute.xlu0 0
    %3544 = vperm.xlu0 %3543, %v3161
    %v3545 = vpop.permute.xlu0 %3544
    %vm3546 = vcmp.eq.s32.totalorder %v3164, 1
    %vm3547 = vcmp.eq.s32.totalorder %v3167, 1
    %vm3548 = vcmp.eq.s32.totalorder %v3170, 1
    %vm3549 = vcmp.eq.s32.totalorder %v3173, 1
    %vm3550 = vcmp.eq.s32.totalorder %v3176, 1
    %vm3551 = vcmp.eq.s32.totalorder %v3179, 1
    %vm3552 = vcmp.eq.s32.totalorder %v3182, 1
    %vm3553 = vcmp.eq.s32.totalorder %v3185, 1
    %vm3554 = vcmp.eq.s32.totalorder %v3188, 1
    %vm3555 = vcmp.eq.s32.totalorder %v3191, 1
    %vm3556 = vcmp.eq.s32.totalorder %v3194, 1
    %vm3557 = vcmp.eq.s32.totalorder %v3197, 1
    %vm3558 = vcmp.eq.s32.totalorder %v3200, 1
    %vm3559 = vcmp.eq.s32.totalorder %v3203, 1
    %vm3560 = vcmp.eq.s32.totalorder %v3206, 1
    %vm3561 = vcmp.eq.s32.totalorder %v3209, 1
    %vm3562 = vcmp.eq.s32.totalorder %v3212, 1
    %vm3563 = vcmp.eq.s32.totalorder %v3215, 1
    %vm3564 = vcmp.eq.s32.totalorder %v3218, 1
    %vm3565 = vcmp.eq.s32.totalorder %v3221, 1
    %vm3566 = vcmp.eq.s32.totalorder %v3224, 1
    %vm3567 = vcmp.eq.s32.totalorder %v3227, 1
    %vm3568 = vcmp.eq.s32.totalorder %v3230, 1
    %vm3569 = vcmp.eq.s32.totalorder %v3233, 1
    %vm3570 = vcmp.eq.s32.totalorder %v3236, 1
    %vm3571 = vcmp.eq.s32.totalorder %v3239, 1
    %vm3572 = vcmp.eq.s32.totalorder %v3242, 1
    %vm3573 = vcmp.eq.s32.totalorder %v3245, 1
    %vm3574 = vcmp.eq.s32.totalorder %v3248, 1
    %vm3575 = vcmp.eq.s32.totalorder %v3251, 1
    %vm3576 = vcmp.eq.s32.totalorder %v3254, 1
    %vm3577 = vcmp.eq.s32.totalorder %v3257, 1
    %vm3578 = vcmp.eq.s32.totalorder %v3260, 1
    %vm3579 = vcmp.eq.s32.totalorder %v3263, 1
    %vm3580 = vcmp.eq.s32.totalorder %v3266, 1
    %vm3581 = vcmp.eq.s32.totalorder %v3269, 1
    %vm3582 = vcmp.eq.s32.totalorder %v3272, 1
    %vm3583 = vcmp.eq.s32.totalorder %v3275, 1
    %vm3584 = vcmp.eq.s32.totalorder %v3278, 1
    %vm3585 = vcmp.eq.s32.totalorder %v3281, 1
    %vm3586 = vcmp.eq.s32.totalorder %v3284, 1
    %vm3587 = vcmp.eq.s32.totalorder %v3287, 1
    %vm3588 = vcmp.eq.s32.totalorder %v3290, 1
    %vm3589 = vcmp.eq.s32.totalorder %v3293, 1
    %vm3590 = vcmp.eq.s32.totalorder %v3296, 1
    %vm3591 = vcmp.eq.s32.totalorder %v3299, 1
    %vm3592 = vcmp.eq.s32.totalorder %v3302, 1
    %vm3593 = vcmp.eq.s32.totalorder %v3305, 1
    %vm3594 = vcmp.eq.s32.totalorder %v3308, 1
    %vm3595 = vcmp.eq.s32.totalorder %v3311, 1
    %vm3596 = vcmp.eq.s32.totalorder %v3314, 1
    %vm3597 = vcmp.eq.s32.totalorder %v3317, 1
    %vm3598 = vcmp.eq.s32.totalorder %v3320, 1
    %vm3599 = vcmp.eq.s32.totalorder %v3323, 1
    %vm3600 = vcmp.eq.s32.totalorder %v3326, 1
    %vm3601 = vcmp.eq.s32.totalorder %v3329, 1
    %vm3602 = vcmp.eq.s32.totalorder %v3332, 1
    %vm3603 = vcmp.eq.s32.totalorder %v3335, 1
    %vm3604 = vcmp.eq.s32.totalorder %v3338, 1
    %vm3605 = vcmp.eq.s32.totalorder %v3341, 1
    %vm3606 = vcmp.eq.s32.totalorder %v3344, 1
    %vm3607 = vcmp.eq.s32.totalorder %v3347, 1
    %vm3608 = vcmp.eq.s32.totalorder %v3350, 1
    %vm3609 = vcmp.eq.s32.totalorder %v3353, 1
    %vm3610 = vcmp.eq.s32.totalorder %v3356, 1
    %vm3611 = vcmp.eq.s32.totalorder %v3359, 1
    %vm3612 = vcmp.eq.s32.totalorder %v3362, 1
    %vm3613 = vcmp.eq.s32.totalorder %v3365, 1
    %vm3614 = vcmp.eq.s32.totalorder %v3368, 1
    %vm3615 = vcmp.eq.s32.totalorder %v3371, 1
    %vm3616 = vcmp.eq.s32.totalorder %v3374, 1
    %vm3617 = vcmp.eq.s32.totalorder %v3377, 1
    %vm3618 = vcmp.eq.s32.totalorder %v3380, 1
    %vm3619 = vcmp.eq.s32.totalorder %v3383, 1
    %vm3620 = vcmp.eq.s32.totalorder %v3386, 1
    %vm3621 = vcmp.eq.s32.totalorder %v3389, 1
    %vm3622 = vcmp.eq.s32.totalorder %v3392, 1
    %vm3623 = vcmp.eq.s32.totalorder %v3395, 1
    %vm3624 = vcmp.eq.s32.totalorder %v3398, 1
    %vm3625 = vcmp.eq.s32.totalorder %v3401, 1
    %vm3626 = vcmp.eq.s32.totalorder %v3404, 1
    %vm3627 = vcmp.eq.s32.totalorder %v3407, 1
    %vm3628 = vcmp.eq.s32.totalorder %v3410, 1
    %vm3629 = vcmp.eq.s32.totalorder %v3413, 1
    %vm3630 = vcmp.eq.s32.totalorder %v3416, 1
    %vm3631 = vcmp.eq.s32.totalorder %v3419, 1
    %vm3632 = vcmp.eq.s32.totalorder %v3422, 1
    %vm3633 = vcmp.eq.s32.totalorder %v3425, 1
    %vm3634 = vcmp.eq.s32.totalorder %v3428, 1
    %vm3635 = vcmp.eq.s32.totalorder %v3431, 1
    %vm3636 = vcmp.eq.s32.totalorder %v3434, 1
    %vm3637 = vcmp.eq.s32.totalorder %v3437, 1
    %vm3638 = vcmp.eq.s32.totalorder %v3440, 1
    %vm3639 = vcmp.eq.s32.totalorder %v3443, 1
    %vm3640 = vcmp.eq.s32.totalorder %v3446, 1
    %vm3641 = vcmp.eq.s32.totalorder %v3449, 1
    %vm3642 = vcmp.eq.s32.totalorder %v3452, 1
    %vm3643 = vcmp.eq.s32.totalorder %v3455, 1
    %vm3644 = vcmp.eq.s32.totalorder %v3458, 1
    %vm3645 = vcmp.eq.s32.totalorder %v3461, 1
    %vm3646 = vcmp.eq.s32.totalorder %v3464, 1
    %vm3647 = vcmp.eq.s32.totalorder %v3467, 1
    %vm3648 = vcmp.eq.s32.totalorder %v3470, 1
    %vm3649 = vcmp.eq.s32.totalorder %v3473, 1
    %vm3650 = vcmp.eq.s32.totalorder %v3476, 1
    %vm3651 = vcmp.eq.s32.totalorder %v3479, 1
    %vm3652 = vcmp.eq.s32.totalorder %v3482, 1
    %vm3653 = vcmp.eq.s32.totalorder %v3485, 1
    %vm3654 = vcmp.eq.s32.totalorder %v3488, 1
    %vm3655 = vcmp.eq.s32.totalorder %v3491, 1
    %vm3656 = vcmp.eq.s32.totalorder %v3494, 1
    %vm3657 = vcmp.eq.s32.totalorder %v3497, 1
    %vm3658 = vcmp.eq.s32.totalorder %v3500, 1
    %vm3659 = vcmp.eq.s32.totalorder %v3503, 1
    %vm3660 = vcmp.eq.s32.totalorder %v3506, 1
    %vm3661 = vcmp.eq.s32.totalorder %v3509, 1
    %vm3662 = vcmp.eq.s32.totalorder %v3512, 1
    %vm3663 = vcmp.eq.s32.totalorder %v3515, 1
    %vm3664 = vcmp.eq.s32.totalorder %v3518, 1
    %vm3665 = vcmp.eq.s32.totalorder %v3521, 1
    %vm3666 = vcmp.eq.s32.totalorder %v3524, 1
    %vm3667 = vcmp.eq.s32.totalorder %v3527, 1
    %vm3668 = vcmp.eq.s32.totalorder %v3530, 1
    %vm3669 = vcmp.eq.s32.totalorder %v3533, 1
    %vm3670 = vcmp.eq.s32.totalorder %v3536, 1
    %vm3671 = vcmp.eq.s32.totalorder %v3539, 1
    %vm3672 = vcmp.eq.s32.totalorder %v3542, 1
    %vm3673 = vcmp.eq.s32.totalorder %v3545, 1
    %v3674 = vsel %vm3546, -inf, %v2268
    %v3675 = vsel %vm3547, -inf, %v2273
    %v3676 = vsel %vm3548, -inf, %v2278
    %v3677 = vsel %vm3549, -inf, %v2283
    %v3678 = vsel %vm3550, -inf, %v2288
    %v3679 = vsel %vm3551, -inf, %v2293
    %v3680 = vsel %vm3552, -inf, %v2298
    %v3681 = vsel %vm3553, -inf, %v2303
    %v3682 = vsel %vm3554, -inf, %v2308
    %v3683 = vsel %vm3555, -inf, %v2313
    %v3684 = vsel %vm3556, -inf, %v2318
    %v3685 = vsel %vm3557, -inf, %v2323
    %v3686 = vsel %vm3558, -inf, %v2328
    %v3687 = vsel %vm3559, -inf, %v2333
    %v3688 = vsel %vm3560, -inf, %v2338
    %v3689 = vsel %vm3561, -inf, %v2343
    %v3690 = vsel %vm3562, -inf, %v2348
    %v3691 = vsel %vm3563, -inf, %v2353
    %v3692 = vsel %vm3564, -inf, %v2358
    %v3693 = vsel %vm3565, -inf, %v2363
    %v3694 = vsel %vm3566, -inf, %v2368
    %v3695 = vsel %vm3567, -inf, %v2373
    %v3696 = vsel %vm3568, -inf, %v2378
    %v3697 = vsel %vm3569, -inf, %v2383
    %v3698 = vsel %vm3570, -inf, %v2388
    %v3699 = vsel %vm3571, -inf, %v2393
    %v3700 = vsel %vm3572, -inf, %v2398
    %v3701 = vsel %vm3573, -inf, %v2403
    %v3702 = vsel %vm3574, -inf, %v2408
    %v3703 = vsel %vm3575, -inf, %v2413
    %v3704 = vsel %vm3576, -inf, %v2418
    %v3705 = vsel %vm3577, -inf, %v2423
    %v3706 = vsel %vm3578, -inf, %v2428
    %v3707 = vsel %vm3579, -inf, %v2433
    %v3708 = vsel %vm3580, -inf, %v2438
    %v3709 = vsel %vm3581, -inf, %v2443
    %v3710 = vsel %vm3582, -inf, %v2448
    %v3711 = vsel %vm3583, -inf, %v2453
    %v3712 = vsel %vm3584, -inf, %v2458
    %v3713 = vsel %vm3585, -inf, %v2463
    %v3714 = vsel %vm3586, -inf, %v2468
    %v3715 = vsel %vm3587, -inf, %v2473
    %v3716 = vsel %vm3588, -inf, %v2478
    %v3717 = vsel %vm3589, -inf, %v2483
    %v3718 = vsel %vm3590, -inf, %v2488
    %v3719 = vsel %vm3591, -inf, %v2493
    %v3720 = vsel %vm3592, -inf, %v2498
    %v3721 = vsel %vm3593, -inf, %v2503
    %v3722 = vsel %vm3594, -inf, %v2508
    %v3723 = vsel %vm3595, -inf, %v2513
    %v3724 = vsel %vm3596, -inf, %v2518
    %v3725 = vsel %vm3597, -inf, %v2523
    %v3726 = vsel %vm3598, -inf, %v2528
    %v3727 = vsel %vm3599, -inf, %v2533
    %v3728 = vsel %vm3600, -inf, %v2538
    %v3729 = vsel %vm3601, -inf, %v2543
    %v3730 = vsel %vm3602, -inf, %v2548
    %v3731 = vsel %vm3603, -inf, %v2553
    %v3732 = vsel %vm3604, -inf, %v2558
    %v3733 = vsel %vm3605, -inf, %v2563
    %v3734 = vsel %vm3606, -inf, %v2568
    %v3735 = vsel %vm3607, -inf, %v2573
    %v3736 = vsel %vm3608, -inf, %v2578
    %v3737 = vsel %vm3609, -inf, %v2583
    %v3738 = vsel %vm3610, -inf, %v2588
    %v3739 = vsel %vm3611, -inf, %v2593
    %v3740 = vsel %vm3612, -inf, %v2598
    %v3741 = vsel %vm3613, -inf, %v2603
    %v3742 = vsel %vm3614, -inf, %v2608
    %v3743 = vsel %vm3615, -inf, %v2613
    %v3744 = vsel %vm3616, -inf, %v2618
    %v3745 = vsel %vm3617, -inf, %v2623
    %v3746 = vsel %vm3618, -inf, %v2628
    %v3747 = vsel %vm3619, -inf, %v2633
    %v3748 = vsel %vm3620, -inf, %v2638
    %v3749 = vsel %vm3621, -inf, %v2643
    %v3750 = vsel %vm3622, -inf, %v2648
    %v3751 = vsel %vm3623, -inf, %v2653
    %v3752 = vsel %vm3624, -inf, %v2658
    %v3753 = vsel %vm3625, -inf, %v2663
    %v3754 = vsel %vm3626, -inf, %v2668
    %v3755 = vsel %vm3627, -inf, %v2673
    %v3756 = vsel %vm3628, -inf, %v2678
    %v3757 = vsel %vm3629, -inf, %v2683
    %v3758 = vsel %vm3630, -inf, %v2688
    %v3759 = vsel %vm3631, -inf, %v2693
    %v3760 = vsel %vm3632, -inf, %v2698
    %v3761 = vsel %vm3633, -inf, %v2703
    %v3762 = vsel %vm3634, -inf, %v2708
    %v3763 = vsel %vm3635, -inf, %v2713
    %v3764 = vsel %vm3636, -inf, %v2718
    %v3765 = vsel %vm3637, -inf, %v2723
    %v3766 = vsel %vm3638, -inf, %v2728
    %v3767 = vsel %vm3639, -inf, %v2733
    %v3768 = vsel %vm3640, -inf, %v2738
    %v3769 = vsel %vm3641, -inf, %v2743
    %v3770 = vsel %vm3642, -inf, %v2748
    %v3771 = vsel %vm3643, -inf, %v2753
    %v3772 = vsel %vm3644, -inf, %v2758
    %v3773 = vsel %vm3645, -inf, %v2763
    %v3774 = vsel %vm3646, -inf, %v2768
    %v3775 = vsel %vm3647, -inf, %v2773
    %v3776 = vsel %vm3648, -inf, %v2778
    %v3777 = vsel %vm3649, -inf, %v2783
    %v3778 = vsel %vm3650, -inf, %v2788
    %v3779 = vsel %vm3651, -inf, %v2793
    %v3780 = vsel %vm3652, -inf, %v2798
    %v3781 = vsel %vm3653, -inf, %v2803
    %v3782 = vsel %vm3654, -inf, %v2808
    %v3783 = vsel %vm3655, -inf, %v2813
    %v3784 = vsel %vm3656, -inf, %v2818
    %v3785 = vsel %vm3657, -inf, %v2823
    %v3786 = vsel %vm3658, -inf, %v2828
    %v3787 = vsel %vm3659, -inf, %v2833
    %v3788 = vsel %vm3660, -inf, %v2838
    %v3789 = vsel %vm3661, -inf, %v2843
    %v3790 = vsel %vm3662, -inf, %v2848
    %v3791 = vsel %vm3663, -inf, %v2853
    %v3792 = vsel %vm3664, -inf, %v2858
    %v3793 = vsel %vm3665, -inf, %v2863
    %v3794 = vsel %vm3666, -inf, %v2868
    %v3795 = vsel %vm3667, -inf, %v2873
    %v3796 = vsel %vm3668, -inf, %v2878
    %v3797 = vsel %vm3669, -inf, %v2883
    %v3798 = vsel %vm3670, -inf, %v2888
    %v3799 = vsel %vm3671, -inf, %v2893
    %v3800 = vsel %vm3672, -inf, %v2898
    %v3801 = vsel %vm3673, -inf, %v2903
    %v3802 = vsel %vm469, %v3674, -inf
    %v3803 = vsel %vm469, %v3675, -inf
    %v3804 = vmax.f32 %v3802, %v3803
    %v3805 = vrot.slane %v3804, 4
    %v3806 = vmax.f32 %v3804, %v3805
    %v3807 = vrot.slane %v3806, 2
    %v3808 = vmax.f32 %v3806, %v3807
    %v3809 = vrot.slane %v3808, 1
    %v3810 = vmax.f32 %v3808, %v3809
    %v3811 = vsel %vm469, %v3676, -inf
    %v3812 = vsel %vm469, %v3677, -inf
    %v3813 = vmax.f32 %v3811, %v3812
    %v3814 = vrot.slane %v3813, 4
    %v3815 = vmax.f32 %v3813, %v3814
    %v3816 = vrot.slane %v3815, 2
    %v3817 = vmax.f32 %v3815, %v3816
    %v3818 = vrot.slane %v3817, 1
    %v3819 = vmax.f32 %v3817, %v3818
    %v3820 = vsel %vm469, %v3678, -inf
    %v3821 = vsel %vm469, %v3679, -inf
    %v3822 = vmax.f32 %v3820, %v3821
    %v3823 = vrot.slane %v3822, 4
    %v3824 = vmax.f32 %v3822, %v3823
    %v3825 = vrot.slane %v3824, 2
    %v3826 = vmax.f32 %v3824, %v3825
    %v3827 = vrot.slane %v3826, 1
    %v3828 = vmax.f32 %v3826, %v3827
    %v3829 = vsel %vm469, %v3680, -inf
    %v3830 = vsel %vm469, %v3681, -inf
    %v3831 = vmax.f32 %v3829, %v3830
    %v3832 = vrot.slane %v3831, 4
    %v3833 = vmax.f32 %v3831, %v3832
    %v3834 = vrot.slane %v3833, 2
    %v3835 = vmax.f32 %v3833, %v3834
    %v3836 = vrot.slane %v3835, 1
    %v3837 = vmax.f32 %v3835, %v3836
    %v3838 = vsel %vm469, %v3682, -inf
    %v3839 = vsel %vm469, %v3683, -inf
    %v3840 = vmax.f32 %v3838, %v3839
    %v3841 = vrot.slane %v3840, 4
    %v3842 = vmax.f32 %v3840, %v3841
    %v3843 = vrot.slane %v3842, 2
    %v3844 = vmax.f32 %v3842, %v3843
    %v3845 = vrot.slane %v3844, 1
    %v3846 = vmax.f32 %v3844, %v3845
    %v3847 = vsel %vm469, %v3684, -inf
    %v3848 = vsel %vm469, %v3685, -inf
    %v3849 = vmax.f32 %v3847, %v3848
    %v3850 = vrot.slane %v3849, 4
    %v3851 = vmax.f32 %v3849, %v3850
    %v3852 = vrot.slane %v3851, 2
    %v3853 = vmax.f32 %v3851, %v3852
    %v3854 = vrot.slane %v3853, 1
    %v3855 = vmax.f32 %v3853, %v3854
    %v3856 = vsel %vm469, %v3686, -inf
    %v3857 = vsel %vm469, %v3687, -inf
    %v3858 = vmax.f32 %v3856, %v3857
    %v3859 = vrot.slane %v3858, 4
    %v3860 = vmax.f32 %v3858, %v3859
    %v3861 = vrot.slane %v3860, 2
    %v3862 = vmax.f32 %v3860, %v3861
    %v3863 = vrot.slane %v3862, 1
    %v3864 = vmax.f32 %v3862, %v3863
    %v3865 = vsel %vm469, %v3688, -inf
    %v3866 = vsel %vm469, %v3689, -inf
    %v3867 = vmax.f32 %v3865, %v3866
    %v3868 = vrot.slane %v3867, 4
    %v3869 = vmax.f32 %v3867, %v3868
    %v3870 = vrot.slane %v3869, 2
    %v3871 = vmax.f32 %v3869, %v3870
    %v3872 = vrot.slane %v3871, 1
    %v3873 = vmax.f32 %v3871, %v3872
    %v3874 = vsel %vm469, %v3690, -inf
    %v3875 = vsel %vm469, %v3691, -inf
    %v3876 = vmax.f32 %v3874, %v3875
    %v3877 = vrot.slane %v3876, 4
    %v3878 = vmax.f32 %v3876, %v3877
    %v3879 = vrot.slane %v3878, 2
    %v3880 = vmax.f32 %v3878, %v3879
    %v3881 = vrot.slane %v3880, 1
    %v3882 = vmax.f32 %v3880, %v3881
    %v3883 = vsel %vm469, %v3692, -inf
    %v3884 = vsel %vm469, %v3693, -inf
    %v3885 = vmax.f32 %v3883, %v3884
    %v3886 = vrot.slane %v3885, 4
    %v3887 = vmax.f32 %v3885, %v3886
    %v3888 = vrot.slane %v3887, 2
    %v3889 = vmax.f32 %v3887, %v3888
    %v3890 = vrot.slane %v3889, 1
    %v3891 = vmax.f32 %v3889, %v3890
    %v3892 = vsel %vm469, %v3694, -inf
    %v3893 = vsel %vm469, %v3695, -inf
    %v3894 = vmax.f32 %v3892, %v3893
    %v3895 = vrot.slane %v3894, 4
    %v3896 = vmax.f32 %v3894, %v3895
    %v3897 = vrot.slane %v3896, 2
    %v3898 = vmax.f32 %v3896, %v3897
    %v3899 = vrot.slane %v3898, 1
    %v3900 = vmax.f32 %v3898, %v3899
    %v3901 = vsel %vm469, %v3696, -inf
    %v3902 = vsel %vm469, %v3697, -inf
    %v3903 = vmax.f32 %v3901, %v3902
    %v3904 = vrot.slane %v3903, 4
    %v3905 = vmax.f32 %v3903, %v3904
    %v3906 = vrot.slane %v3905, 2
    %v3907 = vmax.f32 %v3905, %v3906
    %v3908 = vrot.slane %v3907, 1
    %v3909 = vmax.f32 %v3907, %v3908
    %v3910 = vsel %vm469, %v3698, -inf
    %v3911 = vsel %vm469, %v3699, -inf
    %v3912 = vmax.f32 %v3910, %v3911
    %v3913 = vrot.slane %v3912, 4
    %v3914 = vmax.f32 %v3912, %v3913
    %v3915 = vrot.slane %v3914, 2
    %v3916 = vmax.f32 %v3914, %v3915
    %v3917 = vrot.slane %v3916, 1
    %v3918 = vmax.f32 %v3916, %v3917
    %v3919 = vsel %vm469, %v3700, -inf
    %v3920 = vsel %vm469, %v3701, -inf
    %v3921 = vmax.f32 %v3919, %v3920
    %v3922 = vrot.slane %v3921, 4
    %v3923 = vmax.f32 %v3921, %v3922
    %v3924 = vrot.slane %v3923, 2
    %v3925 = vmax.f32 %v3923, %v3924
    %v3926 = vrot.slane %v3925, 1
    %v3927 = vmax.f32 %v3925, %v3926
    %v3928 = vsel %vm469, %v3702, -inf
    %v3929 = vsel %vm469, %v3703, -inf
    %v3930 = vmax.f32 %v3928, %v3929
    %v3931 = vrot.slane %v3930, 4
    %v3932 = vmax.f32 %v3930, %v3931
    %v3933 = vrot.slane %v3932, 2
    %v3934 = vmax.f32 %v3932, %v3933
    %v3935 = vrot.slane %v3934, 1
    %v3936 = vmax.f32 %v3934, %v3935
    %v3937 = vsel %vm469, %v3704, -inf
    %v3938 = vsel %vm469, %v3705, -inf
    %v3939 = vmax.f32 %v3937, %v3938
    %v3940 = vrot.slane %v3939, 4
    %v3941 = vmax.f32 %v3939, %v3940
    %v3942 = vrot.slane %v3941, 2
    %v3943 = vmax.f32 %v3941, %v3942
    %v3944 = vrot.slane %v3943, 1
    %v3945 = vmax.f32 %v3943, %v3944
    %v3946 = vsel %vm469, %v3706, -inf
    %v3947 = vsel %vm469, %v3707, -inf
    %v3948 = vmax.f32 %v3946, %v3947
    %v3949 = vrot.slane %v3948, 4
    %v3950 = vmax.f32 %v3948, %v3949
    %v3951 = vrot.slane %v3950, 2
    %v3952 = vmax.f32 %v3950, %v3951
    %v3953 = vrot.slane %v3952, 1
    %v3954 = vmax.f32 %v3952, %v3953
    %v3955 = vsel %vm469, %v3708, -inf
    %v3956 = vsel %vm469, %v3709, -inf
    %v3957 = vmax.f32 %v3955, %v3956
    %v3958 = vrot.slane %v3957, 4
    %v3959 = vmax.f32 %v3957, %v3958
    %v3960 = vrot.slane %v3959, 2
    %v3961 = vmax.f32 %v3959, %v3960
    %v3962 = vrot.slane %v3961, 1
    %v3963 = vmax.f32 %v3961, %v3962
    %v3964 = vsel %vm469, %v3710, -inf
    %v3965 = vsel %vm469, %v3711, -inf
    %v3966 = vmax.f32 %v3964, %v3965
    %v3967 = vrot.slane %v3966, 4
    %v3968 = vmax.f32 %v3966, %v3967
    %v3969 = vrot.slane %v3968, 2
    %v3970 = vmax.f32 %v3968, %v3969
    %v3971 = vrot.slane %v3970, 1
    %v3972 = vmax.f32 %v3970, %v3971
    %v3973 = vsel %vm469, %v3712, -inf
    %v3974 = vsel %vm469, %v3713, -inf
    %v3975 = vmax.f32 %v3973, %v3974
    %v3976 = vrot.slane %v3975, 4
    %v3977 = vmax.f32 %v3975, %v3976
    %v3978 = vrot.slane %v3977, 2
    %v3979 = vmax.f32 %v3977, %v3978
    %v3980 = vrot.slane %v3979, 1
    %v3981 = vmax.f32 %v3979, %v3980
    %v3982 = vsel %vm469, %v3714, -inf
    %v3983 = vsel %vm469, %v3715, -inf
    %v3984 = vmax.f32 %v3982, %v3983
    %v3985 = vrot.slane %v3984, 4
    %v3986 = vmax.f32 %v3984, %v3985
    %v3987 = vrot.slane %v3986, 2
    %v3988 = vmax.f32 %v3986, %v3987
    %v3989 = vrot.slane %v3988, 1
    %v3990 = vmax.f32 %v3988, %v3989
    %v3991 = vsel %vm469, %v3716, -inf
    %v3992 = vsel %vm469, %v3717, -inf
    %v3993 = vmax.f32 %v3991, %v3992
    %v3994 = vrot.slane %v3993, 4
    %v3995 = vmax.f32 %v3993, %v3994
    %v3996 = vrot.slane %v3995, 2
    %v3997 = vmax.f32 %v3995, %v3996
    %v3998 = vrot.slane %v3997, 1
    %v3999 = vmax.f32 %v3997, %v3998
    %v4000 = vsel %vm469, %v3718, -inf
    %v4001 = vsel %vm469, %v3719, -inf
    %v4002 = vmax.f32 %v4000, %v4001
    %v4003 = vrot.slane %v4002, 4
    %v4004 = vmax.f32 %v4002, %v4003
    %v4005 = vrot.slane %v4004, 2
    %v4006 = vmax.f32 %v4004, %v4005
    %v4007 = vrot.slane %v4006, 1
    %v4008 = vmax.f32 %v4006, %v4007
    %v4009 = vsel %vm469, %v3720, -inf
    %v4010 = vsel %vm469, %v3721, -inf
    %v4011 = vmax.f32 %v4009, %v4010
    %v4012 = vrot.slane %v4011, 4
    %v4013 = vmax.f32 %v4011, %v4012
    %v4014 = vrot.slane %v4013, 2
    %v4015 = vmax.f32 %v4013, %v4014
    %v4016 = vrot.slane %v4015, 1
    %v4017 = vmax.f32 %v4015, %v4016
    %v4018 = vsel %vm469, %v3722, -inf
    %v4019 = vsel %vm469, %v3723, -inf
    %v4020 = vmax.f32 %v4018, %v4019
    %v4021 = vrot.slane %v4020, 4
    %v4022 = vmax.f32 %v4020, %v4021
    %v4023 = vrot.slane %v4022, 2
    %v4024 = vmax.f32 %v4022, %v4023
    %v4025 = vrot.slane %v4024, 1
    %v4026 = vmax.f32 %v4024, %v4025
    %v4027 = vsel %vm469, %v3724, -inf
    %v4028 = vsel %vm469, %v3725, -inf
    %v4029 = vmax.f32 %v4027, %v4028
    %v4030 = vrot.slane %v4029, 4
    %v4031 = vmax.f32 %v4029, %v4030
    %v4032 = vrot.slane %v4031, 2
    %v4033 = vmax.f32 %v4031, %v4032
    %v4034 = vrot.slane %v4033, 1
    %v4035 = vmax.f32 %v4033, %v4034
    %v4036 = vsel %vm469, %v3726, -inf
    %v4037 = vsel %vm469, %v3727, -inf
    %v4038 = vmax.f32 %v4036, %v4037
    %v4039 = vrot.slane %v4038, 4
    %v4040 = vmax.f32 %v4038, %v4039
    %v4041 = vrot.slane %v4040, 2
    %v4042 = vmax.f32 %v4040, %v4041
    %v4043 = vrot.slane %v4042, 1
    %v4044 = vmax.f32 %v4042, %v4043
    %v4045 = vsel %vm469, %v3728, -inf
    %v4046 = vsel %vm469, %v3729, -inf
    %v4047 = vmax.f32 %v4045, %v4046
    %v4048 = vrot.slane %v4047, 4
    %v4049 = vmax.f32 %v4047, %v4048
    %v4050 = vrot.slane %v4049, 2
    %v4051 = vmax.f32 %v4049, %v4050
    %v4052 = vrot.slane %v4051, 1
    %v4053 = vmax.f32 %v4051, %v4052
    %v4054 = vsel %vm469, %v3730, -inf
    %v4055 = vsel %vm469, %v3731, -inf
    %v4056 = vmax.f32 %v4054, %v4055
    %v4057 = vrot.slane %v4056, 4
    %v4058 = vmax.f32 %v4056, %v4057
    %v4059 = vrot.slane %v4058, 2
    %v4060 = vmax.f32 %v4058, %v4059
    %v4061 = vrot.slane %v4060, 1
    %v4062 = vmax.f32 %v4060, %v4061
    %v4063 = vsel %vm469, %v3732, -inf
    %v4064 = vsel %vm469, %v3733, -inf
    %v4065 = vmax.f32 %v4063, %v4064
    %v4066 = vrot.slane %v4065, 4
    %v4067 = vmax.f32 %v4065, %v4066
    %v4068 = vrot.slane %v4067, 2
    %v4069 = vmax.f32 %v4067, %v4068
    %v4070 = vrot.slane %v4069, 1
    %v4071 = vmax.f32 %v4069, %v4070
    %v4072 = vsel %vm469, %v3734, -inf
    %v4073 = vsel %vm469, %v3735, -inf
    %v4074 = vmax.f32 %v4072, %v4073
    %v4075 = vrot.slane %v4074, 4
    %v4076 = vmax.f32 %v4074, %v4075
    %v4077 = vrot.slane %v4076, 2
    %v4078 = vmax.f32 %v4076, %v4077
    %v4079 = vrot.slane %v4078, 1
    %v4080 = vmax.f32 %v4078, %v4079
    %v4081 = vsel %vm469, %v3736, -inf
    %v4082 = vsel %vm469, %v3737, -inf
    %v4083 = vmax.f32 %v4081, %v4082
    %v4084 = vrot.slane %v4083, 4
    %v4085 = vmax.f32 %v4083, %v4084
    %v4086 = vrot.slane %v4085, 2
    %v4087 = vmax.f32 %v4085, %v4086
    %v4088 = vrot.slane %v4087, 1
    %v4089 = vmax.f32 %v4087, %v4088
    %v4090 = vsel %vm469, %v3738, -inf
    %v4091 = vsel %vm469, %v3739, -inf
    %v4092 = vmax.f32 %v4090, %v4091
    %v4093 = vrot.slane %v4092, 4
    %v4094 = vmax.f32 %v4092, %v4093
    %v4095 = vrot.slane %v4094, 2
    %v4096 = vmax.f32 %v4094, %v4095
    %v4097 = vrot.slane %v4096, 1
    %v4098 = vmax.f32 %v4096, %v4097
    %v4099 = vsel %vm469, %v3740, -inf
    %v4100 = vsel %vm469, %v3741, -inf
    %v4101 = vmax.f32 %v4099, %v4100
    %v4102 = vrot.slane %v4101, 4
    %v4103 = vmax.f32 %v4101, %v4102
    %v4104 = vrot.slane %v4103, 2
    %v4105 = vmax.f32 %v4103, %v4104
    %v4106 = vrot.slane %v4105, 1
    %v4107 = vmax.f32 %v4105, %v4106
    %v4108 = vsel %vm469, %v3742, -inf
    %v4109 = vsel %vm469, %v3743, -inf
    %v4110 = vmax.f32 %v4108, %v4109
    %v4111 = vrot.slane %v4110, 4
    %v4112 = vmax.f32 %v4110, %v4111
    %v4113 = vrot.slane %v4112, 2
    %v4114 = vmax.f32 %v4112, %v4113
    %v4115 = vrot.slane %v4114, 1
    %v4116 = vmax.f32 %v4114, %v4115
    %v4117 = vsel %vm469, %v3744, -inf
    %v4118 = vsel %vm469, %v3745, -inf
    %v4119 = vmax.f32 %v4117, %v4118
    %v4120 = vrot.slane %v4119, 4
    %v4121 = vmax.f32 %v4119, %v4120
    %v4122 = vrot.slane %v4121, 2
    %v4123 = vmax.f32 %v4121, %v4122
    %v4124 = vrot.slane %v4123, 1
    %v4125 = vmax.f32 %v4123, %v4124
    %v4126 = vsel %vm469, %v3746, -inf
    %v4127 = vsel %vm469, %v3747, -inf
    %v4128 = vmax.f32 %v4126, %v4127
    %v4129 = vrot.slane %v4128, 4
    %v4130 = vmax.f32 %v4128, %v4129
    %v4131 = vrot.slane %v4130, 2
    %v4132 = vmax.f32 %v4130, %v4131
    %v4133 = vrot.slane %v4132, 1
    %v4134 = vmax.f32 %v4132, %v4133
    %v4135 = vsel %vm469, %v3748, -inf
    %v4136 = vsel %vm469, %v3749, -inf
    %v4137 = vmax.f32 %v4135, %v4136
    %v4138 = vrot.slane %v4137, 4
    %v4139 = vmax.f32 %v4137, %v4138
    %v4140 = vrot.slane %v4139, 2
    %v4141 = vmax.f32 %v4139, %v4140
    %v4142 = vrot.slane %v4141, 1
    %v4143 = vmax.f32 %v4141, %v4142
    %v4144 = vsel %vm469, %v3750, -inf
    %v4145 = vsel %vm469, %v3751, -inf
    %v4146 = vmax.f32 %v4144, %v4145
    %v4147 = vrot.slane %v4146, 4
    %v4148 = vmax.f32 %v4146, %v4147
    %v4149 = vrot.slane %v4148, 2
    %v4150 = vmax.f32 %v4148, %v4149
    %v4151 = vrot.slane %v4150, 1
    %v4152 = vmax.f32 %v4150, %v4151
    %v4153 = vsel %vm469, %v3752, -inf
    %v4154 = vsel %vm469, %v3753, -inf
    %v4155 = vmax.f32 %v4153, %v4154
    %v4156 = vrot.slane %v4155, 4
    %v4157 = vmax.f32 %v4155, %v4156
    %v4158 = vrot.slane %v4157, 2
    %v4159 = vmax.f32 %v4157, %v4158
    %v4160 = vrot.slane %v4159, 1
    %v4161 = vmax.f32 %v4159, %v4160
    %v4162 = vsel %vm469, %v3754, -inf
    %v4163 = vsel %vm469, %v3755, -inf
    %v4164 = vmax.f32 %v4162, %v4163
    %v4165 = vrot.slane %v4164, 4
    %v4166 = vmax.f32 %v4164, %v4165
    %v4167 = vrot.slane %v4166, 2
    %v4168 = vmax.f32 %v4166, %v4167
    %v4169 = vrot.slane %v4168, 1
    %v4170 = vmax.f32 %v4168, %v4169
    %v4171 = vsel %vm469, %v3756, -inf
    %v4172 = vsel %vm469, %v3757, -inf
    %v4173 = vmax.f32 %v4171, %v4172
    %v4174 = vrot.slane %v4173, 4
    %v4175 = vmax.f32 %v4173, %v4174
    %v4176 = vrot.slane %v4175, 2
    %v4177 = vmax.f32 %v4175, %v4176
    %v4178 = vrot.slane %v4177, 1
    %v4179 = vmax.f32 %v4177, %v4178
    %v4180 = vsel %vm469, %v3758, -inf
    %v4181 = vsel %vm469, %v3759, -inf
    %v4182 = vmax.f32 %v4180, %v4181
    %v4183 = vrot.slane %v4182, 4
    %v4184 = vmax.f32 %v4182, %v4183
    %v4185 = vrot.slane %v4184, 2
    %v4186 = vmax.f32 %v4184, %v4185
    %v4187 = vrot.slane %v4186, 1
    %v4188 = vmax.f32 %v4186, %v4187
    %v4189 = vsel %vm469, %v3760, -inf
    %v4190 = vsel %vm469, %v3761, -inf
    %v4191 = vmax.f32 %v4189, %v4190
    %v4192 = vrot.slane %v4191, 4
    %v4193 = vmax.f32 %v4191, %v4192
    %v4194 = vrot.slane %v4193, 2
    %v4195 = vmax.f32 %v4193, %v4194
    %v4196 = vrot.slane %v4195, 1
    %v4197 = vmax.f32 %v4195, %v4196
    %v4198 = vsel %vm469, %v3762, -inf
    %v4199 = vsel %vm469, %v3763, -inf
    %v4200 = vmax.f32 %v4198, %v4199
    %v4201 = vrot.slane %v4200, 4
    %v4202 = vmax.f32 %v4200, %v4201
    %v4203 = vrot.slane %v4202, 2
    %v4204 = vmax.f32 %v4202, %v4203
    %v4205 = vrot.slane %v4204, 1
    %v4206 = vmax.f32 %v4204, %v4205
    %v4207 = vsel %vm469, %v3764, -inf
    %v4208 = vsel %vm469, %v3765, -inf
    %v4209 = vmax.f32 %v4207, %v4208
    %v4210 = vrot.slane %v4209, 4
    %v4211 = vmax.f32 %v4209, %v4210
    %v4212 = vrot.slane %v4211, 2
    %v4213 = vmax.f32 %v4211, %v4212
    %v4214 = vrot.slane %v4213, 1
    %v4215 = vmax.f32 %v4213, %v4214
    %v4216 = vsel %vm469, %v3766, -inf
    %v4217 = vsel %vm469, %v3767, -inf
    %v4218 = vmax.f32 %v4216, %v4217
    %v4219 = vrot.slane %v4218, 4
    %v4220 = vmax.f32 %v4218, %v4219
    %v4221 = vrot.slane %v4220, 2
    %v4222 = vmax.f32 %v4220, %v4221
    %v4223 = vrot.slane %v4222, 1
    %v4224 = vmax.f32 %v4222, %v4223
    %v4225 = vsel %vm469, %v3768, -inf
    %v4226 = vsel %vm469, %v3769, -inf
    %v4227 = vmax.f32 %v4225, %v4226
    %v4228 = vrot.slane %v4227, 4
    %v4229 = vmax.f32 %v4227, %v4228
    %v4230 = vrot.slane %v4229, 2
    %v4231 = vmax.f32 %v4229, %v4230
    %v4232 = vrot.slane %v4231, 1
    %v4233 = vmax.f32 %v4231, %v4232
    %v4234 = vsel %vm469, %v3770, -inf
    %v4235 = vsel %vm469, %v3771, -inf
    %v4236 = vmax.f32 %v4234, %v4235
    %v4237 = vrot.slane %v4236, 4
    %v4238 = vmax.f32 %v4236, %v4237
    %v4239 = vrot.slane %v4238, 2
    %v4240 = vmax.f32 %v4238, %v4239
    %v4241 = vrot.slane %v4240, 1
    %v4242 = vmax.f32 %v4240, %v4241
    %v4243 = vsel %vm469, %v3772, -inf
    %v4244 = vsel %vm469, %v3773, -inf
    %v4245 = vmax.f32 %v4243, %v4244
    %v4246 = vrot.slane %v4245, 4
    %v4247 = vmax.f32 %v4245, %v4246
    %v4248 = vrot.slane %v4247, 2
    %v4249 = vmax.f32 %v4247, %v4248
    %v4250 = vrot.slane %v4249, 1
    %v4251 = vmax.f32 %v4249, %v4250
    %v4252 = vsel %vm469, %v3774, -inf
    %v4253 = vsel %vm469, %v3775, -inf
    %v4254 = vmax.f32 %v4252, %v4253
    %v4255 = vrot.slane %v4254, 4
    %v4256 = vmax.f32 %v4254, %v4255
    %v4257 = vrot.slane %v4256, 2
    %v4258 = vmax.f32 %v4256, %v4257
    %v4259 = vrot.slane %v4258, 1
    %v4260 = vmax.f32 %v4258, %v4259
    %v4261 = vsel %vm469, %v3776, -inf
    %v4262 = vsel %vm469, %v3777, -inf
    %v4263 = vmax.f32 %v4261, %v4262
    %v4264 = vrot.slane %v4263, 4
    %v4265 = vmax.f32 %v4263, %v4264
    %v4266 = vrot.slane %v4265, 2
    %v4267 = vmax.f32 %v4265, %v4266
    %v4268 = vrot.slane %v4267, 1
    %v4269 = vmax.f32 %v4267, %v4268
    %v4270 = vsel %vm469, %v3778, -inf
    %v4271 = vsel %vm469, %v3779, -inf
    %v4272 = vmax.f32 %v4270, %v4271
    %v4273 = vrot.slane %v4272, 4
    %v4274 = vmax.f32 %v4272, %v4273
    %v4275 = vrot.slane %v4274, 2
    %v4276 = vmax.f32 %v4274, %v4275
    %v4277 = vrot.slane %v4276, 1
    %v4278 = vmax.f32 %v4276, %v4277
    %v4279 = vsel %vm469, %v3780, -inf
    %v4280 = vsel %vm469, %v3781, -inf
    %v4281 = vmax.f32 %v4279, %v4280
    %v4282 = vrot.slane %v4281, 4
    %v4283 = vmax.f32 %v4281, %v4282
    %v4284 = vrot.slane %v4283, 2
    %v4285 = vmax.f32 %v4283, %v4284
    %v4286 = vrot.slane %v4285, 1
    %v4287 = vmax.f32 %v4285, %v4286
    %v4288 = vsel %vm469, %v3782, -inf
    %v4289 = vsel %vm469, %v3783, -inf
    %v4290 = vmax.f32 %v4288, %v4289
    %v4291 = vrot.slane %v4290, 4
    %v4292 = vmax.f32 %v4290, %v4291
    %v4293 = vrot.slane %v4292, 2
    %v4294 = vmax.f32 %v4292, %v4293
    %v4295 = vrot.slane %v4294, 1
    %v4296 = vmax.f32 %v4294, %v4295
    %v4297 = vsel %vm469, %v3784, -inf
    %v4298 = vsel %vm469, %v3785, -inf
    %v4299 = vmax.f32 %v4297, %v4298
    %v4300 = vrot.slane %v4299, 4
    %v4301 = vmax.f32 %v4299, %v4300
    %v4302 = vrot.slane %v4301, 2
    %v4303 = vmax.f32 %v4301, %v4302
    %v4304 = vrot.slane %v4303, 1
    %v4305 = vmax.f32 %v4303, %v4304
    %v4306 = vsel %vm469, %v3786, -inf
    %v4307 = vsel %vm469, %v3787, -inf
    %v4308 = vmax.f32 %v4306, %v4307
    %v4309 = vrot.slane %v4308, 4
    %v4310 = vmax.f32 %v4308, %v4309
    %v4311 = vrot.slane %v4310, 2
    %v4312 = vmax.f32 %v4310, %v4311
    %v4313 = vrot.slane %v4312, 1
    %v4314 = vmax.f32 %v4312, %v4313
    %v4315 = vsel %vm469, %v3788, -inf
    %v4316 = vsel %vm469, %v3789, -inf
    %v4317 = vmax.f32 %v4315, %v4316
    %v4318 = vrot.slane %v4317, 4
    %v4319 = vmax.f32 %v4317, %v4318
    %v4320 = vrot.slane %v4319, 2
    %v4321 = vmax.f32 %v4319, %v4320
    %v4322 = vrot.slane %v4321, 1
    %v4323 = vmax.f32 %v4321, %v4322
    %v4324 = vsel %vm469, %v3790, -inf
    %v4325 = vsel %vm469, %v3791, -inf
    %v4326 = vmax.f32 %v4324, %v4325
    %v4327 = vrot.slane %v4326, 4
    %v4328 = vmax.f32 %v4326, %v4327
    %v4329 = vrot.slane %v4328, 2
    %v4330 = vmax.f32 %v4328, %v4329
    %v4331 = vrot.slane %v4330, 1
    %v4332 = vmax.f32 %v4330, %v4331
    %v4333 = vsel %vm469, %v3792, -inf
    %v4334 = vsel %vm469, %v3793, -inf
    %v4335 = vmax.f32 %v4333, %v4334
    %v4336 = vrot.slane %v4335, 4
    %v4337 = vmax.f32 %v4335, %v4336
    %v4338 = vrot.slane %v4337, 2
    %v4339 = vmax.f32 %v4337, %v4338
    %v4340 = vrot.slane %v4339, 1
    %v4341 = vmax.f32 %v4339, %v4340
    %v4342 = vsel %vm469, %v3794, -inf
    %v4343 = vsel %vm469, %v3795, -inf
    %v4344 = vmax.f32 %v4342, %v4343
    %v4345 = vrot.slane %v4344, 4
    %v4346 = vmax.f32 %v4344, %v4345
    %v4347 = vrot.slane %v4346, 2
    %v4348 = vmax.f32 %v4346, %v4347
    %v4349 = vrot.slane %v4348, 1
    %v4350 = vmax.f32 %v4348, %v4349
    %v4351 = vsel %vm469, %v3796, -inf
    %v4352 = vsel %vm469, %v3797, -inf
    %v4353 = vmax.f32 %v4351, %v4352
    %v4354 = vrot.slane %v4353, 4
    %v4355 = vmax.f32 %v4353, %v4354
    %v4356 = vrot.slane %v4355, 2
    %v4357 = vmax.f32 %v4355, %v4356
    %v4358 = vrot.slane %v4357, 1
    %v4359 = vmax.f32 %v4357, %v4358
    %v4360 = vsel %vm469, %v3798, -inf
    %v4361 = vsel %vm469, %v3799, -inf
    %v4362 = vmax.f32 %v4360, %v4361
    %v4363 = vrot.slane %v4362, 4
    %v4364 = vmax.f32 %v4362, %v4363
    %v4365 = vrot.slane %v4364, 2
    %v4366 = vmax.f32 %v4364, %v4365
    %v4367 = vrot.slane %v4366, 1
    %v4368 = vmax.f32 %v4366, %v4367
    %v4369 = vsel %vm469, %v3800, -inf
    %v4370 = vsel %vm469, %v3801, -inf
    %v4371 = vmax.f32 %v4369, %v4370
    %v4372 = vrot.slane %v4371, 4
    %v4373 = vmax.f32 %v4371, %v4372
    %v4374 = vrot.slane %v4373, 2
    %v4375 = vmax.f32 %v4373, %v4374
    %v4376 = vrot.slane %v4375, 1
    %v4377 = vmax.f32 %v4375, %v4376
    %v4378 = vand.u32 2147483647, %v3810
    %v4379 = vand.u32 2147483647, %v3819
    %v4380 = vand.u32 2147483647, %v3828
    %v4381 = vand.u32 2147483647, %v3837
    %v4382 = vand.u32 2147483647, %v3846
    %v4383 = vand.u32 2147483647, %v3855
    %v4384 = vand.u32 2147483647, %v3864
    %v4385 = vand.u32 2147483647, %v3873
    %v4386 = vand.u32 2147483647, %v3882
    %v4387 = vand.u32 2147483647, %v3891
    %v4388 = vand.u32 2147483647, %v3900
    %v4389 = vand.u32 2147483647, %v3909
    %v4390 = vand.u32 2147483647, %v3918
    %v4391 = vand.u32 2147483647, %v3927
    %v4392 = vand.u32 2147483647, %v3936
    %v4393 = vand.u32 2147483647, %v3945
    %v4394 = vand.u32 2147483647, %v3954
    %v4395 = vand.u32 2147483647, %v3963
    %v4396 = vand.u32 2147483647, %v3972
    %v4397 = vand.u32 2147483647, %v3981
    %v4398 = vand.u32 2147483647, %v3990
    %v4399 = vand.u32 2147483647, %v3999
    %v4400 = vand.u32 2147483647, %v4008
    %v4401 = vand.u32 2147483647, %v4017
    %v4402 = vand.u32 2147483647, %v4026
    %v4403 = vand.u32 2147483647, %v4035
    %v4404 = vand.u32 2147483647, %v4044
    %v4405 = vand.u32 2147483647, %v4053
    %v4406 = vand.u32 2147483647, %v4062
    %v4407 = vand.u32 2147483647, %v4071
    %v4408 = vand.u32 2147483647, %v4080
    %v4409 = vand.u32 2147483647, %v4089
    %v4410 = vand.u32 2147483647, %v4098
    %v4411 = vand.u32 2147483647, %v4107
    %v4412 = vand.u32 2147483647, %v4116
    %v4413 = vand.u32 2147483647, %v4125
    %v4414 = vand.u32 2147483647, %v4134
    %v4415 = vand.u32 2147483647, %v4143
    %v4416 = vand.u32 2147483647, %v4152
    %v4417 = vand.u32 2147483647, %v4161
    %v4418 = vand.u32 2147483647, %v4170
    %v4419 = vand.u32 2147483647, %v4179
    %v4420 = vand.u32 2147483647, %v4188
    %v4421 = vand.u32 2147483647, %v4197
    %v4422 = vand.u32 2147483647, %v4206
    %v4423 = vand.u32 2147483647, %v4215
    %v4424 = vand.u32 2147483647, %v4224
    %v4425 = vand.u32 2147483647, %v4233
    %v4426 = vand.u32 2147483647, %v4242
    %v4427 = vand.u32 2147483647, %v4251
    %v4428 = vand.u32 2147483647, %v4260
    %v4429 = vand.u32 2147483647, %v4269
    %v4430 = vand.u32 2147483647, %v4278
    %v4431 = vand.u32 2147483647, %v4287
    %v4432 = vand.u32 2147483647, %v4296
    %v4433 = vand.u32 2147483647, %v4305
    %v4434 = vand.u32 2147483647, %v4314
    %v4435 = vand.u32 2147483647, %v4323
    %v4436 = vand.u32 2147483647, %v4332
    %v4437 = vand.u32 2147483647, %v4341
    %v4438 = vand.u32 2147483647, %v4350
    %v4439 = vand.u32 2147483647, %v4359
    %v4440 = vand.u32 2147483647, %v4368
    %v4441 = vand.u32 2147483647, %v4377
    %vm4442 = vcmp.lt.f32.partialorder %v4378, inf
    %vm4443 = vcmp.lt.f32.partialorder %v4379, inf
    %vm4444 = vcmp.lt.f32.partialorder %v4380, inf
    %vm4445 = vcmp.lt.f32.partialorder %v4381, inf
    %vm4446 = vcmp.lt.f32.partialorder %v4382, inf
    %vm4447 = vcmp.lt.f32.partialorder %v4383, inf
    %vm4448 = vcmp.lt.f32.partialorder %v4384, inf
    %vm4449 = vcmp.lt.f32.partialorder %v4385, inf
    %vm4450 = vcmp.lt.f32.partialorder %v4386, inf
    %vm4451 = vcmp.lt.f32.partialorder %v4387, inf
    %vm4452 = vcmp.lt.f32.partialorder %v4388, inf
    %vm4453 = vcmp.lt.f32.partialorder %v4389, inf
    %vm4454 = vcmp.lt.f32.partialorder %v4390, inf
    %vm4455 = vcmp.lt.f32.partialorder %v4391, inf
    %vm4456 = vcmp.lt.f32.partialorder %v4392, inf
    %vm4457 = vcmp.lt.f32.partialorder %v4393, inf
    %vm4458 = vcmp.lt.f32.partialorder %v4394, inf
    %vm4459 = vcmp.lt.f32.partialorder %v4395, inf
    %vm4460 = vcmp.lt.f32.partialorder %v4396, inf
    %vm4461 = vcmp.lt.f32.partialorder %v4397, inf
    %vm4462 = vcmp.lt.f32.partialorder %v4398, inf
    %vm4463 = vcmp.lt.f32.partialorder %v4399, inf
    %vm4464 = vcmp.lt.f32.partialorder %v4400, inf
    %vm4465 = vcmp.lt.f32.partialorder %v4401, inf
    %vm4466 = vcmp.lt.f32.partialorder %v4402, inf
    %vm4467 = vcmp.lt.f32.partialorder %v4403, inf
    %vm4468 = vcmp.lt.f32.partialorder %v4404, inf
    %vm4469 = vcmp.lt.f32.partialorder %v4405, inf
    %vm4470 = vcmp.lt.f32.partialorder %v4406, inf
    %vm4471 = vcmp.lt.f32.partialorder %v4407, inf
    %vm4472 = vcmp.lt.f32.partialorder %v4408, inf
    %vm4473 = vcmp.lt.f32.partialorder %v4409, inf
    %vm4474 = vcmp.lt.f32.partialorder %v4410, inf
    %vm4475 = vcmp.lt.f32.partialorder %v4411, inf
    %vm4476 = vcmp.lt.f32.partialorder %v4412, inf
    %vm4477 = vcmp.lt.f32.partialorder %v4413, inf
    %vm4478 = vcmp.lt.f32.partialorder %v4414, inf
    %vm4479 = vcmp.lt.f32.partialorder %v4415, inf
    %vm4480 = vcmp.lt.f32.partialorder %v4416, inf
    %vm4481 = vcmp.lt.f32.partialorder %v4417, inf
    %vm4482 = vcmp.lt.f32.partialorder %v4418, inf
    %vm4483 = vcmp.lt.f32.partialorder %v4419, inf
    %vm4484 = vcmp.lt.f32.partialorder %v4420, inf
    %vm4485 = vcmp.lt.f32.partialorder %v4421, inf
    %vm4486 = vcmp.lt.f32.partialorder %v4422, inf
    %vm4487 = vcmp.lt.f32.partialorder %v4423, inf
    %vm4488 = vcmp.lt.f32.partialorder %v4424, inf
    %vm4489 = vcmp.lt.f32.partialorder %v4425, inf
    %vm4490 = vcmp.lt.f32.partialorder %v4426, inf
    %vm4491 = vcmp.lt.f32.partialorder %v4427, inf
    %vm4492 = vcmp.lt.f32.partialorder %v4428, inf
    %vm4493 = vcmp.lt.f32.partialorder %v4429, inf
    %vm4494 = vcmp.lt.f32.partialorder %v4430, inf
    %vm4495 = vcmp.lt.f32.partialorder %v4431, inf
    %vm4496 = vcmp.lt.f32.partialorder %v4432, inf
    %vm4497 = vcmp.lt.f32.partialorder %v4433, inf
    %vm4498 = vcmp.lt.f32.partialorder %v4434, inf
    %vm4499 = vcmp.lt.f32.partialorder %v4435, inf
    %vm4500 = vcmp.lt.f32.partialorder %v4436, inf
    %vm4501 = vcmp.lt.f32.partialorder %v4437, inf
    %vm4502 = vcmp.lt.f32.partialorder %v4438, inf
    %vm4503 = vcmp.lt.f32.partialorder %v4439, inf
    %vm4504 = vcmp.lt.f32.partialorder %v4440, inf
    %vm4505 = vcmp.lt.f32.partialorder %v4441, inf
    %vm4506 = vmxor %vm4442, 1
    %vm4507 = vmxor %vm4443, 1
    %vm4508 = vmxor %vm4444, 1
    %vm4509 = vmxor %vm4445, 1
    %vm4510 = vmxor %vm4446, 1
    %vm4511 = vmxor %vm4447, 1
    %vm4512 = vmxor %vm4448, 1
    %vm4513 = vmxor %vm4449, 1
    %vm4514 = vmxor %vm4450, 1
    %vm4515 = vmxor %vm4451, 1
    %vm4516 = vmxor %vm4452, 1
    %vm4517 = vmxor %vm4453, 1
    %vm4518 = vmxor %vm4454, 1
    %vm4519 = vmxor %vm4455, 1
    %vm4520 = vmxor %vm4456, 1
    %vm4521 = vmxor %vm4457, 1
    %vm4522 = vmxor %vm4458, 1
    %vm4523 = vmxor %vm4459, 1
    %vm4524 = vmxor %vm4460, 1
    %vm4525 = vmxor %vm4461, 1
    %vm4526 = vmxor %vm4462, 1
    %vm4527 = vmxor %vm4463, 1
    %vm4528 = vmxor %vm4464, 1
    %vm4529 = vmxor %vm4465, 1
    %vm4530 = vmxor %vm4466, 1
    %vm4531 = vmxor %vm4467, 1
    %vm4532 = vmxor %vm4468, 1
    %vm4533 = vmxor %vm4469, 1
    %vm4534 = vmxor %vm4470, 1
    %vm4535 = vmxor %vm4471, 1
    %vm4536 = vmxor %vm4472, 1
    %vm4537 = vmxor %vm4473, 1
    %vm4538 = vmxor %vm4474, 1
    %vm4539 = vmxor %vm4475, 1
    %vm4540 = vmxor %vm4476, 1
    %vm4541 = vmxor %vm4477, 1
    %vm4542 = vmxor %vm4478, 1
    %vm4543 = vmxor %vm4479, 1
    %vm4544 = vmxor %vm4480, 1
    %vm4545 = vmxor %vm4481, 1
    %vm4546 = vmxor %vm4482, 1
    %vm4547 = vmxor %vm4483, 1
    %vm4548 = vmxor %vm4484, 1
    %vm4549 = vmxor %vm4485, 1
    %vm4550 = vmxor %vm4486, 1
    %vm4551 = vmxor %vm4487, 1
    %vm4552 = vmxor %vm4488, 1
    %vm4553 = vmxor %vm4489, 1
    %vm4554 = vmxor %vm4490, 1
    %vm4555 = vmxor %vm4491, 1
    %vm4556 = vmxor %vm4492, 1
    %vm4557 = vmxor %vm4493, 1
    %vm4558 = vmxor %vm4494, 1
    %vm4559 = vmxor %vm4495, 1
    %vm4560 = vmxor %vm4496, 1
    %vm4561 = vmxor %vm4497, 1
    %vm4562 = vmxor %vm4498, 1
    %vm4563 = vmxor %vm4499, 1
    %vm4564 = vmxor %vm4500, 1
    %vm4565 = vmxor %vm4501, 1
    %vm4566 = vmxor %vm4502, 1
    %vm4567 = vmxor %vm4503, 1
    %vm4568 = vmxor %vm4504, 1
    %vm4569 = vmxor %vm4505, 1
    %v4570 = vsel %vm4506, 1, 0
    %v4571 = vsel %vm4507, 1, 0
    %v4572 = vsel %vm4508, 1, 0
    %v4573 = vsel %vm4509, 1, 0
    %v4574 = vsel %vm4510, 1, 0
    %v4575 = vsel %vm4511, 1, 0
    %v4576 = vsel %vm4512, 1, 0
    %v4577 = vsel %vm4513, 1, 0
    %v4578 = vsel %vm4514, 1, 0
    %v4579 = vsel %vm4515, 1, 0
    %v4580 = vsel %vm4516, 1, 0
    %v4581 = vsel %vm4517, 1, 0
    %v4582 = vsel %vm4518, 1, 0
    %v4583 = vsel %vm4519, 1, 0
    %v4584 = vsel %vm4520, 1, 0
    %v4585 = vsel %vm4521, 1, 0
    %v4586 = vsel %vm4522, 1, 0
    %v4587 = vsel %vm4523, 1, 0
    %v4588 = vsel %vm4524, 1, 0
    %v4589 = vsel %vm4525, 1, 0
    %v4590 = vsel %vm4526, 1, 0
    %v4591 = vsel %vm4527, 1, 0
    %v4592 = vsel %vm4528, 1, 0
    %v4593 = vsel %vm4529, 1, 0
    %v4594 = vsel %vm4530, 1, 0
    %v4595 = vsel %vm4531, 1, 0
    %v4596 = vsel %vm4532, 1, 0
    %v4597 = vsel %vm4533, 1, 0
    %v4598 = vsel %vm4534, 1, 0
    %v4599 = vsel %vm4535, 1, 0
    %v4600 = vsel %vm4536, 1, 0
    %v4601 = vsel %vm4537, 1, 0
    %v4602 = vsel %vm4538, 1, 0
    %v4603 = vsel %vm4539, 1, 0
    %v4604 = vsel %vm4540, 1, 0
    %v4605 = vsel %vm4541, 1, 0
    %v4606 = vsel %vm4542, 1, 0
    %v4607 = vsel %vm4543, 1, 0
    %v4608 = vsel %vm4544, 1, 0
    %v4609 = vsel %vm4545, 1, 0
    %v4610 = vsel %vm4546, 1, 0
    %v4611 = vsel %vm4547, 1, 0
    %v4612 = vsel %vm4548, 1, 0
    %v4613 = vsel %vm4549, 1, 0
    %v4614 = vsel %vm4550, 1, 0
    %v4615 = vsel %vm4551, 1, 0
    %v4616 = vsel %vm4552, 1, 0
    %v4617 = vsel %vm4553, 1, 0
    %v4618 = vsel %vm4554, 1, 0
    %v4619 = vsel %vm4555, 1, 0
    %v4620 = vsel %vm4556, 1, 0
    %v4621 = vsel %vm4557, 1, 0
    %v4622 = vsel %vm4558, 1, 0
    %v4623 = vsel %vm4559, 1, 0
    %v4624 = vsel %vm4560, 1, 0
    %v4625 = vsel %vm4561, 1, 0
    %v4626 = vsel %vm4562, 1, 0
    %v4627 = vsel %vm4563, 1, 0
    %v4628 = vsel %vm4564, 1, 0
    %v4629 = vsel %vm4565, 1, 0
    %v4630 = vsel %vm4566, 1, 0
    %v4631 = vsel %vm4567, 1, 0
    %v4632 = vsel %vm4568, 1, 0
    %v4633 = vsel %vm4569, 1, 0
    %4634 = vset.pattern.permute.xlu0 0
    %4635 = vperm.xlu0 %4634, %v4570
    %v4636 = vpop.permute.xlu0 %4635
    %4637 = vset.pattern.permute.xlu0 0
    %4638 = vperm.xlu0 %4637, %v4571
    %v4639 = vpop.permute.xlu0 %4638
    %4640 = vset.pattern.permute.xlu0 0
    %4641 = vperm.xlu0 %4640, %v4572
    %v4642 = vpop.permute.xlu0 %4641
    %4643 = vset.pattern.permute.xlu0 0
    %4644 = vperm.xlu0 %4643, %v4573
    %v4645 = vpop.permute.xlu0 %4644
    %4646 = vset.pattern.permute.xlu0 0
    %4647 = vperm.xlu0 %4646, %v4574
    %v4648 = vpop.permute.xlu0 %4647
    %4649 = vset.pattern.permute.xlu0 0
    %4650 = vperm.xlu0 %4649, %v4575
    %v4651 = vpop.permute.xlu0 %4650
    %4652 = vset.pattern.permute.xlu0 0
    %4653 = vperm.xlu0 %4652, %v4576
    %v4654 = vpop.permute.xlu0 %4653
    %4655 = vset.pattern.permute.xlu0 0
    %4656 = vperm.xlu0 %4655, %v4577
    %v4657 = vpop.permute.xlu0 %4656
    %4658 = vset.pattern.permute.xlu0 0
    %4659 = vperm.xlu0 %4658, %v4578
    %v4660 = vpop.permute.xlu0 %4659
    %4661 = vset.pattern.permute.xlu0 0
    %4662 = vperm.xlu0 %4661, %v4579
    %v4663 = vpop.permute.xlu0 %4662
    %4664 = vset.pattern.permute.xlu0 0
    %4665 = vperm.xlu0 %4664, %v4580
    %v4666 = vpop.permute.xlu0 %4665
    %4667 = vset.pattern.permute.xlu0 0
    %4668 = vperm.xlu0 %4667, %v4581
    %v4669 = vpop.permute.xlu0 %4668
    %4670 = vset.pattern.permute.xlu0 0
    %4671 = vperm.xlu0 %4670, %v4582
    %v4672 = vpop.permute.xlu0 %4671
    %4673 = vset.pattern.permute.xlu0 0
    %4674 = vperm.xlu0 %4673, %v4583
    %v4675 = vpop.permute.xlu0 %4674
    %4676 = vset.pattern.permute.xlu0 0
    %4677 = vperm.xlu0 %4676, %v4584
    %v4678 = vpop.permute.xlu0 %4677
    %4679 = vset.pattern.permute.xlu0 0
    %4680 = vperm.xlu0 %4679, %v4585
    %v4681 = vpop.permute.xlu0 %4680
    %4682 = vset.pattern.permute.xlu0 0
    %4683 = vperm.xlu0 %4682, %v4586
    %v4684 = vpop.permute.xlu0 %4683
    %4685 = vset.pattern.permute.xlu0 0
    %4686 = vperm.xlu0 %4685, %v4587
    %v4687 = vpop.permute.xlu0 %4686
    %4688 = vset.pattern.permute.xlu0 0
    %4689 = vperm.xlu0 %4688, %v4588
    %v4690 = vpop.permute.xlu0 %4689
    %4691 = vset.pattern.permute.xlu0 0
    %4692 = vperm.xlu0 %4691, %v4589
    %v4693 = vpop.permute.xlu0 %4692
    %4694 = vset.pattern.permute.xlu0 0
    %4695 = vperm.xlu0 %4694, %v4590
    %v4696 = vpop.permute.xlu0 %4695
    %4697 = vset.pattern.permute.xlu0 0
    %4698 = vperm.xlu0 %4697, %v4591
    %v4699 = vpop.permute.xlu0 %4698
    %4700 = vset.pattern.permute.xlu0 0
    %4701 = vperm.xlu0 %4700, %v4592
    %v4702 = vpop.permute.xlu0 %4701
    %4703 = vset.pattern.permute.xlu0 0
    %4704 = vperm.xlu0 %4703, %v4593
    %v4705 = vpop.permute.xlu0 %4704
    %4706 = vset.pattern.permute.xlu0 0
    %4707 = vperm.xlu0 %4706, %v4594
    %v4708 = vpop.permute.xlu0 %4707
    %4709 = vset.pattern.permute.xlu0 0
    %4710 = vperm.xlu0 %4709, %v4595
    %v4711 = vpop.permute.xlu0 %4710
    %4712 = vset.pattern.permute.xlu0 0
    %4713 = vperm.xlu0 %4712, %v4596
    %v4714 = vpop.permute.xlu0 %4713
    %4715 = vset.pattern.permute.xlu0 0
    %4716 = vperm.xlu0 %4715, %v4597
    %v4717 = vpop.permute.xlu0 %4716
    %4718 = vset.pattern.permute.xlu0 0
    %4719 = vperm.xlu0 %4718, %v4598
    %v4720 = vpop.permute.xlu0 %4719
    %4721 = vset.pattern.permute.xlu0 0
    %4722 = vperm.xlu0 %4721, %v4599
    %v4723 = vpop.permute.xlu0 %4722
    %4724 = vset.pattern.permute.xlu0 0
    %4725 = vperm.xlu0 %4724, %v4600
    %v4726 = vpop.permute.xlu0 %4725
    %4727 = vset.pattern.permute.xlu0 0
    %4728 = vperm.xlu0 %4727, %v4601
    %v4729 = vpop.permute.xlu0 %4728
    %4730 = vset.pattern.permute.xlu0 0
    %4731 = vperm.xlu0 %4730, %v4602
    %v4732 = vpop.permute.xlu0 %4731
    %4733 = vset.pattern.permute.xlu0 0
    %4734 = vperm.xlu0 %4733, %v4603
    %v4735 = vpop.permute.xlu0 %4734
    %4736 = vset.pattern.permute.xlu0 0
    %4737 = vperm.xlu0 %4736, %v4604
    %v4738 = vpop.permute.xlu0 %4737
    %4739 = vset.pattern.permute.xlu0 0
    %4740 = vperm.xlu0 %4739, %v4605
    %v4741 = vpop.permute.xlu0 %4740
    %4742 = vset.pattern.permute.xlu0 0
    %4743 = vperm.xlu0 %4742, %v4606
    %v4744 = vpop.permute.xlu0 %4743
    %4745 = vset.pattern.permute.xlu0 0
    %4746 = vperm.xlu0 %4745, %v4607
    %v4747 = vpop.permute.xlu0 %4746
    %4748 = vset.pattern.permute.xlu0 0
    %4749 = vperm.xlu0 %4748, %v4608
    %v4750 = vpop.permute.xlu0 %4749
    %4751 = vset.pattern.permute.xlu0 0
    %4752 = vperm.xlu0 %4751, %v4609
    %v4753 = vpop.permute.xlu0 %4752
    %4754 = vset.pattern.permute.xlu0 0
    %4755 = vperm.xlu0 %4754, %v4610
    %v4756 = vpop.permute.xlu0 %4755
    %4757 = vset.pattern.permute.xlu0 0
    %4758 = vperm.xlu0 %4757, %v4611
    %v4759 = vpop.permute.xlu0 %4758
    %4760 = vset.pattern.permute.xlu0 0
    %4761 = vperm.xlu0 %4760, %v4612
    %v4762 = vpop.permute.xlu0 %4761
    %4763 = vset.pattern.permute.xlu0 0
    %4764 = vperm.xlu0 %4763, %v4613
    %v4765 = vpop.permute.xlu0 %4764
    %4766 = vset.pattern.permute.xlu0 0
    %4767 = vperm.xlu0 %4766, %v4614
    %v4768 = vpop.permute.xlu0 %4767
    %4769 = vset.pattern.permute.xlu0 0
    %4770 = vperm.xlu0 %4769, %v4615
    %v4771 = vpop.permute.xlu0 %4770
    %4772 = vset.pattern.permute.xlu0 0
    %4773 = vperm.xlu0 %4772, %v4616
    %v4774 = vpop.permute.xlu0 %4773
    %4775 = vset.pattern.permute.xlu0 0
    %4776 = vperm.xlu0 %4775, %v4617
    %v4777 = vpop.permute.xlu0 %4776
    %4778 = vset.pattern.permute.xlu0 0
    %4779 = vperm.xlu0 %4778, %v4618
    %v4780 = vpop.permute.xlu0 %4779
    %4781 = vset.pattern.permute.xlu0 0
    %4782 = vperm.xlu0 %4781, %v4619
    %v4783 = vpop.permute.xlu0 %4782
    %4784 = vset.pattern.permute.xlu0 0
    %4785 = vperm.xlu0 %4784, %v4620
    %v4786 = vpop.permute.xlu0 %4785
    %4787 = vset.pattern.permute.xlu0 0
    %4788 = vperm.xlu0 %4787, %v4621
    %v4789 = vpop.permute.xlu0 %4788
    %4790 = vset.pattern.permute.xlu0 0
    %4791 = vperm.xlu0 %4790, %v4622
    %v4792 = vpop.permute.xlu0 %4791
    %4793 = vset.pattern.permute.xlu0 0
    %4794 = vperm.xlu0 %4793, %v4623
    %v4795 = vpop.permute.xlu0 %4794
    %4796 = vset.pattern.permute.xlu0 0
    %4797 = vperm.xlu0 %4796, %v4624
    %v4798 = vpop.permute.xlu0 %4797
    %4799 = vset.pattern.permute.xlu0 0
    %4800 = vperm.xlu0 %4799, %v4625
    %v4801 = vpop.permute.xlu0 %4800
    %4802 = vset.pattern.permute.xlu0 0
    %4803 = vperm.xlu0 %4802, %v4626
    %v4804 = vpop.permute.xlu0 %4803
    %4805 = vset.pattern.permute.xlu0 0
    %4806 = vperm.xlu0 %4805, %v4627
    %v4807 = vpop.permute.xlu0 %4806
    %4808 = vset.pattern.permute.xlu0 0
    %4809 = vperm.xlu0 %4808, %v4628
    %v4810 = vpop.permute.xlu0 %4809
    %4811 = vset.pattern.permute.xlu0 0
    %4812 = vperm.xlu0 %4811, %v4629
    %v4813 = vpop.permute.xlu0 %4812
    %4814 = vset.pattern.permute.xlu0 0
    %4815 = vperm.xlu0 %4814, %v4630
    %v4816 = vpop.permute.xlu0 %4815
    %4817 = vset.pattern.permute.xlu0 0
    %4818 = vperm.xlu0 %4817, %v4631
    %v4819 = vpop.permute.xlu0 %4818
    %4820 = vset.pattern.permute.xlu0 0
    %4821 = vperm.xlu0 %4820, %v4632
    %v4822 = vpop.permute.xlu0 %4821
    %4823 = vset.pattern.permute.xlu0 0
    %4824 = vperm.xlu0 %4823, %v4633
    %v4825 = vpop.permute.xlu0 %4824
    %vm4826 = vcmp.eq.s32.totalorder %v4636, 1
    %vm4827 = vcmp.eq.s32.totalorder %v4639, 1
    %vm4828 = vcmp.eq.s32.totalorder %v4642, 1
    %vm4829 = vcmp.eq.s32.totalorder %v4645, 1
    %vm4830 = vcmp.eq.s32.totalorder %v4648, 1
    %vm4831 = vcmp.eq.s32.totalorder %v4651, 1
    %vm4832 = vcmp.eq.s32.totalorder %v4654, 1
    %vm4833 = vcmp.eq.s32.totalorder %v4657, 1
    %vm4834 = vcmp.eq.s32.totalorder %v4660, 1
    %vm4835 = vcmp.eq.s32.totalorder %v4663, 1
    %vm4836 = vcmp.eq.s32.totalorder %v4666, 1
    %vm4837 = vcmp.eq.s32.totalorder %v4669, 1
    %vm4838 = vcmp.eq.s32.totalorder %v4672, 1
    %vm4839 = vcmp.eq.s32.totalorder %v4675, 1
    %vm4840 = vcmp.eq.s32.totalorder %v4678, 1
    %vm4841 = vcmp.eq.s32.totalorder %v4681, 1
    %vm4842 = vcmp.eq.s32.totalorder %v4684, 1
    %vm4843 = vcmp.eq.s32.totalorder %v4687, 1
    %vm4844 = vcmp.eq.s32.totalorder %v4690, 1
    %vm4845 = vcmp.eq.s32.totalorder %v4693, 1
    %vm4846 = vcmp.eq.s32.totalorder %v4696, 1
    %vm4847 = vcmp.eq.s32.totalorder %v4699, 1
    %vm4848 = vcmp.eq.s32.totalorder %v4702, 1
    %vm4849 = vcmp.eq.s32.totalorder %v4705, 1
    %vm4850 = vcmp.eq.s32.totalorder %v4708, 1
    %vm4851 = vcmp.eq.s32.totalorder %v4711, 1
    %vm4852 = vcmp.eq.s32.totalorder %v4714, 1
    %vm4853 = vcmp.eq.s32.totalorder %v4717, 1
    %vm4854 = vcmp.eq.s32.totalorder %v4720, 1
    %vm4855 = vcmp.eq.s32.totalorder %v4723, 1
    %vm4856 = vcmp.eq.s32.totalorder %v4726, 1
    %vm4857 = vcmp.eq.s32.totalorder %v4729, 1
    %vm4858 = vcmp.eq.s32.totalorder %v4732, 1
    %vm4859 = vcmp.eq.s32.totalorder %v4735, 1
    %vm4860 = vcmp.eq.s32.totalorder %v4738, 1
    %vm4861 = vcmp.eq.s32.totalorder %v4741, 1
    %vm4862 = vcmp.eq.s32.totalorder %v4744, 1
    %vm4863 = vcmp.eq.s32.totalorder %v4747, 1
    %vm4864 = vcmp.eq.s32.totalorder %v4750, 1
    %vm4865 = vcmp.eq.s32.totalorder %v4753, 1
    %vm4866 = vcmp.eq.s32.totalorder %v4756, 1
    %vm4867 = vcmp.eq.s32.totalorder %v4759, 1
    %vm4868 = vcmp.eq.s32.totalorder %v4762, 1
    %vm4869 = vcmp.eq.s32.totalorder %v4765, 1
    %vm4870 = vcmp.eq.s32.totalorder %v4768, 1
    %vm4871 = vcmp.eq.s32.totalorder %v4771, 1
    %vm4872 = vcmp.eq.s32.totalorder %v4774, 1
    %vm4873 = vcmp.eq.s32.totalorder %v4777, 1
    %vm4874 = vcmp.eq.s32.totalorder %v4780, 1
    %vm4875 = vcmp.eq.s32.totalorder %v4783, 1
    %vm4876 = vcmp.eq.s32.totalorder %v4786, 1
    %vm4877 = vcmp.eq.s32.totalorder %v4789, 1
    %vm4878 = vcmp.eq.s32.totalorder %v4792, 1
    %vm4879 = vcmp.eq.s32.totalorder %v4795, 1
    %vm4880 = vcmp.eq.s32.totalorder %v4798, 1
    %vm4881 = vcmp.eq.s32.totalorder %v4801, 1
    %vm4882 = vcmp.eq.s32.totalorder %v4804, 1
    %vm4883 = vcmp.eq.s32.totalorder %v4807, 1
    %vm4884 = vcmp.eq.s32.totalorder %v4810, 1
    %vm4885 = vcmp.eq.s32.totalorder %v4813, 1
    %vm4886 = vcmp.eq.s32.totalorder %v4816, 1
    %vm4887 = vcmp.eq.s32.totalorder %v4819, 1
    %vm4888 = vcmp.eq.s32.totalorder %v4822, 1
    %vm4889 = vcmp.eq.s32.totalorder %v4825, 1
    %v4890 = vsel %vm4826, 0.0, %v3810
    %v4891 = vsel %vm4827, 0.0, %v3819
    %v4892 = vsel %vm4828, 0.0, %v3828
    %v4893 = vsel %vm4829, 0.0, %v3837
    %v4894 = vsel %vm4830, 0.0, %v3846
    %v4895 = vsel %vm4831, 0.0, %v3855
    %v4896 = vsel %vm4832, 0.0, %v3864
    %v4897 = vsel %vm4833, 0.0, %v3873
    %v4898 = vsel %vm4834, 0.0, %v3882
    %v4899 = vsel %vm4835, 0.0, %v3891
    %v4900 = vsel %vm4836, 0.0, %v3900
    %v4901 = vsel %vm4837, 0.0, %v3909
    %v4902 = vsel %vm4838, 0.0, %v3918
    %v4903 = vsel %vm4839, 0.0, %v3927
    %v4904 = vsel %vm4840, 0.0, %v3936
    %v4905 = vsel %vm4841, 0.0, %v3945
    %v4906 = vsel %vm4842, 0.0, %v3954
    %v4907 = vsel %vm4843, 0.0, %v3963
    %v4908 = vsel %vm4844, 0.0, %v3972
    %v4909 = vsel %vm4845, 0.0, %v3981
    %v4910 = vsel %vm4846, 0.0, %v3990
    %v4911 = vsel %vm4847, 0.0, %v3999
    %v4912 = vsel %vm4848, 0.0, %v4008
    %v4913 = vsel %vm4849, 0.0, %v4017
    %v4914 = vsel %vm4850, 0.0, %v4026
    %v4915 = vsel %vm4851, 0.0, %v4035
    %v4916 = vsel %vm4852, 0.0, %v4044
    %v4917 = vsel %vm4853, 0.0, %v4053
    %v4918 = vsel %vm4854, 0.0, %v4062
    %v4919 = vsel %vm4855, 0.0, %v4071
    %v4920 = vsel %vm4856, 0.0, %v4080
    %v4921 = vsel %vm4857, 0.0, %v4089
    %v4922 = vsel %vm4858, 0.0, %v4098
    %v4923 = vsel %vm4859, 0.0, %v4107
    %v4924 = vsel %vm4860, 0.0, %v4116
    %v4925 = vsel %vm4861, 0.0, %v4125
    %v4926 = vsel %vm4862, 0.0, %v4134
    %v4927 = vsel %vm4863, 0.0, %v4143
    %v4928 = vsel %vm4864, 0.0, %v4152
    %v4929 = vsel %vm4865, 0.0, %v4161
    %v4930 = vsel %vm4866, 0.0, %v4170
    %v4931 = vsel %vm4867, 0.0, %v4179
    %v4932 = vsel %vm4868, 0.0, %v4188
    %v4933 = vsel %vm4869, 0.0, %v4197
    %v4934 = vsel %vm4870, 0.0, %v4206
    %v4935 = vsel %vm4871, 0.0, %v4215
    %v4936 = vsel %vm4872, 0.0, %v4224
    %v4937 = vsel %vm4873, 0.0, %v4233
    %v4938 = vsel %vm4874, 0.0, %v4242
    %v4939 = vsel %vm4875, 0.0, %v4251
    %v4940 = vsel %vm4876, 0.0, %v4260
    %v4941 = vsel %vm4877, 0.0, %v4269
    %v4942 = vsel %vm4878, 0.0, %v4278
    %v4943 = vsel %vm4879, 0.0, %v4287
    %v4944 = vsel %vm4880, 0.0, %v4296
    %v4945 = vsel %vm4881, 0.0, %v4305
    %v4946 = vsel %vm4882, 0.0, %v4314
    %v4947 = vsel %vm4883, 0.0, %v4323
    %v4948 = vsel %vm4884, 0.0, %v4332
    %v4949 = vsel %vm4885, 0.0, %v4341
    %v4950 = vsel %vm4886, 0.0, %v4350
    %v4951 = vsel %vm4887, 0.0, %v4359
    %v4952 = vsel %vm4888, 0.0, %v4368
    %v4953 = vsel %vm4889, 0.0, %v4377
    %v4954 = vld [vmem:[%s1 + $0xf0] sm:$0xff]
    %v4955 = vld [vmem:[%s1 + $0xf8] sm:$0xff]
    %v4956 = vld [vmem:[%s1 + $0x100] sm:$0xff]
    %v4957 = vld [vmem:[%s1 + $0x108] sm:$0xff]
    %v4958 = vld [vmem:[%s1 + $0x110] sm:$0xff]
    %v4959 = vld [vmem:[%s1 + $0x118] sm:$0xff]
    %v4960 = vld [vmem:[%s1 + $0x120] sm:$0xff]
    %v4961 = vld [vmem:[%s1 + $0x128] sm:$0xff]
    %vm5026 = vcmask 1041409
    %v5027 = vsel %vm5026, %v4891, %v4890
    %vm5028 = vcmask 1042434
    %v5029 = vsel %vm5028, %v4892, %v5027
    %vm5030 = vcmask 1043459
    %v5031 = vsel %vm5030, %v4893, %v5029
    %vm5032 = vcmask 1044484
    %v5033 = vsel %vm5032, %v4894, %v5031
    %vm5034 = vcmask 1045509
    %v5035 = vsel %vm5034, %v4895, %v5033
    %vm5036 = vcmask 1046534
    %v5037 = vsel %vm5036, %v4896, %v5035
    %vm5038 = vcmask 1047559
    %v5039 = vsel %vm5038, %v4897, %v5037
    %v5040 = vsel %vm5026, %v4899, %v4898
    %v5041 = vsel %vm5028, %v4900, %v5040
    %v5042 = vsel %vm5030, %v4901, %v5041
    %v5043 = vsel %vm5032, %v4902, %v5042
    %v5044 = vsel %vm5034, %v4903, %v5043
    %v5045 = vsel %vm5036, %v4904, %v5044
    %v5046 = vsel %vm5038, %v4905, %v5045
    %v5047 = vsel %vm5026, %v4907, %v4906
    %v5048 = vsel %vm5028, %v4908, %v5047
    %v5049 = vsel %vm5030, %v4909, %v5048
    %v5050 = vsel %vm5032, %v4910, %v5049
    %v5051 = vsel %vm5034, %v4911, %v5050
    %v5052 = vsel %vm5036, %v4912, %v5051
    %v5053 = vsel %vm5038, %v4913, %v5052
    %v5054 = vsel %vm5026, %v4915, %v4914
    %v5055 = vsel %vm5028, %v4916, %v5054
    %v5056 = vsel %vm5030, %v4917, %v5055
    %v5057 = vsel %vm5032, %v4918, %v5056
    %v5058 = vsel %vm5034, %v4919, %v5057
    %v5059 = vsel %vm5036, %v4920, %v5058
    %v5060 = vsel %vm5038, %v4921, %v5059
    %v5061 = vsel %vm5026, %v4923, %v4922
    %v5062 = vsel %vm5028, %v4924, %v5061
    %v5063 = vsel %vm5030, %v4925, %v5062
    %v5064 = vsel %vm5032, %v4926, %v5063
    %v5065 = vsel %vm5034, %v4927, %v5064
    %v5066 = vsel %vm5036, %v4928, %v5065
    %v5067 = vsel %vm5038, %v4929, %v5066
    %v5068 = vsel %vm5026, %v4931, %v4930
    %v5069 = vsel %vm5028, %v4932, %v5068
    %v5070 = vsel %vm5030, %v4933, %v5069
    %v5071 = vsel %vm5032, %v4934, %v5070
    %v5072 = vsel %vm5034, %v4935, %v5071
    %v5073 = vsel %vm5036, %v4936, %v5072
    %v5074 = vsel %vm5038, %v4937, %v5073
    %v5075 = vsel %vm5026, %v4939, %v4938
    %v5076 = vsel %vm5028, %v4940, %v5075
    %v5077 = vsel %vm5030, %v4941, %v5076
    %v5078 = vsel %vm5032, %v4942, %v5077
    %v5079 = vsel %vm5034, %v4943, %v5078
    %v5080 = vsel %vm5036, %v4944, %v5079
    %v5081 = vsel %vm5038, %v4945, %v5080
    %v5082 = vsel %vm5026, %v4947, %v4946
    %v5083 = vsel %vm5028, %v4948, %v5082
    %v5084 = vsel %vm5030, %v4949, %v5083
    %v5085 = vsel %vm5032, %v4950, %v5084
    %v5086 = vsel %vm5034, %v4951, %v5085
    %v5087 = vsel %vm5036, %v4952, %v5086
    %v5088 = vsel %vm5038, %v4953, %v5087
    %5105 = vrot.lane.b32.xlu0 %v4954, 64
    %v5106 = vpop.permute.xlu0 %5105
    %5107 = vrot.lane.b32.xlu0 %v4955, 64
    %v5108 = vpop.permute.xlu0 %5107
    %5109 = vrot.lane.b32.xlu0 %v4956, 64
    %v5110 = vpop.permute.xlu0 %5109
    %5111 = vrot.lane.b32.xlu0 %v4957, 64
    %v5112 = vpop.permute.xlu0 %5111
    %5113 = vrot.lane.b32.xlu0 %v4958, 64
    %v5114 = vpop.permute.xlu0 %5113
    %5115 = vrot.lane.b32.xlu0 %v4959, 64
    %v5116 = vpop.permute.xlu0 %5115
    %5117 = vrot.lane.b32.xlu0 %v4960, 64
    %v5118 = vpop.permute.xlu0 %5117
    %5119 = vrot.lane.b32.xlu0 %v4961, 64
    %v5120 = vpop.permute.xlu0 %5119
    %v5129 = vsel %vm469, %v5039, %v5106
    %v5130 = vsel %vm469, %v5046, %v5108
    %v5131 = vsel %vm469, %v5053, %v5110
    %v5132 = vsel %vm469, %v5060, %v5112
    %v5133 = vsel %vm469, %v5067, %v5114
    %v5134 = vsel %vm469, %v5074, %v5116
    %v5135 = vsel %vm469, %v5081, %v5118
    %v5136 = vsel %vm469, %v5088, %v5120
    %5137 = vadd.xlane.f32.xlu0 %v5129
    %v5138 = vpop.xlane.xlu0 %5137
    %5139 = vadd.xlane.f32.xlu0 %v5130
    %v5140 = vpop.xlane.xlu0 %5139
    %5141 = vadd.xlane.f32.xlu0 %v5131
    %v5142 = vpop.xlane.xlu0 %5141
    %5143 = vadd.xlane.f32.xlu0 %v5132
    %v5144 = vpop.xlane.xlu0 %5143
    %5145 = vadd.xlane.f32.xlu0 %v5133
    %v5146 = vpop.xlane.xlu0 %5145
    %5147 = vadd.xlane.f32.xlu0 %v5134
    %v5148 = vpop.xlane.xlu0 %5147
    %5149 = vadd.xlane.f32.xlu0 %v5135
    %v5150 = vpop.xlane.xlu0 %5149
    %5151 = vadd.xlane.f32.xlu0 %v5136
    %v5152 = vpop.xlane.xlu0 %5151
    %v5153 = vrcp.pop 128.0
    %v5154 = vmul.f32 %v5138, %v5153
    %v5155 = vmul.f32 %v5140, %v5153
    %v5156 = vmul.f32 %v5142, %v5153
    %v5157 = vmul.f32 %v5144, %v5153
    %v5158 = vmul.f32 %v5146, %v5153
    %v5159 = vmul.f32 %v5148, %v5153
    %v5160 = vmul.f32 %v5150, %v5153
    %v5161 = vmul.f32 %v5152, %v5153
    %v5162 = vsub.f32 %v5129, %v5154
    %v5163 = vsub.f32 %v5130, %v5155
    %v5164 = vsub.f32 %v5131, %v5156
    %v5165 = vsub.f32 %v5132, %v5157
    %v5166 = vsub.f32 %v5133, %v5158
    %v5167 = vsub.f32 %v5134, %v5159
    %v5168 = vsub.f32 %v5135, %v5160
    %v5169 = vsub.f32 %v5136, %v5161
    %v5170 = vmul.f32 %v5162, %v5162
    %v5171 = vmul.f32 %v5163, %v5163
    %v5172 = vmul.f32 %v5164, %v5164
    %v5173 = vmul.f32 %v5165, %v5165
    %v5174 = vmul.f32 %v5166, %v5166
    %v5175 = vmul.f32 %v5167, %v5167
    %v5176 = vmul.f32 %v5168, %v5168
    %v5177 = vmul.f32 %v5169, %v5169
    %5178 = vadd.xlane.f32.xlu0 %v5170
    %v5179 = vpop.xlane.xlu0 %5178
    %5180 = vadd.xlane.f32.xlu0 %v5171
    %v5181 = vpop.xlane.xlu0 %5180
    %5182 = vadd.xlane.f32.xlu0 %v5172
    %v5183 = vpop.xlane.xlu0 %5182
    %5184 = vadd.xlane.f32.xlu0 %v5173
    %v5185 = vpop.xlane.xlu0 %5184
    %5186 = vadd.xlane.f32.xlu0 %v5174
    %v5187 = vpop.xlane.xlu0 %5186
    %5188 = vadd.xlane.f32.xlu0 %v5175
    %v5189 = vpop.xlane.xlu0 %5188
    %5190 = vadd.xlane.f32.xlu0 %v5176
    %v5191 = vpop.xlane.xlu0 %5190
    %5192 = vadd.xlane.f32.xlu0 %v5177
    %v5193 = vpop.xlane.xlu0 %5192
    %v5194 = vmul.f32 %v5179, %v5153
    %v5195 = vmul.f32 %v5181, %v5153
    %v5196 = vmul.f32 %v5183, %v5153
    %v5197 = vmul.f32 %v5185, %v5153
    %v5198 = vmul.f32 %v5187, %v5153
    %v5199 = vmul.f32 %v5189, %v5153
    %v5200 = vmul.f32 %v5191, %v5153
    %v5201 = vmul.f32 %v5193, %v5153
    %v5202 = vadd.f32 %v5194, 1e-05
    %v5203 = vadd.f32 %v5195, 1e-05
    %v5204 = vadd.f32 %v5196, 1e-05
    %v5205 = vadd.f32 %v5197, 1e-05
    %v5206 = vadd.f32 %v5198, 1e-05
    %v5207 = vadd.f32 %v5199, 1e-05
    %v5208 = vadd.f32 %v5200, 1e-05
    %v5209 = vadd.f32 %v5201, 1e-05
    %v5210 = vrsqrt.pop %v5202
    %v5211 = vrsqrt.pop %v5203
    %v5212 = vrsqrt.pop %v5204
    %v5213 = vrsqrt.pop %v5205
    %v5214 = vrsqrt.pop %v5206
    %v5215 = vrsqrt.pop %v5207
    %v5216 = vrsqrt.pop %v5208
    %v5217 = vrsqrt.pop %v5209
    %v5218 = vmul.f32 %v5162, %v5210
    %v5219 = vmul.f32 %v5163, %v5211
    %v5220 = vmul.f32 %v5164, %v5212
    %v5221 = vmul.f32 %v5165, %v5213
    %v5222 = vmul.f32 %v5166, %v5214
    %v5223 = vmul.f32 %v5167, %v5215
    %v5224 = vmul.f32 %v5168, %v5216
    %v5225 = vmul.f32 %v5169, %v5217
    %v5226 = vld [vmem:[%s1 + $0x130] sm:$0xff]
    %v5227 = vld [vmem:[%s1 + $0x138] sm:$0xff]
    %v5228 = vld [vmem:[%s1 + $0x140] sm:$0xff]
    %v5229 = vld [vmem:[%s1 + $0x148] sm:$0xff]
    %v5230 = vld [vmem:[%s1 + $0x150] sm:$0xff]
    %v5231 = vld [vmem:[%s1 + $0x158] sm:$0xff]
    %v5232 = vld [vmem:[%s1 + $0x160] sm:$0xff]
    %v5233 = vld [vmem:[%s1 + $0x168] sm:$0xff]
    %v5234 = vld [vmem:[%s1 + $0x170] sm:$0xff]
    %v5235 = vld [vmem:[%s1 + $0x178] sm:$0xff]
    %v5236 = vld [vmem:[%s1 + $0x180] sm:$0xff]
    %v5237 = vld [vmem:[%s1 + $0x188] sm:$0xff]
    %v5238 = vld [vmem:[%s1 + $0x190] sm:$0xff]
    %v5239 = vld [vmem:[%s1 + $0x198] sm:$0xff]
    %v5240 = vld [vmem:[%s1 + $0x1a0] sm:$0xff]
    %v5241 = vld [vmem:[%s1 + $0x1a8] sm:$0xff]
    %v5242 = vld [vmem:[%s1 + $0x1b0] sm:$0x1]
    %v5243 = vld [vmem:[%s1 + $0x1b8] sm:$0xff]
    %v5244 = vld [vmem:[%s1 + $0x1c0] sm:$0xff]
    %v5245 = vld [vmem:[%s1 + $0x1c8] sm:$0xff]
    %v5246 = vld [vmem:[%s1 + $0x1d0] sm:$0xff]
    %v5247 = vld [vmem:[%s1 + $0x1d8] sm:$0xff]
    %v5248 = vld [vmem:[%s1 + $0x1e0] sm:$0xff]
    %v5249 = vld [vmem:[%s1 + $0x1e8] sm:$0xff]
    %v5250 = vld [vmem:[%s1 + $0x1f0] sm:$0xff]
    %v5251 = vld [vmem:[%s1 + $0x1f8] sm:$0x1]
    %v5252 = vlaneseq
    %v5253 = vshrl.u32 %v5252, 7
    %v5254 = vsub.s32 0, %v5253
    %v5255 = vrot.slane %v5242, %v5254
    %5256 = vmatprep.subr.mxu0 0.0
    %5257 = vmatpush1.msra.mxu0 %v5226
    %5258 = vmatprep.subr.mxu0 0.0
    %5259 = vmatpush1.msra.mxu0 %v5227
    %5260 = vmatprep.subr.mxu0 0.0
    %5261 = vmatpush1.msra.mxu0 %v5228
    %5262 = vmatprep.subr.mxu0 0.0
    %5263 = vmatpush1.msra.mxu0 %v5229
    %5264 = vmatprep.subr.mxu0 0.0
    %5265 = vmatpush1.msra.mxu0 %v5230
    %5266 = vmatprep.subr.mxu0 0.0
    %5267 = vmatpush1.msra.mxu0 %v5231
    %5268 = vmatprep.subr.mxu0 0.0
    %5269 = vmatpush1.msra.mxu0 %v5232
    %5270 = vmatprep.subr.mxu0 0.0
    %5271 = vmatpush1.msra.mxu0 %v5233
    %5272 = vmatprep.subr.mxu0 0.0
    %5273 = vmatpush1.msra.mxu0 %v5234
    %5274 = vmatprep.subr.mxu0 0.0
    %5275 = vmatpush1.msra.mxu0 %v5235
    %5276 = vmatprep.subr.mxu0 0.0
    %5277 = vmatpush1.msra.mxu0 %v5236
    %5278 = vmatprep.subr.mxu0 0.0
    %5279 = vmatpush1.msra.mxu0 %v5237
    %5280 = vmatprep.subr.mxu0 0.0
    %5281 = vmatpush1.msra.mxu0 %v5238
    %5282 = vmatprep.subr.mxu0 0.0
    %5283 = vmatpush1.msra.mxu0 %v5239
    %5284 = vmatprep.subr.mxu0 0.0
    %5285 = vmatpush1.msra.mxu0 %v5240
    %5286 = vmatprep.subr.mxu0 0.0
    %5287 = vmatpush1.msra.mxu0 %v5241
    %5288 = vmatprep.subr.mxu0 0.0
    %5289 = vmatpush1.msra.mxu0 0.0
    %5290 = vmatprep.subr.mxu0 0.0
    %5291 = vmatpush1.msra.mxu0 0.0
    %5292 = vmatprep.subr.mxu0 0.0
    %5293 = vmatpush1.msra.mxu0 0.0
    %5294 = vmatprep.subr.mxu0 0.0
    %5295 = vmatpush1.msra.mxu0 0.0
    %5296 = vmatprep.subr.mxu0 0.0
    %5297 = vmatpush1.msra.mxu0 0.0
    %5298 = vmatprep.subr.mxu0 0.0
    %5299 = vmatpush1.msra.mxu0 0.0
    %5300 = vmatprep.subr.mxu0 0.0
    %5301 = vmatpush1.msra.mxu0 0.0
    %5302 = vmatprep.subr.mxu0 0.0
    %5303 = vmatpush1.msra.mxu0 0.0
    %5304 = vmatprep.subr.mxu0 0.0
    %5305 = vmatpush1.msra.mxu0 0.0
    %5306 = vmatprep.subr.mxu0 0.0
    %5307 = vmatpush1.msra.mxu0 0.0
    %5308 = vmatprep.subr.mxu0 0.0
    %5309 = vmatpush1.msra.mxu0 0.0
    %5310 = vmatprep.subr.mxu0 0.0
    %5311 = vmatpush1.msra.mxu0 0.0
    %5312 = vmatprep.subr.mxu0 0.0
    %5313 = vmatpush1.msra.mxu0 0.0
    %5314 = vmatprep.subr.mxu0 0.0
    %5315 = vmatpush1.msra.mxu0 0.0
    %5316 = vmatprep.subr.mxu0 0.0
    %5317 = vmatpush1.msra.mxu0 0.0
    %5318 = vmatprep.subr.mxu0 0.0
    %5319 = vmatpush1.msra.mxu0 0.0
    %5320 = vmatprep.mubr.f32.mxu0 0.0
    %5321 = vmatmul.mubr.f32.gmra.mrb[0].mxu0 %v5218
    %v5322 = vpop.f32.mrb[0].mxu0
    %v5323 = vadd.f32 %v5255, %v5322
    %v5324 = vpop.f32.mrb[0].mxu0
    %5325 = vmatprep.mubr.f32.mxu0 0.0
    %5326 = vmatmul.mubr.f32.gmra.mrb[0].mxu0 %v5219
    %v5327 = vpop.f32.mrb[0].mxu0
    %v5328 = vadd.f32 %v5255, %v5327
    %v5329 = vpop.f32.mrb[0].mxu0
    %5330 = vmatprep.mubr.f32.mxu0 0.0
    %5331 = vmatmul.mubr.f32.gmra.mrb[0].mxu0 %v5220
    %v5332 = vpop.f32.mrb[0].mxu0
    %v5333 = vadd.f32 %v5255, %v5332
    %v5334 = vpop.f32.mrb[0].mxu0
    %5335 = vmatprep.mubr.f32.mxu0 0.0
    %5336 = vmatmul.mubr.f32.gmra.mrb[0].mxu0 %v5221
    %v5337 = vpop.f32.mrb[0].mxu0
    %v5338 = vadd.f32 %v5255, %v5337
    %v5339 = vpop.f32.mrb[0].mxu0
    %5340 = vmatprep.mubr.f32.mxu0 0.0
    %5341 = vmatmul.mubr.f32.gmra.mrb[0].mxu0 %v5222
    %v5342 = vpop.f32.mrb[0].mxu0
    %v5343 = vadd.f32 %v5255, %v5342
    %v5344 = vpop.f32.mrb[0].mxu0
    %5345 = vmatprep.mubr.f32.mxu0 0.0
    %5346 = vmatmul.mubr.f32.gmra.mrb[0].mxu0 %v5223
    %v5347 = vpop.f32.mrb[0].mxu0
    %v5348 = vadd.f32 %v5255, %v5347
    %v5349 = vpop.f32.mrb[0].mxu0
    %5350 = vmatprep.mubr.f32.mxu0 0.0
    %5351 = vmatmul.mubr.f32.gmra.mrb[0].mxu0 %v5224
    %v5352 = vpop.f32.mrb[0].mxu0
    %v5353 = vadd.f32 %v5255, %v5352
    %v5354 = vpop.f32.mrb[0].mxu0
    %5355 = vmatprep.mubr.f32.mxu0 0.0
    %5356 = vmatmul.mubr.f32.gmra.mrb[0].mxu0 %v5225
    %v5357 = vpop.f32.mrb[0].mxu0
    %v5358 = vadd.f32 %v5255, %v5357
    %v5359 = vpop.f32.mrb[0].mxu0
    %5360 = vdwg.mxu0
    %v5361 = vmax.f32 %v5323, 0.0
    %v5362 = vmax.f32 %v5328, 0.0
    %v5363 = vmax.f32 %v5333, 0.0
    %v5364 = vmax.f32 %v5338, 0.0
    %v5365 = vmax.f32 %v5343, 0.0
    %v5366 = vmax.f32 %v5348, 0.0
    %v5367 = vmax.f32 %v5353, 0.0
    %v5368 = vmax.f32 %v5358, 0.0
    %v5369 = vlaneseq
    %v5370 = vshrl.u32 %v5369, 7
    %v5371 = vsub.s32 0, %v5370
    %v5372 = vrot.slane %v5251, %v5371
    %v5374 = vsel %vm469, %v5361, 0
    %v5377 = vsel %vm469, %v5362, 0
    %v5380 = vsel %vm469, %v5363, 0
    %v5383 = vsel %vm469, %v5364, 0
    %v5386 = vsel %vm469, %v5365, 0
    %v5389 = vsel %vm469, %v5366, 0
    %v5392 = vsel %vm469, %v5367, 0
    %v5395 = vsel %vm469, %v5368, 0
    %5397 = vmatprep.subr.mxu0 0.0
    %5398 = vmatpush1.msra.mxu0 %v5243
    %5399 = vmatprep.subr.mxu0 0.0
    %5400 = vmatpush1.msra.mxu0 %v5244
    %5401 = vmatprep.subr.mxu0 0.0
    %5402 = vmatpush1.msra.mxu0 %v5245
    %5403 = vmatprep.subr.mxu0 0.0
    %5404 = vmatpush1.msra.mxu0 %v5246
    %5405 = vmatprep.subr.mxu0 0.0
    %5406 = vmatpush1.msra.mxu0 %v5247
    %5407 = vmatprep.subr.mxu0 0.0
    %5408 = vmatpush1.msra.mxu0 %v5248
    %5409 = vmatprep.subr.mxu0 0.0
    %5410 = vmatpush1.msra.mxu0 %v5249
    %5411 = vmatprep.subr.mxu0 0.0
    %5412 = vmatpush1.msra.mxu0 %v5250
    %5413 = vmatprep.subr.mxu0 0.0
    %5414 = vmatpush1.msra.mxu0 0.0
    %5415 = vmatprep.subr.mxu0 0.0
    %5416 = vmatpush1.msra.mxu0 0.0
    %5417 = vmatprep.subr.mxu0 0.0
    %5418 = vmatpush1.msra.mxu0 0.0
    %5419 = vmatprep.subr.mxu0 0.0
    %5420 = vmatpush1.msra.mxu0 0.0
    %5421 = vmatprep.subr.mxu0 0.0
    %5422 = vmatpush1.msra.mxu0 0.0
    %5423 = vmatprep.subr.mxu0 0.0
    %5424 = vmatpush1.msra.mxu0 0.0
    %5425 = vmatprep.subr.mxu0 0.0
    %5426 = vmatpush1.msra.mxu0 0.0
    %5427 = vmatprep.subr.mxu0 0.0
    %5428 = vmatpush1.msra.mxu0 0.0
    %5429 = vmatprep.subr.mxu0 0.0
    %5430 = vmatpush1.msra.mxu0 0.0
    %5431 = vmatprep.subr.mxu0 0.0
    %5432 = vmatpush1.msra.mxu0 0.0
    %5433 = vmatprep.subr.mxu0 0.0
    %5434 = vmatpush1.msra.mxu0 0.0
    %5435 = vmatprep.subr.mxu0 0.0
    %5436 = vmatpush1.msra.mxu0 0.0
    %5437 = vmatprep.subr.mxu0 0.0
    %5438 = vmatpush1.msra.mxu0 0.0
    %5439 = vmatprep.subr.mxu0 0.0
    %5440 = vmatpush1.msra.mxu0 0.0
    %5441 = vmatprep.subr.mxu0 0.0
    %5442 = vmatpush1.msra.mxu0 0.0
    %5443 = vmatprep.subr.mxu0 0.0
    %5444 = vmatpush1.msra.mxu0 0.0
    %5445 = vmatprep.subr.mxu0 0.0
    %5446 = vmatpush1.msra.mxu0 0.0
    %5447 = vmatprep.subr.mxu0 0.0
    %5448 = vmatpush1.msra.mxu0 0.0
    %5449 = vmatprep.subr.mxu0 0.0
    %5450 = vmatpush1.msra.mxu0 0.0
    %5451 = vmatprep.subr.mxu0 0.0
    %5452 = vmatpush1.msra.mxu0 0.0
    %5453 = vmatprep.subr.mxu0 0.0
    %5454 = vmatpush1.msra.mxu0 0.0
    %5455 = vmatprep.subr.mxu0 0.0
    %5456 = vmatpush1.msra.mxu0 0.0
    %5457 = vmatprep.subr.mxu0 0.0
    %5458 = vmatpush1.msra.mxu0 0.0
    %5459 = vmatprep.subr.mxu0 0.0
    %5460 = vmatpush1.msra.mxu0 0.0
    %5461 = vmatprep.mubr.f32.mxu0 0.0
    %5462 = vmatmul.mubr.f32.gmra.mrb[0].mxu0 %v5374
    %v5463 = vpop.f32.mrb[0].mxu0
    %v5464 = vadd.f32 %v5372, %v5463
    %v5465 = vpop.f32.mrb[0].mxu0
    %5466 = vmatprep.mubr.f32.mxu0 0.0
    %5467 = vmatmul.mubr.f32.gmra.mrb[0].mxu0 %v5377
    %v5468 = vpop.f32.mrb[0].mxu0
    %v5469 = vadd.f32 %v5372, %v5468
    %v5470 = vpop.f32.mrb[0].mxu0
    %5471 = vmatprep.mubr.f32.mxu0 0.0
    %5472 = vmatmul.mubr.f32.gmra.mrb[0].mxu0 %v5380
    %v5473 = vpop.f32.mrb[0].mxu0
    %v5474 = vadd.f32 %v5372, %v5473
    %v5475 = vpop.f32.mrb[0].mxu0
    %5476 = vmatprep.mubr.f32.mxu0 0.0
    %5477 = vmatmul.mubr.f32.gmra.mrb[0].mxu0 %v5383
    %v5478 = vpop.f32.mrb[0].mxu0
    %v5479 = vadd.f32 %v5372, %v5478
    %v5480 = vpop.f32.mrb[0].mxu0
    %5481 = vmatprep.mubr.f32.mxu0 0.0
    %5482 = vmatmul.mubr.f32.gmra.mrb[0].mxu0 %v5386
    %v5483 = vpop.f32.mrb[0].mxu0
    %v5484 = vadd.f32 %v5372, %v5483
    %v5485 = vpop.f32.mrb[0].mxu0
    %5486 = vmatprep.mubr.f32.mxu0 0.0
    %5487 = vmatmul.mubr.f32.gmra.mrb[0].mxu0 %v5389
    %v5488 = vpop.f32.mrb[0].mxu0
    %v5489 = vadd.f32 %v5372, %v5488
    %v5490 = vpop.f32.mrb[0].mxu0
    %5491 = vmatprep.mubr.f32.mxu0 0.0
    %5492 = vmatmul.mubr.f32.gmra.mrb[0].mxu0 %v5392
    %v5493 = vpop.f32.mrb[0].mxu0
    %v5494 = vadd.f32 %v5372, %v5493
    %v5495 = vpop.f32.mrb[0].mxu0
    %5496 = vmatprep.mubr.f32.mxu0 0.0
    %5497 = vmatmul.mubr.f32.gmra.mrb[0].mxu0 %v5395
    %v5498 = vpop.f32.mrb[0].mxu0
    %v5499 = vadd.f32 %v5372, %v5498
    %v5500 = vpop.f32.mrb[0].mxu0
    %5501 = vdwg.mxu0
    %v5510 = vrot.slane %v5464, 1
    %v5511 = vrot.slane %v5464, 2
    %v5512 = vrot.slane %v5464, 3
    %v5513 = vrot.slane %v5464, 4
    %v5514 = vrot.slane %v5464, 5
    %v5515 = vrot.slane %v5464, 6
    %v5516 = vrot.slane %v5464, 7
    %v5517 = vrot.slane %v5469, 1
    %v5518 = vrot.slane %v5469, 2
    %v5519 = vrot.slane %v5469, 3
    %v5520 = vrot.slane %v5469, 4
    %v5521 = vrot.slane %v5469, 5
    %v5522 = vrot.slane %v5469, 6
    %v5523 = vrot.slane %v5469, 7
    %v5524 = vrot.slane %v5474, 1
    %v5525 = vrot.slane %v5474, 2
    %v5526 = vrot.slane %v5474, 3
    %v5527 = vrot.slane %v5474, 4
    %v5528 = vrot.slane %v5474, 5
    %v5529 = vrot.slane %v5474, 6
    %v5530 = vrot.slane %v5474, 7
    %v5531 = vrot.slane %v5479, 1
    %v5532 = vrot.slane %v5479, 2
    %v5533 = vrot.slane %v5479, 3
    %v5534 = vrot.slane %v5479, 4
    %v5535 = vrot.slane %v5479, 5
    %v5536 = vrot.slane %v5479, 6
    %v5537 = vrot.slane %v5479, 7
    %v5538 = vrot.slane %v5484, 1
    %v5539 = vrot.slane %v5484, 2
    %v5540 = vrot.slane %v5484, 3
    %v5541 = vrot.slane %v5484, 4
    %v5542 = vrot.slane %v5484, 5
    %v5543 = vrot.slane %v5484, 6
    %v5544 = vrot.slane %v5484, 7
    %v5545 = vrot.slane %v5489, 1
    %v5546 = vrot.slane %v5489, 2
    %v5547 = vrot.slane %v5489, 3
    %v5548 = vrot.slane %v5489, 4
    %v5549 = vrot.slane %v5489, 5
    %v5550 = vrot.slane %v5489, 6
    %v5551 = vrot.slane %v5489, 7
    %v5552 = vrot.slane %v5494, 1
    %v5553 = vrot.slane %v5494, 2
    %v5554 = vrot.slane %v5494, 3
    %v5555 = vrot.slane %v5494, 4
    %v5556 = vrot.slane %v5494, 5
    %v5557 = vrot.slane %v5494, 6
    %v5558 = vrot.slane %v5494, 7
    %v5559 = vrot.slane %v5499, 1
    %v5560 = vrot.slane %v5499, 2
    %v5561 = vrot.slane %v5499, 3
    %v5562 = vrot.slane %v5499, 4
    %v5563 = vrot.slane %v5499, 5
    %v5564 = vrot.slane %v5499, 6
    %v5565 = vrot.slane %v5499, 7
    %v5630 = vsel %vm4826, -inf, %v5464
    %v5631 = vsel %vm4827, -inf, %v5510
    %v5632 = vsel %vm4828, -inf, %v5511
    %v5633 = vsel %vm4829, -inf, %v5512
    %v5634 = vsel %vm4830, -inf, %v5513
    %v5635 = vsel %vm4831, -inf, %v5514
    %v5636 = vsel %vm4832, -inf, %v5515
    %v5637 = vsel %vm4833, -inf, %v5516
    %v5638 = vsel %vm4834, -inf, %v5469
    %v5639 = vsel %vm4835, -inf, %v5517
    %v5640 = vsel %vm4836, -inf, %v5518
    %v5641 = vsel %vm4837, -inf, %v5519
    %v5642 = vsel %vm4838, -inf, %v5520
    %v5643 = vsel %vm4839, -inf, %v5521
    %v5644 = vsel %vm4840, -inf, %v5522
    %v5645 = vsel %vm4841, -inf, %v5523
    %v5646 = vsel %vm4842, -inf, %v5474
    %v5647 = vsel %vm4843, -inf, %v5524
    %v5648 = vsel %vm4844, -inf, %v5525
    %v5649 = vsel %vm4845, -inf, %v5526
    %v5650 = vsel %vm4846, -inf, %v5527
    %v5651 = vsel %vm4847, -inf, %v5528
    %v5652 = vsel %vm4848, -inf, %v5529
    %v5653 = vsel %vm4849, -inf, %v5530
    %v5654 = vsel %vm4850, -inf, %v5479
    %v5655 = vsel %vm4851, -inf, %v5531
    %v5656 = vsel %vm4852, -inf, %v5532
    %v5657 = vsel %vm4853, -inf, %v5533
    %v5658 = vsel %vm4854, -inf, %v5534
    %v5659 = vsel %vm4855, -inf, %v5535
    %v5660 = vsel %vm4856, -inf, %v5536
    %v5661 = vsel %vm4857, -inf, %v5537
    %v5662 = vsel %vm4858, -inf, %v5484
    %v5663 = vsel %vm4859, -inf, %v5538
    %v5664 = vsel %vm4860, -inf, %v5539
    %v5665 = vsel %vm4861, -inf, %v5540
    %v5666 = vsel %vm4862, -inf, %v5541
    %v5667 = vsel %vm4863, -inf, %v5542
    %v5668 = vsel %vm4864, -inf, %v5543
    %v5669 = vsel %vm4865, -inf, %v5544
    %v5670 = vsel %vm4866, -inf, %v5489
    %v5671 = vsel %vm4867, -inf, %v5545
    %v5672 = vsel %vm4868, -inf, %v5546
    %v5673 = vsel %vm4869, -inf, %v5547
    %v5674 = vsel %vm4870, -inf, %v5548
    %v5675 = vsel %vm4871, -inf, %v5549
    %v5676 = vsel %vm4872, -inf, %v5550
    %v5677 = vsel %vm4873, -inf, %v5551
    %v5678 = vsel %vm4874, -inf, %v5494
    %v5679 = vsel %vm4875, -inf, %v5552
    %v5680 = vsel %vm4876, -inf, %v5553
    %v5681 = vsel %vm4877, -inf, %v5554
    %v5682 = vsel %vm4878, -inf, %v5555
    %v5683 = vsel %vm4879, -inf, %v5556
    %v5684 = vsel %vm4880, -inf, %v5557
    %v5685 = vsel %vm4881, -inf, %v5558
    %v5686 = vsel %vm4882, -inf, %v5499
    %v5687 = vsel %vm4883, -inf, %v5559
    %v5688 = vsel %vm4884, -inf, %v5560
    %v5689 = vsel %vm4885, -inf, %v5561
    %v5690 = vsel %vm4886, -inf, %v5562
    %v5691 = vsel %vm4887, -inf, %v5563
    %v5692 = vsel %vm4888, -inf, %v5564
    %v5693 = vsel %vm4889, -inf, %v5565
    %vm5694 = vcmask 1040384
    %v5695 = vsel %vm5694, %v5630, -inf
    %v5696 = vsel %vm5694, %v5631, -inf
    %v5697 = vmax.f32 %v5695, %v5696
    %v5698 = vsel %vm5694, %v5632, -inf
    %v5699 = vmax.f32 %v5697, %v5698
    %v5700 = vsel %vm5694, %v5633, -inf
    %v5701 = vmax.f32 %v5699, %v5700
    %v5702 = vsel %vm5694, %v5634, -inf
    %v5703 = vmax.f32 %v5701, %v5702
    %v5704 = vsel %vm5694, %v5635, -inf
    %v5705 = vmax.f32 %v5703, %v5704
    %v5706 = vsel %vm5694, %v5636, -inf
    %v5707 = vmax.f32 %v5705, %v5706
    %v5708 = vsel %vm5694, %v5637, -inf
    %v5709 = vmax.f32 %v5707, %v5708
    %v5710 = vsel %vm5694, %v5638, -inf
    %v5711 = vsel %vm5694, %v5639, -inf
    %v5712 = vmax.f32 %v5710, %v5711
    %v5713 = vsel %vm5694, %v5640, -inf
    %v5714 = vmax.f32 %v5712, %v5713
    %v5715 = vsel %vm5694, %v5641, -inf
    %v5716 = vmax.f32 %v5714, %v5715
    %v5717 = vsel %vm5694, %v5642, -inf
    %v5718 = vmax.f32 %v5716, %v5717
    %v5719 = vsel %vm5694, %v5643, -inf
    %v5720 = vmax.f32 %v5718, %v5719
    %v5721 = vsel %vm5694, %v5644, -inf
    %v5722 = vmax.f32 %v5720, %v5721
    %v5723 = vsel %vm5694, %v5645, -inf
    %v5724 = vmax.f32 %v5722, %v5723
    %v5725 = vsel %vm5694, %v5646, -inf
    %v5726 = vsel %vm5694, %v5647, -inf
    %v5727 = vmax.f32 %v5725, %v5726
    %v5728 = vsel %vm5694, %v5648, -inf
    %v5729 = vmax.f32 %v5727, %v5728
    %v5730 = vsel %vm5694, %v5649, -inf
    %v5731 = vmax.f32 %v5729, %v5730
    %v5732 = vsel %vm5694, %v5650, -inf
    %v5733 = vmax.f32 %v5731, %v5732
    %v5734 = vsel %vm5694, %v5651, -inf
    %v5735 = vmax.f32 %v5733, %v5734
    %v5736 = vsel %vm5694, %v5652, -inf
    %v5737 = vmax.f32 %v5735, %v5736
    %v5738 = vsel %vm5694, %v5653, -inf
    %v5739 = vmax.f32 %v5737, %v5738
    %v5740 = vsel %vm5694, %v5654, -inf
    %v5741 = vsel %vm5694, %v5655, -inf
    %v5742 = vmax.f32 %v5740, %v5741
    %v5743 = vsel %vm5694, %v5656, -inf
    %v5744 = vmax.f32 %v5742, %v5743
    %v5745 = vsel %vm5694, %v5657, -inf
    %v5746 = vmax.f32 %v5744, %v5745
    %v5747 = vsel %vm5694, %v5658, -inf
    %v5748 = vmax.f32 %v5746, %v5747
    %v5749 = vsel %vm5694, %v5659, -inf
    %v5750 = vmax.f32 %v5748, %v5749
    %v5751 = vsel %vm5694, %v5660, -inf
    %v5752 = vmax.f32 %v5750, %v5751
    %v5753 = vsel %vm5694, %v5661, -inf
    %v5754 = vmax.f32 %v5752, %v5753
    %v5755 = vsel %vm5694, %v5662, -inf
    %v5756 = vsel %vm5694, %v5663, -inf
    %v5757 = vmax.f32 %v5755, %v5756
    %v5758 = vsel %vm5694, %v5664, -inf
    %v5759 = vmax.f32 %v5757, %v5758
    %v5760 = vsel %vm5694, %v5665, -inf
    %v5761 = vmax.f32 %v5759, %v5760
    %v5762 = vsel %vm5694, %v5666, -inf
    %v5763 = vmax.f32 %v5761, %v5762
    %v5764 = vsel %vm5694, %v5667, -inf
    %v5765 = vmax.f32 %v5763, %v5764
    %v5766 = vsel %vm5694, %v5668, -inf
    %v5767 = vmax.f32 %v5765, %v5766
    %v5768 = vsel %vm5694, %v5669, -inf
    %v5769 = vmax.f32 %v5767, %v5768
    %v5770 = vsel %vm5694, %v5670, -inf
    %v5771 = vsel %vm5694, %v5671, -inf
    %v5772 = vmax.f32 %v5770, %v5771
    %v5773 = vsel %vm5694, %v5672, -inf
    %v5774 = vmax.f32 %v5772, %v5773
    %v5775 = vsel %vm5694, %v5673, -inf
    %v5776 = vmax.f32 %v5774, %v5775
    %v5777 = vsel %vm5694, %v5674, -inf
    %v5778 = vmax.f32 %v5776, %v5777
    %v5779 = vsel %vm5694, %v5675, -inf
    %v5780 = vmax.f32 %v5778, %v5779
    %v5781 = vsel %vm5694, %v5676, -inf
    %v5782 = vmax.f32 %v5780, %v5781
    %v5783 = vsel %vm5694, %v5677, -inf
    %v5784 = vmax.f32 %v5782, %v5783
    %v5785 = vsel %vm5694, %v5678, -inf
    %v5786 = vsel %vm5694, %v5679, -inf
    %v5787 = vmax.f32 %v5785, %v5786
    %v5788 = vsel %vm5694, %v5680, -inf
    %v5789 = vmax.f32 %v5787, %v5788
    %v5790 = vsel %vm5694, %v5681, -inf
    %v5791 = vmax.f32 %v5789, %v5790
    %v5792 = vsel %vm5694, %v5682, -inf
    %v5793 = vmax.f32 %v5791, %v5792
    %v5794 = vsel %vm5694, %v5683, -inf
    %v5795 = vmax.f32 %v5793, %v5794
    %v5796 = vsel %vm5694, %v5684, -inf
    %v5797 = vmax.f32 %v5795, %v5796
    %v5798 = vsel %vm5694, %v5685, -inf
    %v5799 = vmax.f32 %v5797, %v5798
    %v5800 = vsel %vm5694, %v5686, -inf
    %v5801 = vsel %vm5694, %v5687, -inf
    %v5802 = vmax.f32 %v5800, %v5801
    %v5803 = vsel %vm5694, %v5688, -inf
    %v5804 = vmax.f32 %v5802, %v5803
    %v5805 = vsel %vm5694, %v5689, -inf
    %v5806 = vmax.f32 %v5804, %v5805
    %v5807 = vsel %vm5694, %v5690, -inf
    %v5808 = vmax.f32 %v5806, %v5807
    %v5809 = vsel %vm5694, %v5691, -inf
    %v5810 = vmax.f32 %v5808, %v5809
    %v5811 = vsel %vm5694, %v5692, -inf
    %v5812 = vmax.f32 %v5810, %v5811
    %v5813 = vsel %vm5694, %v5693, -inf
    %v5814 = vmax.f32 %v5812, %v5813
    %v5823 = vrot.slane %v5724, 7
    %v5824 = vsel %vm5026, %v5823, %v5709
    %v5825 = vrot.slane %v5739, 6
    %v5826 = vsel %vm5028, %v5825, %v5824
    %v5827 = vrot.slane %v5754, 5
    %v5828 = vsel %vm5030, %v5827, %v5826
    %v5829 = vrot.slane %v5769, 4
    %v5830 = vsel %vm5032, %v5829, %v5828
    %v5831 = vrot.slane %v5784, 3
    %v5832 = vsel %vm5034, %v5831, %v5830
    %v5833 = vrot.slane %v5799, 2
    %v5834 = vsel %vm5036, %v5833, %v5832
    %v5835 = vrot.slane %v5814, 1
    %v5836 = vsel %vm5038, %v5835, %v5834
    %5838 = vst [vmem:[#allocation2] sm:$0xff] %v5836
    // Predicated region
    $region10: #{tpu_custom_call.1} parent=1 // pred_check
      _
    $region11: #{tpu_custom_call.1} parent=1 // pred_check_branch
      %5840 = sbr.rel (0) target = $region13
    $region12: #{tpu_custom_call.1} parent=1 // pred_region
      %s5842 = ssub.s32 128, 128
      %5843 = vsyncadd [#allocation3], %s5842
      %s5845 = sshll.u32 [#allocation2], 4
      %s5846 = int_to_ptr.vmem [resolvable:$true] %s5845
      %5848 = dma.vmem_to_hbm [thread:$0]  %s5846, 128, %s2, [#allocation3]
    $region13: #{tpu_custom_call.1} parent=1 // pred_fallthru
      _
    // Predicated region
    $region14: #{tpu_custom_call.1} parent=1 // pred_check
      _
    $region15: #{tpu_custom_call.1} parent=1 // pred_check_branch
      %5850 = sbr.rel (0) target = $region17
    $region16: #{tpu_custom_call.1} parent=1 // pred_region
      %5851 = dma.done [#allocation3], 128
    $region17: #{tpu_custom_call.1} parent=1 // pred_fallthru
      _
    %5852 = vsyncpa [#allocation3], 1

</llo_original>
